<compile_context>
chip_gen: v7x
topology: tpu7x:2x2x1
jax: 0.10.0
libtpu: 0.0.40
codegen_flags: <defaults>
</compile_context>

<pallas_src>
import jax
import jax.numpy as jnp
from jax import lax
from jax.experimental import pallas as pl
from jax.experimental.pallas import tpu as pltpu


def _lstm_autoreset_kernel(gx_ref, mask_ref, h0_ref, whh_ref, out_ref, hout_ref,
                           h_sc, c_sc):
    t_blk = pl.program_id(1)
    H = h_sc.shape[-1]
    TB = gx_ref.shape[0]

    # Initialize the carried (h, c) from the packed h0 at the first time block of this
    # batch block (packed as [h | c] along the last dim; split at H is tile-aligned).
    @pl.when(t_blk == 0)
    def _():
        h_sc[...] = h0_ref[0, :, :H]
        c_sc[...] = h0_ref[0, :, H:]

    mdtype = whh_ref.dtype  # matmul operand dtype (f32, or bf16 on v6e/v7x)

    def step(i, carry):
        h, c = carry
        # Auto-reset masking (mask = 1 - on_reset, precomputed in the wrapper).
        m = mask_ref[i]                                   # (BB, 1) -> broadcast over H
        h = h * m
        c = c * m
        # Recurrent projection only; the x projection + bias was hoisted out of the kernel.
        gates = gx_ref[i].astype(jnp.float32) + jnp.dot(
            h.astype(mdtype), whh_ref[...], preferred_element_type=jnp.float32)
        # PyTorch gate order i, f, g, o.  With H a multiple of 128 these slices are lane-aligned.
        i_g = jax.nn.sigmoid(gates[:, 0 * H:1 * H])
        f_g = jax.nn.sigmoid(gates[:, 1 * H:2 * H])
        g_g = jnp.tanh(gates[:, 2 * H:3 * H])
        o_g = jax.nn.sigmoid(gates[:, 3 * H:4 * H])
        c = f_g * c + i_g * g_g
        h = o_g * jnp.tanh(c)
        out_ref[i] = h.astype(out_ref.dtype)              # fills the resident output slab
        return (h, c)

    h, c = lax.fori_loop(0, TB, step, (h_sc[...], c_sc[...]), unroll=True)
    h_sc[...] = h
    c_sc[...] = c

    # Keep the resident h_ block up to date every time block; the final time block's write is
    # what lands in HBM (robust even if intermediate writebacks happen).
    hout_ref[0, :, :H] = h.astype(hout_ref.dtype)
    hout_ref[0, :, H:] = c.astype(hout_ref.dtype)


def auto_reset_lstm(x, on_reset, h0, w_ih, w_hh, b_ih, b_hh, *,
                    time_block=8, batch_block=None, matmul_dtype=jnp.float32):
    """AutoReset LSTM forward.

    x: (T, B, D), on_reset: (T, B, 1) binary (or None), h0: (1, B, 2H).
    Returns (x_: (T, B, H), h_: (1, B, 2H)).
    """
    T, B, D = x.shape
    H = w_hh.shape[1]
    assert h0.shape == (1, B, 2 * H)

    # ---- hoisted input projection: one large MXU-friendly matmul done by XLA -------------
    bias = (b_ih + b_hh).astype(jnp.float32)
    gates_x = (x.reshape(T * B, D).astype(jnp.float32) @ w_ih.T.astype(jnp.float32)
               + bias).reshape(T, B, 4 * H).astype(matmul_dtype)
    whh_t = w_hh.T.astype(matmul_dtype)                       # (H, 4H)
    if on_reset is None:
        masks = jnp.ones((T, B, 1), dtype=jnp.float32)
    else:
        # NOTE: equivalence to the segment-splitting PyTorch module requires binary on_reset.
        masks = (1.0 - on_reset).astype(jnp.float32)          # (T, B, 1)

    # ---- time / batch blocking -------------------------------------------------------------
    TB = max(d for d in range(1, min(time_block, T) + 1) if T % d == 0)
    BB = B if batch_block is None else batch_block
    assert B % BB == 0 and (BB == B or BB % 8 == 0), "batch block must be sublane-aligned"
    grid = (B // BB, T // TB)

    out_shapes = (
        jax.ShapeDtypeStruct((T, B, H), x.dtype),
        jax.ShapeDtypeStruct((1, B, 2 * H), x.dtype),
    )

    grid_spec = pltpu.PrefetchScalarGridSpec(
        num_scalar_prefetch=0,
        grid=grid,
        in_specs=[
            pl.BlockSpec((TB, BB, 4 * H), lambda b, t: (t, b, 0)),   # gates_x slab
            pl.BlockSpec((TB, BB, 1), lambda b, t: (t, b, 0)),       # masks slab
            pl.BlockSpec((1, BB, 2 * H), lambda b, t: (0, b, 0)),    # h0 (read at t_blk == 0)
            pl.BlockSpec((H, 4 * H), lambda b, t: (0, 0)),           # W_hh^T (constant)
        ],
        out_specs=[
            pl.BlockSpec((TB, BB, H), lambda b, t: (t, b, 0)),       # x_
            pl.BlockSpec((1, BB, 2 * H), lambda b, t: (0, b, 0)),    # h_ (resident over t)
        ],
        scratch_shapes=[
            pltpu.VMEM((BB, H), jnp.float32),                        # h carry
            pltpu.VMEM((BB, H), jnp.float32),                        # c carry
        ],
    )

    return pl.pallas_call(
        _lstm_autoreset_kernel,
        out_shape=out_shapes,
        grid_spec=grid_spec,
        compiler_params=pltpu.CompilerParams(
            # batch blocks are independent (megacore-shardable); time recurrence is sequential
            dimension_semantics=("parallel", "arbitrary")),
    )(gates_x, masks, h0, whh_t)


def auto_reset_lstm_ref(x, on_reset, h0, w_ih, w_hh, b_ih, b_hh):
    """Pure-JAX reference (per-timestep masking == PyTorch segment splitting for binary resets)."""
    H = w_hh.shape[1]
    h = h0[0, :, :H]
    c = h0[0, :, H:]

    def step(carry, inp):
        h, c = carry
        x_t, r_t = inp
        m = 1.0 - r_t
        h = h * m
        c = c * m
        gates = x_t @ w_ih.T + b_ih + h @ w_hh.T + b_hh
        i = jax.nn.sigmoid(gates[:, :H])
        f = jax.nn.sigmoid(gates[:, H:2 * H])
        g = jnp.tanh(gates[:, 2 * H:3 * H])
        o = jax.nn.sigmoid(gates[:, 3 * H:])
        c = f * c + i * g
        h = o * jnp.tanh(c)
        return (h, c), h

    (h, c), ys = lax.scan(step, (h, c), (x, on_reset))
    return ys, jnp.concatenate([h, c], axis=-1)[None]


if __name__ == "__main__":
    # seq, batch, input_dim, hidden.  H is a multiple of 128 -> lane-dense output stores and
    # tile-aligned gate slices; T/B chosen so the (batch, time) grid is (2, 2) and exercises
    # the carry across time blocks and per-batch-block h0 init.
    T, B, D, H = 16, 16, 64, 128

    key = jax.random.PRNGKey(0)
    kx, kr, kh, k1, k2, k3, k4 = jax.random.split(key, 7)

    x = jax.random.normal(kx, (T, B, D), dtype=jnp.float32)
    on_reset = jax.random.bernoulli(kr, 0.2, (T, B, 1)).astype(jnp.float32)
    h0 = jax.random.normal(kh, (1, B, 2 * H), dtype=jnp.float32)

    # PyTorch-style uniform(-1/sqrt(H), 1/sqrt(H)) LSTM parameters.
    s = 1.0 / jnp.sqrt(jnp.float32(H))
    w_ih = jax.random.uniform(k1, (4 * H, D), jnp.float32, -s, s)
    w_hh = jax.random.uniform(k2, (4 * H, H), jnp.float32, -s, s)
    b_ih = jax.random.uniform(k3, (4 * H,), jnp.float32, -s, s)
    b_hh = jax.random.uniform(k4, (4 * H,), jnp.float32, -s, s)

    # float32 path (exact check against the pure-JAX reference).
    x_out, h_out = auto_reset_lstm(x, on_reset, h0, w_ih, w_hh, b_ih, b_hh,
                                   time_block=8, batch_block=8)
    jax.block_until_ready((x_out, h_out))

    x_ref, h_ref = auto_reset_lstm_ref(x, on_reset, h0, w_ih, w_hh, b_ih, b_hh)
    assert x_out.shape == (T, B, H) and h_out.shape == (1, B, 2 * H)
    assert jnp.allclose(x_out, x_ref, rtol=1e-4, atol=1e-5)
    assert jnp.allclose(h_out, h_ref, rtol=1e-4, atol=1e-5)

    # bf16 matmul-operand path (v6e/v7x MXU); loose check only (reduced precision by design).
    xb_out, hb_out = auto_reset_lstm(x, on_reset, h0, w_ih, w_hh, b_ih, b_hh,
                                     time_block=8, batch_block=8,
                                     matmul_dtype=jnp.bfloat16)
    jax.block_until_ready((xb_out, hb_out))
    assert bool(jnp.isfinite(xb_out).all()) and bool(jnp.isfinite(hb_out).all())
    assert jnp.allclose(xb_out, x_ref, rtol=0.1, atol=0.1)
    assert jnp.allclose(hb_out, h_ref, rtol=0.1, atol=0.1)

    print("KERNEL_OK")
</pallas_src>

<mosaic_0001>
module attributes {stable_mosaic.version = 11 : i64} {
  func.func @_lstm_autoreset_kernel(%arg0: i32, %arg1: i32, %arg2: memref<8x8x512xf32, #tpu.memory_space<vmem>>, %arg3: memref<8x8x1xf32, #tpu.memory_space<vmem>>, %arg4: memref<1x8x256xf32, #tpu.memory_space<vmem>>, %arg5: memref<128x512xf32, #tpu.memory_space<vmem>>, %arg6: memref<8x8x128xf32, #tpu.memory_space<vmem>>, %arg7: memref<1x8x256xf32, #tpu.memory_space<vmem>>, %arg8: memref<8x128xf32, #tpu.memory_space<vmem>>, %arg9: memref<8x128xf32, #tpu.memory_space<vmem>>) attributes {dimension_semantics = [#tpu.dimension_semantics<parallel>, #tpu.dimension_semantics<arbitrary>], iteration_bounds = array<i64: 2, 2>, scalar_prefetch = 0 : i64, scratch_operands = 2 : i64, tpu.core_type = #tpu.core_type<tc>, window_params = [{transform_indices = @transform_0, window_bounds = array<i64: 8, 8, 512>}, {transform_indices = @transform_1, window_bounds = array<i64: 8, 8, 1>}, {transform_indices = @transform_2, window_bounds = array<i64: 1, 8, 256>}, {pipeline_mode = #tpu.pipeline_mode<synchronous>, transform_indices = @transform_3, window_bounds = array<i64: 128, 512>}, {transform_indices = @transform_4, window_bounds = array<i64: 8, 8, 128>}, {transform_indices = @transform_5, window_bounds = array<i64: 1, 8, 256>}]} {
    %c0_i32 = arith.constant 0 : i32
    %0 = arith.cmpi eq, %arg1, %c0_i32 : i32
    %1 = arith.extui %0 : i1 to i32
    %c0_i32_0 = arith.constant 0 : i32
    %2 = arith.cmpi ne, %1, %c0_i32_0 : i32
    scf.if %2 {
      %c0_109 = arith.constant 0 : index
      %c0_110 = arith.constant 0 : index
      %c0_111 = arith.constant 0 : index
      %349 = vector.load %arg4[%c0_109, %c0_110, %c0_111] : memref<1x8x256xf32, #tpu.memory_space<vmem>>, vector<1x8x128xf32>
      %350 = vector.shape_cast %349 : vector<1x8x128xf32> to vector<8x128xf32>
      %c0_112 = arith.constant 0 : index
      %c0_113 = arith.constant 0 : index
      %351 = vector.load %arg8[%c0_112, %c0_113] : memref<8x128xf32, #tpu.memory_space<vmem>>, vector<8x128xf32>
      tpu.vector_store %arg8[%c0_112, %c0_113], %350 {strides = array<i32>} : memref<8x128xf32, #tpu.memory_space<vmem>>, vector<8x128xf32>,
      %c0_114 = arith.constant 0 : index
      %c0_115 = arith.constant 0 : index
      %c128_116 = arith.constant 128 : index
      %352 = vector.load %arg4[%c0_114, %c0_115, %c128_116] : memref<1x8x256xf32, #tpu.memory_space<vmem>>, vector<1x8x128xf32>
      %353 = vector.shape_cast %352 : vector<1x8x128xf32> to vector<8x128xf32>
      %c0_117 = arith.constant 0 : index
      %c0_118 = arith.constant 0 : index
      %354 = vector.load %arg9[%c0_117, %c0_118] : memref<8x128xf32, #tpu.memory_space<vmem>>, vector<8x128xf32>
      tpu.vector_store %arg9[%c0_117, %c0_118], %353 {strides = array<i32>} : memref<8x128xf32, #tpu.memory_space<vmem>>, vector<8x128xf32>,
    } else {
    }
    %c0 = arith.constant 0 : index
    %c0_1 = arith.constant 0 : index
    %3 = vector.load %arg8[%c0, %c0_1] : memref<8x128xf32, #tpu.memory_space<vmem>>, vector<8x128xf32>
    %c0_2 = arith.constant 0 : index
    %c0_3 = arith.constant 0 : index
    %4 = vector.load %arg9[%c0_2, %c0_3] : memref<8x128xf32, #tpu.memory_space<vmem>>, vector<8x128xf32>
    %c0_i32_4 = arith.constant 0 : i32
    %5 = arith.index_cast %c0_i32_4 : i32 to index
    %c0_5 = arith.constant 0 : index
    %c0_6 = arith.constant 0 : index
    %6 = vector.load %arg3[%5, %c0_5, %c0_6] : memref<8x8x1xf32, #tpu.memory_space<vmem>>, vector<1x8x1xf32>
    %7 = vector.shape_cast %6 : vector<1x8x1xf32> to vector<8x1xf32>
    %8 = vector.broadcast %7 : vector<8x1xf32> to vector<8x128xf32>
    %9 = arith.mulf %3, %8 : vector<8x128xf32>
    %10 = vector.broadcast %7 : vector<8x1xf32> to vector<8x128xf32>
    %11 = arith.mulf %4, %10 : vector<8x128xf32>
    %12 = arith.index_cast %c0_i32_4 : i32 to index
    %c0_7 = arith.constant 0 : index
    %c0_8 = arith.constant 0 : index
    %13 = vector.load %arg2[%12, %c0_7, %c0_8] : memref<8x8x512xf32, #tpu.memory_space<vmem>>, vector<1x8x512xf32>
    %14 = vector.shape_cast %13 : vector<1x8x512xf32> to vector<8x512xf32>
    %c0_9 = arith.constant 0 : index
    %c0_10 = arith.constant 0 : index
    %15 = vector.load %arg5[%c0_9, %c0_10] : memref<128x512xf32, #tpu.memory_space<vmem>>, vector<128x512xf32>
    %cst = arith.constant dense<0.000000e+00> : vector<8x512xf32>
    %16 = tpu.matmul %9, %15, %cst {dimension_numbers = #tpu.dot_dimension_numbers<[1], [0], [0], [1], [0, 0, 1, 1], [], []>} : vector<8x128xf32>, vector<128x512xf32>, vector<8x512xf32> -> vector<8x512xf32>
    %17 = arith.addf %14, %16 : vector<8x512xf32>
    %18 = vector.extract_strided_slice %17 {offsets = [0, 0], sizes = [8, 128], strides = [1, 1]} : vector<8x512xf32> to vector<8x128xf32>
    %19 = arith.negf %18 : vector<8x128xf32>
    %20 = math.exp %19 : vector<8x128xf32>
    %cst_11 = arith.constant 1.000000e+00 : f32
    %21 = vector.broadcast %cst_11 : f32 to vector<8x128xf32>
    %22 = arith.addf %21, %20 : vector<8x128xf32>
    %23 = arith.divf %21, %22 : vector<8x128xf32>
    %24 = vector.extract_strided_slice %17 {offsets = [0, 128], sizes = [8, 128], strides = [1, 1]} : vector<8x512xf32> to vector<8x128xf32>
    %25 = arith.negf %24 : vector<8x128xf32>
    %26 = math.exp %25 : vector<8x128xf32>
    %cst_12 = arith.constant 1.000000e+00 : f32
    %27 = vector.broadcast %cst_12 : f32 to vector<8x128xf32>
    %28 = arith.addf %27, %26 : vector<8x128xf32>
    %29 = arith.divf %27, %28 : vector<8x128xf32>
    %30 = vector.extract_strided_slice %17 {offsets = [0, 256], sizes = [8, 128], strides = [1, 1]} : vector<8x512xf32> to vector<8x128xf32>
    %31 = math.tanh %30 : vector<8x128xf32>
    %32 = vector.extract_strided_slice %17 {offsets = [0, 384], sizes = [8, 128], strides = [1, 1]} : vector<8x512xf32> to vector<8x128xf32>
    %33 = arith.negf %32 : vector<8x128xf32>
    %34 = math.exp %33 : vector<8x128xf32>
    %cst_13 = arith.constant 1.000000e+00 : f32
    %35 = vector.broadcast %cst_13 : f32 to vector<8x128xf32>
    %36 = arith.addf %35, %34 : vector<8x128xf32>
    %37 = arith.divf %35, %36 : vector<8x128xf32>
    %38 = arith.mulf %29, %11 : vector<8x128xf32>
    %39 = arith.mulf %23, %31 : vector<8x128xf32>
    %40 = arith.addf %38, %39 : vector<8x128xf32>
    %41 = math.tanh %40 : vector<8x128xf32>
    %42 = arith.mulf %37, %41 : vector<8x128xf32>
    %43 = arith.index_cast %c0_i32_4 : i32 to index
    %c0_14 = arith.constant 0 : index
    %c0_15 = arith.constant 0 : index
    %44 = vector.load %arg6[%43, %c0_14, %c0_15] : memref<8x8x128xf32, #tpu.memory_space<vmem>>, vector<1x8x128xf32>
    %45 = vector.shape_cast %44 : vector<1x8x128xf32> to vector<8x128xf32>
    %46 = vector.shape_cast %42 : vector<8x128xf32> to vector<1x8x128xf32>
    tpu.vector_store %arg6[%43, %c0_14, %c0_15], %46 {strides = array<i32>} : memref<8x8x128xf32, #tpu.memory_space<vmem>>, vector<1x8x128xf32>,
    %c1_i32 = arith.constant 1 : i32
    %47 = arith.index_cast %c1_i32 : i32 to index
    %c0_16 = arith.constant 0 : index
    %c0_17 = arith.constant 0 : index
    %48 = vector.load %arg3[%47, %c0_16, %c0_17] : memref<8x8x1xf32, #tpu.memory_space<vmem>>, vector<1x8x1xf32>
    %49 = vector.shape_cast %48 : vector<1x8x1xf32> to vector<8x1xf32>
    %50 = vector.broadcast %49 : vector<8x1xf32> to vector<8x128xf32>
    %51 = arith.mulf %42, %50 : vector<8x128xf32>
    %52 = vector.broadcast %49 : vector<8x1xf32> to vector<8x128xf32>
    %53 = arith.mulf %40, %52 : vector<8x128xf32>
    %54 = arith.index_cast %c1_i32 : i32 to index
    %c0_18 = arith.constant 0 : index
    %c0_19 = arith.constant 0 : index
    %55 = vector.load %arg2[%54, %c0_18, %c0_19] : memref<8x8x512xf32, #tpu.memory_space<vmem>>, vector<1x8x512xf32>
    %56 = vector.shape_cast %55 : vector<1x8x512xf32> to vector<8x512xf32>
    %c0_20 = arith.constant 0 : index
    %c0_21 = arith.constant 0 : index
    %57 = vector.load %arg5[%c0_20, %c0_21] : memref<128x512xf32, #tpu.memory_space<vmem>>, vector<128x512xf32>
    %cst_22 = arith.constant dense<0.000000e+00> : vector<8x512xf32>
    %58 = tpu.matmul %51, %57, %cst_22 {dimension_numbers = #tpu.dot_dimension_numbers<[1], [0], [0], [1], [0, 0, 1, 1], [], []>} : vector<8x128xf32>, vector<128x512xf32>, vector<8x512xf32> -> vector<8x512xf32>
    %59 = arith.addf %56, %58 : vector<8x512xf32>
    %60 = vector.extract_strided_slice %59 {offsets = [0, 0], sizes = [8, 128], strides = [1, 1]} : vector<8x512xf32> to vector<8x128xf32>
    %61 = arith.negf %60 : vector<8x128xf32>
    %62 = math.exp %61 : vector<8x128xf32>
    %cst_23 = arith.constant 1.000000e+00 : f32
    %63 = vector.broadcast %cst_23 : f32 to vector<8x128xf32>
    %64 = arith.addf %63, %62 : vector<8x128xf32>
    %65 = arith.divf %63, %64 : vector<8x128xf32>
    %66 = vector.extract_strided_slice %59 {offsets = [0, 128], sizes = [8, 128], strides = [1, 1]} : vector<8x512xf32> to vector<8x128xf32>
    %67 = arith.negf %66 : vector<8x128xf32>
    %68 = math.exp %67 : vector<8x128xf32>
    %cst_24 = arith.constant 1.000000e+00 : f32
    %69 = vector.broadcast %cst_24 : f32 to vector<8x128xf32>
    %70 = arith.addf %69, %68 : vector<8x128xf32>
    %71 = arith.divf %69, %70 : vector<8x128xf32>
    %72 = vector.extract_strided_slice %59 {offsets = [0, 256], sizes = [8, 128], strides = [1, 1]} : vector<8x512xf32> to vector<8x128xf32>
    %73 = math.tanh %72 : vector<8x128xf32>
    %74 = vector.extract_strided_slice %59 {offsets = [0, 384], sizes = [8, 128], strides = [1, 1]} : vector<8x512xf32> to vector<8x128xf32>
    %75 = arith.negf %74 : vector<8x128xf32>
    %76 = math.exp %75 : vector<8x128xf32>
    %cst_25 = arith.constant 1.000000e+00 : f32
    %77 = vector.broadcast %cst_25 : f32 to vector<8x128xf32>
    %78 = arith.addf %77, %76 : vector<8x128xf32>
    %79 = arith.divf %77, %78 : vector<8x128xf32>
    %80 = arith.mulf %71, %53 : vector<8x128xf32>
    %81 = arith.mulf %65, %73 : vector<8x128xf32>
    %82 = arith.addf %80, %81 : vector<8x128xf32>
    %83 = math.tanh %82 : vector<8x128xf32>
    %84 = arith.mulf %79, %83 : vector<8x128xf32>
    %85 = arith.index_cast %c1_i32 : i32 to index
    %c0_26 = arith.constant 0 : index
    %c0_27 = arith.constant 0 : index
    %86 = vector.load %arg6[%85, %c0_26, %c0_27] : memref<8x8x128xf32, #tpu.memory_space<vmem>>, vector<1x8x128xf32>
    %87 = vector.shape_cast %86 : vector<1x8x128xf32> to vector<8x128xf32>
    %88 = vector.shape_cast %84 : vector<8x128xf32> to vector<1x8x128xf32>
    tpu.vector_store %arg6[%85, %c0_26, %c0_27], %88 {strides = array<i32>} : memref<8x8x128xf32, #tpu.memory_space<vmem>>, vector<1x8x128xf32>,
    %c2_i32 = arith.constant 2 : i32
    %89 = arith.index_cast %c2_i32 : i32 to index
    %c0_28 = arith.constant 0 : index
    %c0_29 = arith.constant 0 : index
    %90 = vector.load %arg3[%89, %c0_28, %c0_29] : memref<8x8x1xf32, #tpu.memory_space<vmem>>, vector<1x8x1xf32>
    %91 = vector.shape_cast %90 : vector<1x8x1xf32> to vector<8x1xf32>
    %92 = vector.broadcast %91 : vector<8x1xf32> to vector<8x128xf32>
    %93 = arith.mulf %84, %92 : vector<8x128xf32>
    %94 = vector.broadcast %91 : vector<8x1xf32> to vector<8x128xf32>
    %95 = arith.mulf %82, %94 : vector<8x128xf32>
    %96 = arith.index_cast %c2_i32 : i32 to index
    %c0_30 = arith.constant 0 : index
    %c0_31 = arith.constant 0 : index
    %97 = vector.load %arg2[%96, %c0_30, %c0_31] : memref<8x8x512xf32, #tpu.memory_space<vmem>>, vector<1x8x512xf32>
    %98 = vector.shape_cast %97 : vector<1x8x512xf32> to vector<8x512xf32>
    %c0_32 = arith.constant 0 : index
    %c0_33 = arith.constant 0 : index
    %99 = vector.load %arg5[%c0_32, %c0_33] : memref<128x512xf32, #tpu.memory_space<vmem>>, vector<128x512xf32>
    %cst_34 = arith.constant dense<0.000000e+00> : vector<8x512xf32>
    %100 = tpu.matmul %93, %99, %cst_34 {dimension_numbers = #tpu.dot_dimension_numbers<[1], [0], [0], [1], [0, 0, 1, 1], [], []>} : vector<8x128xf32>, vector<128x512xf32>, vector<8x512xf32> -> vector<8x512xf32>
    %101 = arith.addf %98, %100 : vector<8x512xf32>
    %102 = vector.extract_strided_slice %101 {offsets = [0, 0], sizes = [8, 128], strides = [1, 1]} : vector<8x512xf32> to vector<8x128xf32>
    %103 = arith.negf %102 : vector<8x128xf32>
    %104 = math.exp %103 : vector<8x128xf32>
    %cst_35 = arith.constant 1.000000e+00 : f32
    %105 = vector.broadcast %cst_35 : f32 to vector<8x128xf32>
    %106 = arith.addf %105, %104 : vector<8x128xf32>
    %107 = arith.divf %105, %106 : vector<8x128xf32>
    %108 = vector.extract_strided_slice %101 {offsets = [0, 128], sizes = [8, 128], strides = [1, 1]} : vector<8x512xf32> to vector<8x128xf32>
    %109 = arith.negf %108 : vector<8x128xf32>
    %110 = math.exp %109 : vector<8x128xf32>
    %cst_36 = arith.constant 1.000000e+00 : f32
    %111 = vector.broadcast %cst_36 : f32 to vector<8x128xf32>
    %112 = arith.addf %111, %110 : vector<8x128xf32>
    %113 = arith.divf %111, %112 : vector<8x128xf32>
    %114 = vector.extract_strided_slice %101 {offsets = [0, 256], sizes = [8, 128], strides = [1, 1]} : vector<8x512xf32> to vector<8x128xf32>
    %115 = math.tanh %114 : vector<8x128xf32>
    %116 = vector.extract_strided_slice %101 {offsets = [0, 384], sizes = [8, 128], strides = [1, 1]} : vector<8x512xf32> to vector<8x128xf32>
    %117 = arith.negf %116 : vector<8x128xf32>
    %118 = math.exp %117 : vector<8x128xf32>
    %cst_37 = arith.constant 1.000000e+00 : f32
    %119 = vector.broadcast %cst_37 : f32 to vector<8x128xf32>
    %120 = arith.addf %119, %118 : vector<8x128xf32>
    %121 = arith.divf %119, %120 : vector<8x128xf32>
    %122 = arith.mulf %113, %95 : vector<8x128xf32>
    %123 = arith.mulf %107, %115 : vector<8x128xf32>
    %124 = arith.addf %122, %123 : vector<8x128xf32>
    %125 = math.tanh %124 : vector<8x128xf32>
    %126 = arith.mulf %121, %125 : vector<8x128xf32>
    %127 = arith.index_cast %c2_i32 : i32 to index
    %c0_38 = arith.constant 0 : index
    %c0_39 = arith.constant 0 : index
    %128 = vector.load %arg6[%127, %c0_38, %c0_39] : memref<8x8x128xf32, #tpu.memory_space<vmem>>, vector<1x8x128xf32>
    %129 = vector.shape_cast %128 : vector<1x8x128xf32> to vector<8x128xf32>
    %130 = vector.shape_cast %126 : vector<8x128xf32> to vector<1x8x128xf32>
    tpu.vector_store %arg6[%127, %c0_38, %c0_39], %130 {strides = array<i32>} : memref<8x8x128xf32, #tpu.memory_space<vmem>>, vector<1x8x128xf32>,
    %c3_i32 = arith.constant 3 : i32
    %131 = arith.index_cast %c3_i32 : i32 to index
    %c0_40 = arith.constant 0 : index
    %c0_41 = arith.constant 0 : index
    %132 = vector.load %arg3[%131, %c0_40, %c0_41] : memref<8x8x1xf32, #tpu.memory_space<vmem>>, vector<1x8x1xf32>
    %133 = vector.shape_cast %132 : vector<1x8x1xf32> to vector<8x1xf32>
    %134 = vector.broadcast %133 : vector<8x1xf32> to vector<8x128xf32>
    %135 = arith.mulf %126, %134 : vector<8x128xf32>
    %136 = vector.broadcast %133 : vector<8x1xf32> to vector<8x128xf32>
    %137 = arith.mulf %124, %136 : vector<8x128xf32>
    %138 = arith.index_cast %c3_i32 : i32 to index
    %c0_42 = arith.constant 0 : index
    %c0_43 = arith.constant 0 : index
    %139 = vector.load %arg2[%138, %c0_42, %c0_43] : memref<8x8x512xf32, #tpu.memory_space<vmem>>, vector<1x8x512xf32>
    %140 = vector.shape_cast %139 : vector<1x8x512xf32> to vector<8x512xf32>
    %c0_44 = arith.constant 0 : index
    %c0_45 = arith.constant 0 : index
    %141 = vector.load %arg5[%c0_44, %c0_45] : memref<128x512xf32, #tpu.memory_space<vmem>>, vector<128x512xf32>
    %cst_46 = arith.constant dense<0.000000e+00> : vector<8x512xf32>
    %142 = tpu.matmul %135, %141, %cst_46 {dimension_numbers = #tpu.dot_dimension_numbers<[1], [0], [0], [1], [0, 0, 1, 1], [], []>} : vector<8x128xf32>, vector<128x512xf32>, vector<8x512xf32> -> vector<8x512xf32>
    %143 = arith.addf %140, %142 : vector<8x512xf32>
    %144 = vector.extract_strided_slice %143 {offsets = [0, 0], sizes = [8, 128], strides = [1, 1]} : vector<8x512xf32> to vector<8x128xf32>
    %145 = arith.negf %144 : vector<8x128xf32>
    %146 = math.exp %145 : vector<8x128xf32>
    %cst_47 = arith.constant 1.000000e+00 : f32
    %147 = vector.broadcast %cst_47 : f32 to vector<8x128xf32>
    %148 = arith.addf %147, %146 : vector<8x128xf32>
    %149 = arith.divf %147, %148 : vector<8x128xf32>
    %150 = vector.extract_strided_slice %143 {offsets = [0, 128], sizes = [8, 128], strides = [1, 1]} : vector<8x512xf32> to vector<8x128xf32>
    %151 = arith.negf %150 : vector<8x128xf32>
    %152 = math.exp %151 : vector<8x128xf32>
    %cst_48 = arith.constant 1.000000e+00 : f32
    %153 = vector.broadcast %cst_48 : f32 to vector<8x128xf32>
    %154 = arith.addf %153, %152 : vector<8x128xf32>
    %155 = arith.divf %153, %154 : vector<8x128xf32>
    %156 = vector.extract_strided_slice %143 {offsets = [0, 256], sizes = [8, 128], strides = [1, 1]} : vector<8x512xf32> to vector<8x128xf32>
    %157 = math.tanh %156 : vector<8x128xf32>
    %158 = vector.extract_strided_slice %143 {offsets = [0, 384], sizes = [8, 128], strides = [1, 1]} : vector<8x512xf32> to vector<8x128xf32>
    %159 = arith.negf %158 : vector<8x128xf32>
    %160 = math.exp %159 : vector<8x128xf32>
    %cst_49 = arith.constant 1.000000e+00 : f32
    %161 = vector.broadcast %cst_49 : f32 to vector<8x128xf32>
    %162 = arith.addf %161, %160 : vector<8x128xf32>
    %163 = arith.divf %161, %162 : vector<8x128xf32>
    %164 = arith.mulf %155, %137 : vector<8x128xf32>
    %165 = arith.mulf %149, %157 : vector<8x128xf32>
    %166 = arith.addf %164, %165 : vector<8x128xf32>
    %167 = math.tanh %166 : vector<8x128xf32>
    %168 = arith.mulf %163, %167 : vector<8x128xf32>
    %169 = arith.index_cast %c3_i32 : i32 to index
    %c0_50 = arith.constant 0 : index
    %c0_51 = arith.constant 0 : index
    %170 = vector.load %arg6[%169, %c0_50, %c0_51] : memref<8x8x128xf32, #tpu.memory_space<vmem>>, vector<1x8x128xf32>
    %171 = vector.shape_cast %170 : vector<1x8x128xf32> to vector<8x128xf32>
    %172 = vector.shape_cast %168 : vector<8x128xf32> to vector<1x8x128xf32>
    tpu.vector_store %arg6[%169, %c0_50, %c0_51], %172 {strides = array<i32>} : memref<8x8x128xf32, #tpu.memory_space<vmem>>, vector<1x8x128xf32>,
    %c4_i32 = arith.constant 4 : i32
    %173 = arith.index_cast %c4_i32 : i32 to index
    %c0_52 = arith.constant 0 : index
    %c0_53 = arith.constant 0 : index
    %174 = vector.load %arg3[%173, %c0_52, %c0_53] : memref<8x8x1xf32, #tpu.memory_space<vmem>>, vector<1x8x1xf32>
    %175 = vector.shape_cast %174 : vector<1x8x1xf32> to vector<8x1xf32>
    %176 = vector.broadcast %175 : vector<8x1xf32> to vector<8x128xf32>
    %177 = arith.mulf %168, %176 : vector<8x128xf32>
    %178 = vector.broadcast %175 : vector<8x1xf32> to vector<8x128xf32>
    %179 = arith.mulf %166, %178 : vector<8x128xf32>
    %180 = arith.index_cast %c4_i32 : i32 to index
    %c0_54 = arith.constant 0 : index
    %c0_55 = arith.constant 0 : index
    %181 = vector.load %arg2[%180, %c0_54, %c0_55] : memref<8x8x512xf32, #tpu.memory_space<vmem>>, vector<1x8x512xf32>
    %182 = vector.shape_cast %181 : vector<1x8x512xf32> to vector<8x512xf32>
    %c0_56 = arith.constant 0 : index
    %c0_57 = arith.constant 0 : index
    %183 = vector.load %arg5[%c0_56, %c0_57] : memref<128x512xf32, #tpu.memory_space<vmem>>, vector<128x512xf32>
    %cst_58 = arith.constant dense<0.000000e+00> : vector<8x512xf32>
    %184 = tpu.matmul %177, %183, %cst_58 {dimension_numbers = #tpu.dot_dimension_numbers<[1], [0], [0], [1], [0, 0, 1, 1], [], []>} : vector<8x128xf32>, vector<128x512xf32>, vector<8x512xf32> -> vector<8x512xf32>
    %185 = arith.addf %182, %184 : vector<8x512xf32>
    %186 = vector.extract_strided_slice %185 {offsets = [0, 0], sizes = [8, 128], strides = [1, 1]} : vector<8x512xf32> to vector<8x128xf32>
    %187 = arith.negf %186 : vector<8x128xf32>
    %188 = math.exp %187 : vector<8x128xf32>
    %cst_59 = arith.constant 1.000000e+00 : f32
    %189 = vector.broadcast %cst_59 : f32 to vector<8x128xf32>
    %190 = arith.addf %189, %188 : vector<8x128xf32>
    %191 = arith.divf %189, %190 : vector<8x128xf32>
    %192 = vector.extract_strided_slice %185 {offsets = [0, 128], sizes = [8, 128], strides = [1, 1]} : vector<8x512xf32> to vector<8x128xf32>
    %193 = arith.negf %192 : vector<8x128xf32>
    %194 = math.exp %193 : vector<8x128xf32>
    %cst_60 = arith.constant 1.000000e+00 : f32
    %195 = vector.broadcast %cst_60 : f32 to vector<8x128xf32>
    %196 = arith.addf %195, %194 : vector<8x128xf32>
    %197 = arith.divf %195, %196 : vector<8x128xf32>
    %198 = vector.extract_strided_slice %185 {offsets = [0, 256], sizes = [8, 128], strides = [1, 1]} : vector<8x512xf32> to vector<8x128xf32>
    %199 = math.tanh %198 : vector<8x128xf32>
    %200 = vector.extract_strided_slice %185 {offsets = [0, 384], sizes = [8, 128], strides = [1, 1]} : vector<8x512xf32> to vector<8x128xf32>
    %201 = arith.negf %200 : vector<8x128xf32>
    %202 = math.exp %201 : vector<8x128xf32>
    %cst_61 = arith.constant 1.000000e+00 : f32
    %203 = vector.broadcast %cst_61 : f32 to vector<8x128xf32>
    %204 = arith.addf %203, %202 : vector<8x128xf32>
    %205 = arith.divf %203, %204 : vector<8x128xf32>
    %206 = arith.mulf %197, %179 : vector<8x128xf32>
    %207 = arith.mulf %191, %199 : vector<8x128xf32>
    %208 = arith.addf %206, %207 : vector<8x128xf32>
    %209 = math.tanh %208 : vector<8x128xf32>
    %210 = arith.mulf %205, %209 : vector<8x128xf32>
    %211 = arith.index_cast %c4_i32 : i32 to index
    %c0_62 = arith.constant 0 : index
    %c0_63 = arith.constant 0 : index
    %212 = vector.load %arg6[%211, %c0_62, %c0_63] : memref<8x8x128xf32, #tpu.memory_space<vmem>>, vector<1x8x128xf32>
    %213 = vector.shape_cast %212 : vector<1x8x128xf32> to vector<8x128xf32>
    %214 = vector.shape_cast %210 : vector<8x128xf32> to vector<1x8x128xf32>
    tpu.vector_store %arg6[%211, %c0_62, %c0_63], %214 {strides = array<i32>} : memref<8x8x128xf32, #tpu.memory_space<vmem>>, vector<1x8x128xf32>,
    %c5_i32 = arith.constant 5 : i32
    %215 = arith.index_cast %c5_i32 : i32 to index
    %c0_64 = arith.constant 0 : index
    %c0_65 = arith.constant 0 : index
    %216 = vector.load %arg3[%215, %c0_64, %c0_65] : memref<8x8x1xf32, #tpu.memory_space<vmem>>, vector<1x8x1xf32>
    %217 = vector.shape_cast %216 : vector<1x8x1xf32> to vector<8x1xf32>
    %218 = vector.broadcast %217 : vector<8x1xf32> to vector<8x128xf32>
    %219 = arith.mulf %210, %218 : vector<8x128xf32>
    %220 = vector.broadcast %217 : vector<8x1xf32> to vector<8x128xf32>
    %221 = arith.mulf %208, %220 : vector<8x128xf32>
    %222 = arith.index_cast %c5_i32 : i32 to index
    %c0_66 = arith.constant 0 : index
    %c0_67 = arith.constant 0 : index
    %223 = vector.load %arg2[%222, %c0_66, %c0_67] : memref<8x8x512xf32, #tpu.memory_space<vmem>>, vector<1x8x512xf32>
    %224 = vector.shape_cast %223 : vector<1x8x512xf32> to vector<8x512xf32>
    %c0_68 = arith.constant 0 : index
    %c0_69 = arith.constant 0 : index
    %225 = vector.load %arg5[%c0_68, %c0_69] : memref<128x512xf32, #tpu.memory_space<vmem>>, vector<128x512xf32>
    %cst_70 = arith.constant dense<0.000000e+00> : vector<8x512xf32>
    %226 = tpu.matmul %219, %225, %cst_70 {dimension_numbers = #tpu.dot_dimension_numbers<[1], [0], [0], [1], [0, 0, 1, 1], [], []>} : vector<8x128xf32>, vector<128x512xf32>, vector<8x512xf32> -> vector<8x512xf32>
    %227 = arith.addf %224, %226 : vector<8x512xf32>
    %228 = vector.extract_strided_slice %227 {offsets = [0, 0], sizes = [8, 128], strides = [1, 1]} : vector<8x512xf32> to vector<8x128xf32>
    %229 = arith.negf %228 : vector<8x128xf32>
    %230 = math.exp %229 : vector<8x128xf32>
    %cst_71 = arith.constant 1.000000e+00 : f32
    %231 = vector.broadcast %cst_71 : f32 to vector<8x128xf32>
    %232 = arith.addf %231, %230 : vector<8x128xf32>
    %233 = arith.divf %231, %232 : vector<8x128xf32>
    %234 = vector.extract_strided_slice %227 {offsets = [0, 128], sizes = [8, 128], strides = [1, 1]} : vector<8x512xf32> to vector<8x128xf32>
    %235 = arith.negf %234 : vector<8x128xf32>
    %236 = math.exp %235 : vector<8x128xf32>
    %cst_72 = arith.constant 1.000000e+00 : f32
    %237 = vector.broadcast %cst_72 : f32 to vector<8x128xf32>
    %238 = arith.addf %237, %236 : vector<8x128xf32>
    %239 = arith.divf %237, %238 : vector<8x128xf32>
    %240 = vector.extract_strided_slice %227 {offsets = [0, 256], sizes = [8, 128], strides = [1, 1]} : vector<8x512xf32> to vector<8x128xf32>
    %241 = math.tanh %240 : vector<8x128xf32>
    %242 = vector.extract_strided_slice %227 {offsets = [0, 384], sizes = [8, 128], strides = [1, 1]} : vector<8x512xf32> to vector<8x128xf32>
    %243 = arith.negf %242 : vector<8x128xf32>
    %244 = math.exp %243 : vector<8x128xf32>
    %cst_73 = arith.constant 1.000000e+00 : f32
    %245 = vector.broadcast %cst_73 : f32 to vector<8x128xf32>
    %246 = arith.addf %245, %244 : vector<8x128xf32>
    %247 = arith.divf %245, %246 : vector<8x128xf32>
    %248 = arith.mulf %239, %221 : vector<8x128xf32>
    %249 = arith.mulf %233, %241 : vector<8x128xf32>
    %250 = arith.addf %248, %249 : vector<8x128xf32>
    %251 = math.tanh %250 : vector<8x128xf32>
    %252 = arith.mulf %247, %251 : vector<8x128xf32>
    %253 = arith.index_cast %c5_i32 : i32 to index
    %c0_74 = arith.constant 0 : index
    %c0_75 = arith.constant 0 : index
    %254 = vector.load %arg6[%253, %c0_74, %c0_75] : memref<8x8x128xf32, #tpu.memory_space<vmem>>, vector<1x8x128xf32>
    %255 = vector.shape_cast %254 : vector<1x8x128xf32> to vector<8x128xf32>
    %256 = vector.shape_cast %252 : vector<8x128xf32> to vector<1x8x128xf32>
    tpu.vector_store %arg6[%253, %c0_74, %c0_75], %256 {strides = array<i32>} : memref<8x8x128xf32, #tpu.memory_space<vmem>>, vector<1x8x128xf32>,
    %c6_i32 = arith.constant 6 : i32
    %257 = arith.index_cast %c6_i32 : i32 to index
    %c0_76 = arith.constant 0 : index
    %c0_77 = arith.constant 0 : index
    %258 = vector.load %arg3[%257, %c0_76, %c0_77] : memref<8x8x1xf32, #tpu.memory_space<vmem>>, vector<1x8x1xf32>
    %259 = vector.shape_cast %258 : vector<1x8x1xf32> to vector<8x1xf32>
    %260 = vector.broadcast %259 : vector<8x1xf32> to vector<8x128xf32>
    %261 = arith.mulf %252, %260 : vector<8x128xf32>
    %262 = vector.broadcast %259 : vector<8x1xf32> to vector<8x128xf32>
    %263 = arith.mulf %250, %262 : vector<8x128xf32>
    %264 = arith.index_cast %c6_i32 : i32 to index
    %c0_78 = arith.constant 0 : index
    %c0_79 = arith.constant 0 : index
    %265 = vector.load %arg2[%264, %c0_78, %c0_79] : memref<8x8x512xf32, #tpu.memory_space<vmem>>, vector<1x8x512xf32>
    %266 = vector.shape_cast %265 : vector<1x8x512xf32> to vector<8x512xf32>
    %c0_80 = arith.constant 0 : index
    %c0_81 = arith.constant 0 : index
    %267 = vector.load %arg5[%c0_80, %c0_81] : memref<128x512xf32, #tpu.memory_space<vmem>>, vector<128x512xf32>
    %cst_82 = arith.constant dense<0.000000e+00> : vector<8x512xf32>
    %268 = tpu.matmul %261, %267, %cst_82 {dimension_numbers = #tpu.dot_dimension_numbers<[1], [0], [0], [1], [0, 0, 1, 1], [], []>} : vector<8x128xf32>, vector<128x512xf32>, vector<8x512xf32> -> vector<8x512xf32>
    %269 = arith.addf %266, %268 : vector<8x512xf32>
    %270 = vector.extract_strided_slice %269 {offsets = [0, 0], sizes = [8, 128], strides = [1, 1]} : vector<8x512xf32> to vector<8x128xf32>
    %271 = arith.negf %270 : vector<8x128xf32>
    %272 = math.exp %271 : vector<8x128xf32>
    %cst_83 = arith.constant 1.000000e+00 : f32
    %273 = vector.broadcast %cst_83 : f32 to vector<8x128xf32>
    %274 = arith.addf %273, %272 : vector<8x128xf32>
    %275 = arith.divf %273, %274 : vector<8x128xf32>
    %276 = vector.extract_strided_slice %269 {offsets = [0, 128], sizes = [8, 128], strides = [1, 1]} : vector<8x512xf32> to vector<8x128xf32>
    %277 = arith.negf %276 : vector<8x128xf32>
    %278 = math.exp %277 : vector<8x128xf32>
    %cst_84 = arith.constant 1.000000e+00 : f32
    %279 = vector.broadcast %cst_84 : f32 to vector<8x128xf32>
    %280 = arith.addf %279, %278 : vector<8x128xf32>
    %281 = arith.divf %279, %280 : vector<8x128xf32>
    %282 = vector.extract_strided_slice %269 {offsets = [0, 256], sizes = [8, 128], strides = [1, 1]} : vector<8x512xf32> to vector<8x128xf32>
    %283 = math.tanh %282 : vector<8x128xf32>
    %284 = vector.extract_strided_slice %269 {offsets = [0, 384], sizes = [8, 128], strides = [1, 1]} : vector<8x512xf32> to vector<8x128xf32>
    %285 = arith.negf %284 : vector<8x128xf32>
    %286 = math.exp %285 : vector<8x128xf32>
    %cst_85 = arith.constant 1.000000e+00 : f32
    %287 = vector.broadcast %cst_85 : f32 to vector<8x128xf32>
    %288 = arith.addf %287, %286 : vector<8x128xf32>
    %289 = arith.divf %287, %288 : vector<8x128xf32>
    %290 = arith.mulf %281, %263 : vector<8x128xf32>
    %291 = arith.mulf %275, %283 : vector<8x128xf32>
    %292 = arith.addf %290, %291 : vector<8x128xf32>
    %293 = math.tanh %292 : vector<8x128xf32>
    %294 = arith.mulf %289, %293 : vector<8x128xf32>
    %295 = arith.index_cast %c6_i32 : i32 to index
    %c0_86 = arith.constant 0 : index
    %c0_87 = arith.constant 0 : index
    %296 = vector.load %arg6[%295, %c0_86, %c0_87] : memref<8x8x128xf32, #tpu.memory_space<vmem>>, vector<1x8x128xf32>
    %297 = vector.shape_cast %296 : vector<1x8x128xf32> to vector<8x128xf32>
    %298 = vector.shape_cast %294 : vector<8x128xf32> to vector<1x8x128xf32>
    tpu.vector_store %arg6[%295, %c0_86, %c0_87], %298 {strides = array<i32>} : memref<8x8x128xf32, #tpu.memory_space<vmem>>, vector<1x8x128xf32>,
    %c7_i32 = arith.constant 7 : i32
    %299 = arith.index_cast %c7_i32 : i32 to index
    %c0_88 = arith.constant 0 : index
    %c0_89 = arith.constant 0 : index
    %300 = vector.load %arg3[%299, %c0_88, %c0_89] : memref<8x8x1xf32, #tpu.memory_space<vmem>>, vector<1x8x1xf32>
    %301 = vector.shape_cast %300 : vector<1x8x1xf32> to vector<8x1xf32>
    %302 = vector.broadcast %301 : vector<8x1xf32> to vector<8x128xf32>
    %303 = arith.mulf %294, %302 : vector<8x128xf32>
    %304 = vector.broadcast %301 : vector<8x1xf32> to vector<8x128xf32>
    %305 = arith.mulf %292, %304 : vector<8x128xf32>
    %306 = arith.index_cast %c7_i32 : i32 to index
    %c0_90 = arith.constant 0 : index
    %c0_91 = arith.constant 0 : index
    %307 = vector.load %arg2[%306, %c0_90, %c0_91] : memref<8x8x512xf32, #tpu.memory_space<vmem>>, vector<1x8x512xf32>
    %308 = vector.shape_cast %307 : vector<1x8x512xf32> to vector<8x512xf32>
    %c0_92 = arith.constant 0 : index
    %c0_93 = arith.constant 0 : index
    %309 = vector.load %arg5[%c0_92, %c0_93] : memref<128x512xf32, #tpu.memory_space<vmem>>, vector<128x512xf32>
    %cst_94 = arith.constant dense<0.000000e+00> : vector<8x512xf32>
    %310 = tpu.matmul %303, %309, %cst_94 {dimension_numbers = #tpu.dot_dimension_numbers<[1], [0], [0], [1], [0, 0, 1, 1], [], []>} : vector<8x128xf32>, vector<128x512xf32>, vector<8x512xf32> -> vector<8x512xf32>
    %311 = arith.addf %308, %310 : vector<8x512xf32>
    %312 = vector.extract_strided_slice %311 {offsets = [0, 0], sizes = [8, 128], strides = [1, 1]} : vector<8x512xf32> to vector<8x128xf32>
    %313 = arith.negf %312 : vector<8x128xf32>
    %314 = math.exp %313 : vector<8x128xf32>
    %cst_95 = arith.constant 1.000000e+00 : f32
    %315 = vector.broadcast %cst_95 : f32 to vector<8x128xf32>
    %316 = arith.addf %315, %314 : vector<8x128xf32>
    %317 = arith.divf %315, %316 : vector<8x128xf32>
    %318 = vector.extract_strided_slice %311 {offsets = [0, 128], sizes = [8, 128], strides = [1, 1]} : vector<8x512xf32> to vector<8x128xf32>
    %319 = arith.negf %318 : vector<8x128xf32>
    %320 = math.exp %319 : vector<8x128xf32>
    %cst_96 = arith.constant 1.000000e+00 : f32
    %321 = vector.broadcast %cst_96 : f32 to vector<8x128xf32>
    %322 = arith.addf %321, %320 : vector<8x128xf32>
    %323 = arith.divf %321, %322 : vector<8x128xf32>
    %324 = vector.extract_strided_slice %311 {offsets = [0, 256], sizes = [8, 128], strides = [1, 1]} : vector<8x512xf32> to vector<8x128xf32>
    %325 = math.tanh %324 : vector<8x128xf32>
    %326 = vector.extract_strided_slice %311 {offsets = [0, 384], sizes = [8, 128], strides = [1, 1]} : vector<8x512xf32> to vector<8x128xf32>
    %327 = arith.negf %326 : vector<8x128xf32>
    %328 = math.exp %327 : vector<8x128xf32>
    %cst_97 = arith.constant 1.000000e+00 : f32
    %329 = vector.broadcast %cst_97 : f32 to vector<8x128xf32>
    %330 = arith.addf %329, %328 : vector<8x128xf32>
    %331 = arith.divf %329, %330 : vector<8x128xf32>
    %332 = arith.mulf %323, %305 : vector<8x128xf32>
    %333 = arith.mulf %317, %325 : vector<8x128xf32>
    %334 = arith.addf %332, %333 : vector<8x128xf32>
    %335 = math.tanh %334 : vector<8x128xf32>
    %336 = arith.mulf %331, %335 : vector<8x128xf32>
    %337 = arith.index_cast %c7_i32 : i32 to index
    %c0_98 = arith.constant 0 : index
    %c0_99 = arith.constant 0 : index
    %338 = vector.load %arg6[%337, %c0_98, %c0_99] : memref<8x8x128xf32, #tpu.memory_space<vmem>>, vector<1x8x128xf32>
    %339 = vector.shape_cast %338 : vector<1x8x128xf32> to vector<8x128xf32>
    %340 = vector.shape_cast %336 : vector<8x128xf32> to vector<1x8x128xf32>
    tpu.vector_store %arg6[%337, %c0_98, %c0_99], %340 {strides = array<i32>} : memref<8x8x128xf32, #tpu.memory_space<vmem>>, vector<1x8x128xf32>,
    %c8_i32 = arith.constant 8 : i32
    %c0_100 = arith.constant 0 : index
    %c0_101 = arith.constant 0 : index
    %341 = vector.load %arg8[%c0_100, %c0_101] : memref<8x128xf32, #tpu.memory_space<vmem>>, vector<8x128xf32>
    tpu.vector_store %arg8[%c0_100, %c0_101], %336 {strides = array<i32>} : memref<8x128xf32, #tpu.memory_space<vmem>>, vector<8x128xf32>,
    %c0_102 = arith.constant 0 : index
    %c0_103 = arith.constant 0 : index
    %342 = vector.load %arg9[%c0_102, %c0_103] : memref<8x128xf32, #tpu.memory_space<vmem>>, vector<8x128xf32>
    tpu.vector_store %arg9[%c0_102, %c0_103], %334 {strides = array<i32>} : memref<8x128xf32, #tpu.memory_space<vmem>>, vector<8x128xf32>,
    %c0_104 = arith.constant 0 : index
    %c0_105 = arith.constant 0 : index
    %c0_106 = arith.constant 0 : index
    %343 = vector.load %arg7[%c0_104, %c0_105, %c0_106] : memref<1x8x256xf32, #tpu.memory_space<vmem>>, vector<1x8x128xf32>
    %344 = vector.shape_cast %343 : vector<1x8x128xf32> to vector<8x128xf32>
    %345 = vector.shape_cast %336 : vector<8x128xf32> to vector<1x8x128xf32>
    tpu.vector_store %arg7[%c0_104, %c0_105, %c0_106], %345 {strides = array<i32>} : memref<1x8x256xf32, #tpu.memory_space<vmem>>, vector<1x8x128xf32>,
    %c0_107 = arith.constant 0 : index
    %c0_108 = arith.constant 0 : index
    %c128 = arith.constant 128 : index
    %346 = vector.load %arg7[%c0_107, %c0_108, %c128] : memref<1x8x256xf32, #tpu.memory_space<vmem>>, vector<1x8x128xf32>
    %347 = vector.shape_cast %346 : vector<1x8x128xf32> to vector<8x128xf32>
    %348 = vector.shape_cast %334 : vector<8x128xf32> to vector<1x8x128xf32>
    tpu.vector_store %arg7[%c0_107, %c0_108, %c128], %348 {strides = array<i32>} : memref<1x8x256xf32, #tpu.memory_space<vmem>>, vector<1x8x128xf32>,
    return
  }
  func.func @transform_0(%arg0: i32, %arg1: i32) -> (i32, i32, i32) {
    %c0_i32 = arith.constant 0 : i32
    %c0_i32_0 = arith.constant 0 : i32
    return %arg1, %arg0, %c0_i32 : i32, i32, i32
  }
  func.func @transform_1(%arg0: i32, %arg1: i32) -> (i32, i32, i32) {
    %c0_i32 = arith.constant 0 : i32
    %c0_i32_0 = arith.constant 0 : i32
    return %arg1, %arg0, %c0_i32 : i32, i32, i32
  }
  func.func @transform_2(%arg0: i32, %arg1: i32) -> (i32, i32, i32) {
    %c0_i32 = arith.constant 0 : i32
    %c0_i32_0 = arith.constant 0 : i32
    %c0_i32_1 = arith.constant 0 : i32
    return %c0_i32, %arg0, %c0_i32_0 : i32, i32, i32
  }
  func.func @transform_3(%arg0: i32, %arg1: i32) -> (i32, i32) {
    %c0_i32 = arith.constant 0 : i32
    %c0_i32_0 = arith.constant 0 : i32
    %c0_i32_1 = arith.constant 0 : i32
    return %c0_i32, %c0_i32_0 : i32, i32
  }
  func.func @transform_4(%arg0: i32, %arg1: i32) -> (i32, i32, i32) {
    %c0_i32 = arith.constant 0 : i32
    %c0_i32_0 = arith.constant 0 : i32
    return %arg1, %arg0, %c0_i32 : i32, i32, i32
  }
  func.func @transform_5(%arg0: i32, %arg1: i32) -> (i32, i32, i32) {
    %c0_i32 = arith.constant 0 : i32
    %c0_i32_0 = arith.constant 0 : i32
    %c0_i32_1 = arith.constant 0 : i32
    return %c0_i32, %arg0, %c0_i32_0 : i32, i32, i32
  }
}

</mosaic_0001>

<llo_original>
// kernel: tpu_custom_call.1
$region0: #{tpu_custom_call.1}
  #allocation0 [shape = 'u32[]', space=smem, size = 0x4, offset = 0x4, fixed_abs, tag = 'smem constant byte address 0x4 - core index']
  #allocation1 [shape = 'u32[144,128]{1,0:T(1,128)}', space=vmem, size = 0x12000, scoped, tag = 'internal scratch']
  #allocation2 [shape = 'f32[8,128]{1,0:T(8,128)}', space=vmem, size = 0x1000, scoped, tag = 'scratch operand']
  #allocation3 [shape = 'f32[8,128]{1,0:T(8,128)}', space=vmem, size = 0x1000, scoped, tag = 'scratch operand']
  %s0 = inlined_call_operand.hbm [shape: f32[16,16,512], index: 0, kind: input, shape index: {}]
  %s1 = inlined_call_operand.vmem [shape: f32[16,16,1], index: 1, kind: input, shape index: {}]
  %s2 = inlined_call_operand.vmem [shape: f32[1,16,256], index: 2, kind: input, shape index: {}]
  %s3 = inlined_call_operand.hbm [shape: f32[128,512], index: 3, kind: input, shape index: {}]
  %s4 = inlined_call_operand.hbm [shape: f32[16,16,128], index: 4, kind: output, shape index: {0}]
  %s5 = inlined_call_operand.hbm [shape: f32[1,16,256], index: 5, kind: output, shape index: {1}]
  %6 = xla_tuple %s4, %s5
  %s7 = sld [smem:[#allocation0]]
  $region107: #{tpu_custom_call.1} parent=0
    _
  %s9 = ssub.s32 1, %s7
  %s10 = scalar_select 0, %s9, %s7
  $region1: #{tpu_custom_call.1} parent=0
    #allocation4 [shape = 'u8[262144]{0}', space=vmem, size = 0x40000, scoped, tag = 'input window, operand 0']
    #allocation5 [shape = 's32[2]{0}', space=sflag, size = 0x8, scoped, tag = 'scoped memory for tpu_custom_call.1']
    #allocation6 [shape = 's32[2]{0}', space=sflag, size = 0x8, scoped, tag = 'scoped memory for tpu_custom_call.1']
    #allocation7 [shape = 'u8[65536]{0}', space=vmem, size = 0x10000, scoped, tag = 'input window, operand 1']
    #allocation8 [shape = 'u8[262144]{0}', space=vmem, size = 0x40000, scoped, tag = 'input window, operand 3, single buffered']
    #allocation9 [shape = 's32[1]{0}', space=sflag, size = 0x4, scoped, tag = 'scoped memory for tpu_custom_call.1']
    #allocation10 [shape = 'u8[65536]{0}', space=vmem, size = 0x10000, scoped, tag = 'output window, operand 0']
    #allocation11 [shape = 'u8[16384]{0}', space=vmem, size = 0x4000, scoped, tag = 'output window, operand 1']
    #allocation12 [shape = 's32[2]{0}', space=sflag, size = 0x8, scoped, tag = 'scoped memory for tpu_custom_call.1']
    %11 = vsyncpa [#allocation5], 0
    %s12 = scalar_lea.sflag [#allocation5], 1
    %13 = vsyncpa %s12, 0
    %14 = vsyncpa [#allocation9], 0
    %15 = vsyncpa [#allocation6], 0
    %s16 = scalar_lea.sflag [#allocation6], 1
    %17 = vsyncpa %s16, 0
    %18 = vsyncpa [#allocation12], 0
    %s19 = scalar_lea.sflag [#allocation12], 1
    %20 = vsyncpa %s19, 0
    loop: start=0, step=1, limit=6
    $region2: #{tpu_custom_call.1} parent=1 // loop_pre_header
      _
    $region3: #{tpu_custom_call.1} parent=1 // loop_header
      %s22 = sphi 0, %s26
      %p23 = scmp.ge.s32.totalorder %s22, 6
      %s29 = sphi 0, %s41
      %s30 = sphi 0, %s37
      %s31 = sphi 0, %s29
      %s32 = sphi 0, %s30
      %s33 = sphi 0, %s31
      %s34 = sphi 0, %s32
      %s46 = sphi 0, %s48
      %s49 = sphi 0, %s46
      %s50 = sphi 0, %s49
      %s66 = sphi 0, %s50
      %s74 = sphi 0, %s76
      %s77 = sphi 0, %s74
      %s78 = sphi 0, %s77
      %s94 = sphi 0, %s78
      %s100 = sphi 0, %s102
      %s103 = sphi 0, %s100
      %s104 = sphi 0, %s103
      %s120 = sphi 0, %s104
      %s124 = sphi 0, %s124
      %s126 = sphi 0, %s124
      %s127 = sphi 0, %s126
      %s141 = sphi 0, %s127
      %s149 = sphi 0, %s151
      %s152 = sphi 0, %s149
      %s153 = sphi 0, %s152
      %s169 = sphi 0, %s153
      %s175 = sphi 0, %s177
      %s178 = sphi 0, %s175
      %s179 = sphi 0, %s178
      %s195 = sphi 0, %s179
    $region4: #{tpu_custom_call.1} parent=1 // loop_header_branch
      %25 = sbr.rel (%p23) target = $region8
    $region5: #{tpu_custom_call.1} parent=1 // loop_body
      %s27 = ssub.s32 %s22, 1
      %s28 = ssub.s32 %s22, 2
      %s35 = sadd.s32 1, %s30
      %p36 = scmp.ge.s32.totalorder %s35, 2
      %s37 = scalar_select %p36, 0, %s35
      %s38 = sadd.s32 1, %s29
      %s39 = scalar_select %p36, %s38, %s29
      %p40 = scmp.ge.s32.totalorder %s39, 2
      %s41 = scalar_select %p40, 0, %s39
      %s42 = ssub.s32 %s30, %s37
      %s43 = ssub.s32 %s29, %s41
      %s44 = sor.u32 %s42, %s43
      %p45 = scmp.eq.s32.totalorder %s44, 0
      %s47 = sadd.s32 %s46, 1
      %s48 = scalar_select %p45, %s46, %s47
      %p51 = pneg %p45
      %p52 = scmp.eq.s32.totalorder %s22, 3
      %p53 = por %p51, %p52
      %p54 = scmp.ne.s32.totalorder %s46, %s49
      %p55 = scmp.eq.s32.totalorder %s22, 0
      %p56 = por %p54, %p55
      %p57 = scmp.ne.s32.totalorder %s46, %s49
      %p58 = scmp.eq.s32.totalorder %s27, 3
      %p59 = por %p57, %p58
      %p60 = scmp.ne.s32.totalorder %s49, %s50
      %p61 = scmp.eq.s32.totalorder %s27, 0
      %p62 = por %p60, %p61
      %p63 = scmp.ne.s32.totalorder %s49, %s50
      %p64 = scmp.eq.s32.totalorder %s28, 3
      %p65 = por %p63, %p64
      %p67 = scmp.ne.s32.totalorder %s50, %s66
      %p68 = scmp.eq.s32.totalorder %s28, 0
      %p69 = por %p67, %p68
      %s70 = ssub.s32 %s30, %s37
      %s71 = ssub.s32 %s29, %s41
      %s72 = sor.u32 %s70, %s71
      %p73 = scmp.eq.s32.totalorder %s72, 0
      %s75 = sadd.s32 %s74, 1
      %s76 = scalar_select %p73, %s74, %s75
      %p79 = pneg %p73
      %p80 = scmp.eq.s32.totalorder %s22, 3
      %p81 = por %p79, %p80
      %p82 = scmp.ne.s32.totalorder %s74, %s77
      %p83 = scmp.eq.s32.totalorder %s22, 0
      %p84 = por %p82, %p83
      %p85 = scmp.ne.s32.totalorder %s74, %s77
      %p86 = scmp.eq.s32.totalorder %s27, 3
      %p87 = por %p85, %p86
      %p88 = scmp.ne.s32.totalorder %s77, %s78
      %p89 = scmp.eq.s32.totalorder %s27, 0
      %p90 = por %p88, %p89
      %p91 = scmp.ne.s32.totalorder %s77, %s78
      %p92 = scmp.eq.s32.totalorder %s28, 3
      %p93 = por %p91, %p92
      %p95 = scmp.ne.s32.totalorder %s78, %s94
      %p96 = scmp.eq.s32.totalorder %s28, 0
      %p97 = por %p95, %p96
      %s98 = ssub.s32 %s29, %s41
      %p99 = scmp.eq.s32.totalorder %s98, 0
      %s101 = sadd.s32 %s100, 1
      %s102 = scalar_select %p99, %s100, %s101
      %p105 = pneg %p99
      %p106 = scmp.eq.s32.totalorder %s22, 3
      %p107 = por %p105, %p106
      %p108 = scmp.ne.s32.totalorder %s100, %s103
      %p109 = scmp.eq.s32.totalorder %s22, 0
      %p110 = por %p108, %p109
      %p111 = scmp.ne.s32.totalorder %s100, %s103
      %p112 = scmp.eq.s32.totalorder %s27, 3
      %p113 = por %p111, %p112
      %p114 = scmp.ne.s32.totalorder %s103, %s104
      %p115 = scmp.eq.s32.totalorder %s27, 0
      %p116 = por %p114, %p115
      %p117 = scmp.ne.s32.totalorder %s103, %s104
      %p118 = scmp.eq.s32.totalorder %s28, 3
      %p119 = por %p117, %p118
      %p121 = scmp.ne.s32.totalorder %s104, %s120
      %p122 = scmp.eq.s32.totalorder %s28, 0
      %p123 = por %p121, %p122
      %s125 = sadd.s32 %s124, 1
      %p128 = scmp.eq.s32.totalorder %s22, 3
      %p129 = scmp.ne.s32.totalorder %s124, %s126
      %p130 = scmp.eq.s32.totalorder %s22, 0
      %p131 = por %p129, %p130
      %p132 = scmp.ne.s32.totalorder %s124, %s126
      %p133 = scmp.eq.s32.totalorder %s27, 3
      %p134 = por %p132, %p133
      %p135 = scmp.ne.s32.totalorder %s126, %s127
      %p136 = scmp.eq.s32.totalorder %s27, 0
      %p137 = por %p135, %p136
      %p138 = scmp.ne.s32.totalorder %s126, %s127
      %p139 = scmp.eq.s32.totalorder %s28, 3
      %p140 = por %p138, %p139
      %p142 = scmp.ne.s32.totalorder %s127, %s141
      %p143 = scmp.eq.s32.totalorder %s28, 0
      %p144 = por %p142, %p143
      %s145 = ssub.s32 %s30, %s37
      %s146 = ssub.s32 %s29, %s41
      %s147 = sor.u32 %s145, %s146
      %p148 = scmp.eq.s32.totalorder %s147, 0
      %s150 = sadd.s32 %s149, 1
      %s151 = scalar_select %p148, %s149, %s150
      %p154 = pneg %p148
      %p155 = scmp.eq.s32.totalorder %s22, 3
      %p156 = por %p154, %p155
      %p157 = scmp.ne.s32.totalorder %s149, %s152
      %p158 = scmp.eq.s32.totalorder %s22, 0
      %p159 = por %p157, %p158
      %p160 = scmp.ne.s32.totalorder %s149, %s152
      %p161 = scmp.eq.s32.totalorder %s27, 3
      %p162 = por %p160, %p161
      %p163 = scmp.ne.s32.totalorder %s152, %s153
      %p164 = scmp.eq.s32.totalorder %s27, 0
      %p165 = por %p163, %p164
      %p166 = scmp.ne.s32.totalorder %s152, %s153
      %p167 = scmp.eq.s32.totalorder %s28, 3
      %p168 = por %p166, %p167
      %p170 = scmp.ne.s32.totalorder %s153, %s169
      %p171 = scmp.eq.s32.totalorder %s28, 0
      %p172 = por %p170, %p171
      %s173 = ssub.s32 %s29, %s41
      %p174 = scmp.eq.s32.totalorder %s173, 0
      %s176 = sadd.s32 %s175, 1
      %s177 = scalar_select %p174, %s175, %s176
      %p180 = pneg %p174
      %p181 = scmp.eq.s32.totalorder %s22, 3
      %p182 = por %p180, %p181
      %p183 = scmp.ne.s32.totalorder %s175, %s178
      %p184 = scmp.eq.s32.totalorder %s22, 0
      %p185 = por %p183, %p184
      %p186 = scmp.ne.s32.totalorder %s175, %s178
      %p187 = scmp.eq.s32.totalorder %s27, 3
      %p188 = por %p186, %p187
      %p189 = scmp.ne.s32.totalorder %s178, %s179
      %p190 = scmp.eq.s32.totalorder %s27, 0
      %p191 = por %p189, %p190
      %p192 = scmp.ne.s32.totalorder %s178, %s179
      %p193 = scmp.eq.s32.totalorder %s28, 3
      %p194 = por %p192, %p193
      %p196 = scmp.ne.s32.totalorder %s179, %s195
      %p197 = scmp.eq.s32.totalorder %s28, 0
      %p198 = por %p196, %p197
      %p199 = scmp.le.s32.totalorder 1, %s22
      %p200 = scmp.lt.s32.totalorder %s22, 5
      %p201 = pnand %p199, %p200
      %p202 = pneg %p201
      // Predicated region
      $region9: #{tpu_custom_call.1} parent=5 // pred_check
        _
      $region10: #{tpu_custom_call.1} parent=5 // pred_check_branch
        %204 = sbr.rel (%p201) target = $region12
      $region11: #{tpu_custom_call.1} parent=5 // pred_region
        %s205 = ssub.s32 %s22, 1
        // Predicated region
        $region13: #{tpu_custom_call.1} parent=11 // pred_check
          %p206 = pneg %p137
        $region14: #{tpu_custom_call.1} parent=11 // pred_check_branch
          %208 = sbr.rel (%p206) target = $region16
        $region15: #{tpu_custom_call.1} parent=11 // pred_region
          %s210 = ssub.s32 8192, 8192
          %211 = vsyncadd [#allocation9], %s210
          %s212 = sshll.u32 [#allocation8], 4
          %s213 = int_to_ptr.vmem [resolvable:$true] %s212
          %218 = dma.hbm_to_vmem [thread:$0]  %s3, 8192, %s213, [#allocation9], 512, 512, 32
        $region16: #{tpu_custom_call.1} parent=11 // pred_fallthru
          _
      $region12: #{tpu_custom_call.1} parent=5 // pred_fallthru
        _
      %p219 = scmp.lt.s32.totalorder %s22, 4
      // Predicated region
      $region17: #{tpu_custom_call.1} parent=5 // pred_check
        %p220 = pneg %p219
      $region18: #{tpu_custom_call.1} parent=5 // pred_check_branch
        %222 = sbr.rel (%p220) target = $region20
      $region19: #{tpu_custom_call.1} parent=5 // pred_region
        // Predicated region
        $region21: #{tpu_custom_call.1} parent=19 // pred_check
          %p223 = pneg %p56
        $region22: #{tpu_custom_call.1} parent=19 // pred_check_branch
          %225 = sbr.rel (%p223) target = $region24
        $region23: #{tpu_custom_call.1} parent=19 // pred_region
          %s226 = sand.u32 %s46, 1
          %s227 = scalar_lea.sflag [#allocation5], %s226
          %s228 = sand.u32 %s46, 1
          %s229 = smul.addr %s228, 256
          %s230 = scalar_lea.vmem [#allocation4], %s229
          %s231 = smul.u32 8, %s30
          %s233 = ssub.s32 4096, 4096
          %234 = vsyncadd %s227, %s233
          %s235 = smul.addr %s29, 4
          %s236 = smul.addr %s231, 8
          %s237 = sadd.s32 %s235, %s236
          %s238 = smul.addr %s237, 128
          %s239 = scalar_lea.hbm %s0, %s238
          %s240 = sshll.u32 %s230, 4
          %s241 = int_to_ptr.vmem [resolvable:$true] %s240
          %246 = dma.hbm_to_vmem [thread:$0]  %s239, 4096, %s241, %s227, 1024, 512, 32
        $region24: #{tpu_custom_call.1} parent=19 // pred_fallthru
          _
        // Predicated region
        $region25: #{tpu_custom_call.1} parent=19 // pred_check
          %p247 = pneg %p84
        $region26: #{tpu_custom_call.1} parent=19 // pred_check_branch
          %249 = sbr.rel (%p247) target = $region28
        $region27: #{tpu_custom_call.1} parent=19 // pred_region
          %s250 = sand.u32 %s74, 1
          %s251 = sand.u32 %s74, 1
          %s252 = smul.addr %s251, 64
          %s253 = scalar_lea.vmem [#allocation7], %s252
          %s254 = smul.u32 8, %s30
          %s255 = smul.addr %s254, 2
          %s256 = sadd.s32 %s29, %s255
          %s257 = smul.addr %s256, 8
          %s258 = scalar_lea.vmem %s1, %s257
          // Predicated region
          $region29: #{tpu_custom_call.1} parent=27 // pred_check
            _
          $region30: #{tpu_custom_call.1} parent=27 // pred_check_branch
            %260 = sbr.rel (0) target = $region32
          $region31: #{tpu_custom_call.1} parent=27 // pred_region
            // Predicated region
            $region33: #{tpu_custom_call.1} parent=31 // pred_check
              _
            $region34: #{tpu_custom_call.1} parent=31 // pred_check_branch
              %262 = sbr.rel (0) target = $region36
            $region35: #{tpu_custom_call.1} parent=31 // pred_region
              // Predicated region
              $region48: #{tpu_custom_call.1} parent=35 // pred_check
                _
              $region49: #{tpu_custom_call.1} parent=35 // pred_check_branch
                %291 = sbr.rel (0) target = $region51
              $region50: #{tpu_custom_call.1} parent=35 // pred_region
                loop: start=0, step=1, limit=1
                $region52: #{tpu_custom_call.1} parent=50 // loop_pre_header
                  _
                $region53: #{tpu_custom_call.1} parent=50 // loop_header
                  %s293 = sphi 0, %s297
                  %p294 = scmp.ge.s32.totalorder %s293, 1
                  %s298 = sphi %s258, %s258
                  %s299 = sphi %s253, %s253
                $region54: #{tpu_custom_call.1} parent=50 // loop_header_branch
                  %296 = sbr.rel (%p294) target = $region58
                $region55: #{tpu_custom_call.1} parent=50 // loop_body
                  %v300 = vld [vmem:[%s298] sm:$0xff]
                  %301 = vst [vmem:[%s299] sm:$0xff] %v300
                  %v302 = vld [vmem:[%s298 + $0x10] sm:$0xff]
                  %303 = vst [vmem:[%s299 + $0x8] sm:$0xff] %v302
                  %v304 = vld [vmem:[%s298 + $0x20] sm:$0xff]
                  %305 = vst [vmem:[%s299 + $0x10] sm:$0xff] %v304
                  %v306 = vld [vmem:[%s298 + $0x30] sm:$0xff]
                  %307 = vst [vmem:[%s299 + $0x18] sm:$0xff] %v306
                  %v308 = vld [vmem:[%s298 + $0x40] sm:$0xff]
                  %309 = vst [vmem:[%s299 + $0x20] sm:$0xff] %v308
                  %v310 = vld [vmem:[%s298 + $0x50] sm:$0xff]
                  %311 = vst [vmem:[%s299 + $0x28] sm:$0xff] %v310
                  %v312 = vld [vmem:[%s298 + $0x60] sm:$0xff]
                  %313 = vst [vmem:[%s299 + $0x30] sm:$0xff] %v312
                  %v314 = vld [vmem:[%s298 + $0x70] sm:$0xff]
                  %315 = vst [vmem:[%s299 + $0x38] sm:$0xff] %v314
                $region56: #{tpu_custom_call.1} parent=50 // loop_footer
                  %s297 = sadd.s32 1, %s293
                $region57: #{tpu_custom_call.1} parent=50 // loop_footer_branch
                  %292 = sbr.rel target = $region53
                $region58: #{tpu_custom_call.1} parent=50 // loop_exit
                  _
              $region51: #{tpu_custom_call.1} parent=35 // pred_fallthru
                _
              // Predicated region
              $region59: #{tpu_custom_call.1} parent=35 // pred_check
                _
              $region60: #{tpu_custom_call.1} parent=35 // pred_check_branch
                %317 = sbr.rel target = $region62
              $region61: #{tpu_custom_call.1} parent=35 // pred_region
                _
              $region62: #{tpu_custom_call.1} parent=35 // pred_fallthru
                _
            $region36: #{tpu_custom_call.1} parent=31 // pred_fallthru
              _
            // Predicated region
            $region37: #{tpu_custom_call.1} parent=31 // pred_check
              _
            $region38: #{tpu_custom_call.1} parent=31 // pred_check_branch
              %264 = sbr.rel target = $region40
            $region39: #{tpu_custom_call.1} parent=31 // pred_region
              loop: start=0, step=1, limit=1
              $region41: #{tpu_custom_call.1} parent=39 // loop_pre_header
                _
              $region42: #{tpu_custom_call.1} parent=39 // loop_header
                %s267 = sphi 0, %s271
                %p268 = scmp.ge.s32.totalorder %s267, 1
                %s272 = sphi %s258, %s258
                %s273 = sphi %s253, %s253
              $region43: #{tpu_custom_call.1} parent=39 // loop_header_branch
                %270 = sbr.rel (%p268) target = $region47
              $region44: #{tpu_custom_call.1} parent=39 // loop_body
                %v274 = vld [vmem:[%s272] sm:$0xff]
                %275 = vst [vmem:[%s273] sm:$0xff] %v274
                %v276 = vld [vmem:[%s272 + $0x10] sm:$0xff]
                %277 = vst [vmem:[%s273 + $0x8] sm:$0xff] %v276
                %v278 = vld [vmem:[%s272 + $0x20] sm:$0xff]
                %279 = vst [vmem:[%s273 + $0x10] sm:$0xff] %v278
                %v280 = vld [vmem:[%s272 + $0x30] sm:$0xff]
                %281 = vst [vmem:[%s273 + $0x18] sm:$0xff] %v280
                %v282 = vld [vmem:[%s272 + $0x40] sm:$0xff]
                %283 = vst [vmem:[%s273 + $0x20] sm:$0xff] %v282
                %v284 = vld [vmem:[%s272 + $0x50] sm:$0xff]
                %285 = vst [vmem:[%s273 + $0x28] sm:$0xff] %v284
                %v286 = vld [vmem:[%s272 + $0x60] sm:$0xff]
                %287 = vst [vmem:[%s273 + $0x30] sm:$0xff] %v286
                %v288 = vld [vmem:[%s272 + $0x70] sm:$0xff]
                %289 = vst [vmem:[%s273 + $0x38] sm:$0xff] %v288
              $region45: #{tpu_custom_call.1} parent=39 // loop_footer
                %s271 = sadd.s32 1, %s267
              $region46: #{tpu_custom_call.1} parent=39 // loop_footer_branch
                %266 = sbr.rel target = $region42
              $region47: #{tpu_custom_call.1} parent=39 // loop_exit
                _
            $region40: #{tpu_custom_call.1} parent=31 // pred_fallthru
              _
          $region32: #{tpu_custom_call.1} parent=27 // pred_fallthru
            _
          %318 = vnop
        $region28: #{tpu_custom_call.1} parent=19 // pred_fallthru
          _
        // Predicated region
        $region63: #{tpu_custom_call.1} parent=19 // pred_check
          %p319 = pneg %p110
        $region64: #{tpu_custom_call.1} parent=19 // pred_check_branch
          %321 = sbr.rel (%p319) target = $region66
        $region65: #{tpu_custom_call.1} parent=19 // pred_region
          %p322 = scmp.lt.s32.totalorder %s29, 1
          %s323 = scalar_select %p322, %s29, 1
          %s324 = smul.addr %s323, 2
          %s325 = smul.addr %s324, 8
          %s326 = scalar_lea.vmem %s2, %s325
        $region66: #{tpu_custom_call.1} parent=19 // pred_fallthru
          _
      $region20: #{tpu_custom_call.1} parent=5 // pred_fallthru
        _
      %p327 = scmp.le.s32.totalorder 1, %s22
      %p328 = scmp.lt.s32.totalorder %s22, 5
      %p329 = pnand %p327, %p328
      %p330 = pneg %p329
      // Predicated region
      $region67: #{tpu_custom_call.1} parent=5 // pred_check
        _
      $region68: #{tpu_custom_call.1} parent=5 // pred_check_branch
        %332 = sbr.rel (%p329) target = $region70
      $region69: #{tpu_custom_call.1} parent=5 // pred_region
        %s333 = ssub.s32 %s22, 1
        %s334 = sand.u32 %s49, 1
        %s335 = scalar_lea.sflag [#allocation5], %s334
        %s336 = sand.u32 %s49, 1
        %s337 = smul.addr %s336, 256
        %s338 = scalar_lea.vmem [#allocation4], %s337
        // Predicated region
        $region71: #{tpu_custom_call.1} parent=69 // pred_check
          %p339 = pneg %p62
        $region72: #{tpu_custom_call.1} parent=69 // pred_check_branch
          %341 = sbr.rel (%p339) target = $region74
        $region73: #{tpu_custom_call.1} parent=69 // pred_region
          %342 = dma.done %s335, 4096
        $region74: #{tpu_custom_call.1} parent=69 // pred_fallthru
          _
        %s343 = sand.u32 %s77, 1
        %s344 = sand.u32 %s77, 1
        %s345 = smul.addr %s344, 64
        %s346 = scalar_lea.vmem [#allocation7], %s345
        // Predicated region
        $region75: #{tpu_custom_call.1} parent=69 // pred_check
          %p347 = pneg %p90
        $region76: #{tpu_custom_call.1} parent=69 // pred_check_branch
          %349 = sbr.rel (%p347) target = $region78
        $region77: #{tpu_custom_call.1} parent=69 // pred_region
          _
        $region78: #{tpu_custom_call.1} parent=69 // pred_fallthru
          _
        // Predicated region
        $region79: #{tpu_custom_call.1} parent=69 // pred_check
          %p350 = pneg %p137
        $region80: #{tpu_custom_call.1} parent=69 // pred_check_branch
          %352 = sbr.rel (%p350) target = $region82
        $region81: #{tpu_custom_call.1} parent=69 // pred_region
          %353 = dma.done [#allocation9], 8192
        $region82: #{tpu_custom_call.1} parent=69 // pred_fallthru
          _
        %s354 = sand.u32 %s49, 1
        %s355 = scalar_lea.sflag [#allocation5], %s354
        %s356 = sand.u32 %s49, 1
        %s357 = smul.addr %s356, 256
        %s358 = scalar_lea.vmem [#allocation4], %s357
        %p359 = pneg %p62
        %p360 = pneg %p59
        %s361 = sand.u32 %s77, 1
        %s362 = sand.u32 %s77, 1
        %s363 = smul.addr %s362, 64
        %s364 = scalar_lea.vmem [#allocation7], %s363
        %p365 = pneg %p90
        %p366 = pneg %p87
        %p367 = scmp.lt.s32.totalorder %s31, 1
        %s368 = scalar_select %p367, %s31, 1
        %s369 = smul.addr %s368, 2
        %s370 = smul.addr %s369, 8
        %s371 = scalar_lea.vmem %s2, %s370
        %p372 = pneg %p116
        %p373 = pneg %p113
        %p374 = pneg %p137
        %p375 = pneg %p134
        %p376 = pneg %p165
        %p377 = pneg %p162
        %s378 = sand.u32 %s152, 1
        %s379 = scalar_lea.sflag [#allocation6], %s378
        %s380 = sand.u32 %s152, 1
        %s381 = smul.addr %s380, 64
        %s382 = scalar_lea.vmem [#allocation10], %s381
        %p383 = pneg %p191
        %p384 = pneg %p188
        %s385 = sand.u32 %s178, 1
        %s386 = scalar_lea.sflag [#allocation12], %s385
        %s387 = sand.u32 %s178, 1
        %s388 = smul.addr %s387, 16
        %s389 = scalar_lea.vmem [#allocation11], %s388
        %s390 = smul.u32 8, %s32
        %s391 = smul.u32 8, %s32
        %p392 = scmp.lt.s32.totalorder %s31, 1
        %s393 = scalar_select %p392, %s31, 1
        %s394 = smul.addr %s393, 2
        %s395 = smul.addr %s394, 8
        %s396 = scalar_lea.vmem %s2, %s395
        %s397 = smul.u32 8, %s32
        %p398 = scmp.eq.s32.totalorder %s32, 0
        // Predicated region
        $region83: #{tpu_custom_call.1} parent=69 // pred_check
          %p399 = pneg %p398
        $region84: #{tpu_custom_call.1} parent=69 // pred_check_branch
          %401 = sbr.rel (%p399) target = $region86
        $region85: #{tpu_custom_call.1} parent=69 // pred_region
          %v402 = vld [vmem:[%s396] sm:$0xff]
          %403 = vst [vmem:[#allocation2] sm:$0xff] %v402
          %v404 = vld [vmem:[%s396 + $0x8] sm:$0xff]
          %405 = vst [vmem:[#allocation3] sm:$0xff] %v404
        $region86: #{tpu_custom_call.1} parent=69 // pred_fallthru
          _
        %v406 = vld [vmem:[#allocation2] sm:$0xff]
        %v407 = vld [vmem:[#allocation3] sm:$0xff]
        %v408 = vld [vmem:[%s346] sm:$0xff]
        %410 = vset.pattern.permute.xlu0 0
        %411 = vperm.xlu0 %410, %v408
        %v412 = vpop.permute.xlu0 %411
        %v414 = vmul.f32 %v406, %v412
        %v415 = vmul.f32 %v407, %v412
        %v416 = vld [vmem:[%s338] sm:$0xff]
        %v417 = vld [vmem:[%s338 + $0x8] sm:$0xff]
        %v418 = vld [vmem:[%s338 + $0x10] sm:$0xff]
        %v419 = vld [vmem:[%s338 + $0x18] sm:$0xff]
        %v420 = vld [vmem:[#allocation8] sm:$0xff]
        %v421 = vld [vmem:[#allocation8 + $0x8] sm:$0xff]
        %v422 = vld [vmem:[#allocation8 + $0x10] sm:$0xff]
        %v423 = vld [vmem:[#allocation8 + $0x18] sm:$0xff]
        %v424 = vld [vmem:[#allocation8 + $0x20] sm:$0xff]
        %v425 = vld [vmem:[#allocation8 + $0x28] sm:$0xff]
        %v426 = vld [vmem:[#allocation8 + $0x30] sm:$0xff]
        %v427 = vld [vmem:[#allocation8 + $0x38] sm:$0xff]
        %v428 = vld [vmem:[#allocation8 + $0x40] sm:$0xff]
        %v429 = vld [vmem:[#allocation8 + $0x48] sm:$0xff]
        %v430 = vld [vmem:[#allocation8 + $0x50] sm:$0xff]
        %v431 = vld [vmem:[#allocation8 + $0x58] sm:$0xff]
        %v432 = vld [vmem:[#allocation8 + $0x60] sm:$0xff]
        %v433 = vld [vmem:[#allocation8 + $0x68] sm:$0xff]
        %v434 = vld [vmem:[#allocation8 + $0x70] sm:$0xff]
        %v435 = vld [vmem:[#allocation8 + $0x78] sm:$0xff]
        %v436 = vld [vmem:[#allocation8 + $0x80] sm:$0xff]
        %v437 = vld [vmem:[#allocation8 + $0x88] sm:$0xff]
        %v438 = vld [vmem:[#allocation8 + $0x90] sm:$0xff]
        %v439 = vld [vmem:[#allocation8 + $0x98] sm:$0xff]
        %v440 = vld [vmem:[#allocation8 + $0xa0] sm:$0xff]
        %v441 = vld [vmem:[#allocation8 + $0xa8] sm:$0xff]
        %v442 = vld [vmem:[#allocation8 + $0xb0] sm:$0xff]
        %v443 = vld [vmem:[#allocation8 + $0xb8] sm:$0xff]
        %v444 = vld [vmem:[#allocation8 + $0xc0] sm:$0xff]
        %v445 = vld [vmem:[#allocation8 + $0xc8] sm:$0xff]
        %v446 = vld [vmem:[#allocation8 + $0xd0] sm:$0xff]
        %v447 = vld [vmem:[#allocation8 + $0xd8] sm:$0xff]
        %v448 = vld [vmem:[#allocation8 + $0xe0] sm:$0xff]
        %v449 = vld [vmem:[#allocation8 + $0xe8] sm:$0xff]
        %v450 = vld [vmem:[#allocation8 + $0xf0] sm:$0xff]
        %v451 = vld [vmem:[#allocation8 + $0xf8] sm:$0xff]
        %v452 = vld [vmem:[#allocation8 + $0x100] sm:$0xff]
        %v453 = vld [vmem:[#allocation8 + $0x108] sm:$0xff]
        %v454 = vld [vmem:[#allocation8 + $0x110] sm:$0xff]
        %v455 = vld [vmem:[#allocation8 + $0x118] sm:$0xff]
        %v456 = vld [vmem:[#allocation8 + $0x120] sm:$0xff]
        %v457 = vld [vmem:[#allocation8 + $0x128] sm:$0xff]
        %v458 = vld [vmem:[#allocation8 + $0x130] sm:$0xff]
        %v459 = vld [vmem:[#allocation8 + $0x138] sm:$0xff]
        %v460 = vld [vmem:[#allocation8 + $0x140] sm:$0xff]
        %v461 = vld [vmem:[#allocation8 + $0x148] sm:$0xff]
        %v462 = vld [vmem:[#allocation8 + $0x150] sm:$0xff]
        %v463 = vld [vmem:[#allocation8 + $0x158] sm:$0xff]
        %v464 = vld [vmem:[#allocation8 + $0x160] sm:$0xff]
        %v465 = vld [vmem:[#allocation8 + $0x168] sm:$0xff]
        %v466 = vld [vmem:[#allocation8 + $0x170] sm:$0xff]
        %v467 = vld [vmem:[#allocation8 + $0x178] sm:$0xff]
        %v468 = vld [vmem:[#allocation8 + $0x180] sm:$0xff]
        %v469 = vld [vmem:[#allocation8 + $0x188] sm:$0xff]
        %v470 = vld [vmem:[#allocation8 + $0x190] sm:$0xff]
        %v471 = vld [vmem:[#allocation8 + $0x198] sm:$0xff]
        %v472 = vld [vmem:[#allocation8 + $0x1a0] sm:$0xff]
        %v473 = vld [vmem:[#allocation8 + $0x1a8] sm:$0xff]
        %v474 = vld [vmem:[#allocation8 + $0x1b0] sm:$0xff]
        %v475 = vld [vmem:[#allocation8 + $0x1b8] sm:$0xff]
        %v476 = vld [vmem:[#allocation8 + $0x1c0] sm:$0xff]
        %v477 = vld [vmem:[#allocation8 + $0x1c8] sm:$0xff]
        %v478 = vld [vmem:[#allocation8 + $0x1d0] sm:$0xff]
        %v479 = vld [vmem:[#allocation8 + $0x1d8] sm:$0xff]
        %v480 = vld [vmem:[#allocation8 + $0x1e0] sm:$0xff]
        %v481 = vld [vmem:[#allocation8 + $0x1e8] sm:$0xff]
        %v482 = vld [vmem:[#allocation8 + $0x1f0] sm:$0xff]
        %v483 = vld [vmem:[#allocation8 + $0x1f8] sm:$0xff]
        %484 = vmatprep.subr.mxu0 %v421
        %485 = vmatpush1.msra.mxu0 %v420
        %486 = vmatprep.subr.mxu0 %v425
        %487 = vmatpush1.msra.mxu0 %v424
        %488 = vmatprep.subr.mxu0 %v429
        %489 = vmatpush1.msra.mxu0 %v428
        %490 = vmatprep.subr.mxu0 %v433
        %491 = vmatpush1.msra.mxu0 %v432
        %492 = vmatprep.subr.mxu0 %v437
        %493 = vmatpush1.msra.mxu0 %v436
        %494 = vmatprep.subr.mxu0 %v441
        %495 = vmatpush1.msra.mxu0 %v440
        %496 = vmatprep.subr.mxu0 %v445
        %497 = vmatpush1.msra.mxu0 %v444
        %498 = vmatprep.subr.mxu0 %v449
        %499 = vmatpush1.msra.mxu0 %v448
        %500 = vmatprep.subr.mxu0 %v453
        %501 = vmatpush1.msra.mxu0 %v452
        %502 = vmatprep.subr.mxu0 %v457
        %503 = vmatpush1.msra.mxu0 %v456
        %504 = vmatprep.subr.mxu0 %v461
        %505 = vmatpush1.msra.mxu0 %v460
        %506 = vmatprep.subr.mxu0 %v465
        %507 = vmatpush1.msra.mxu0 %v464
        %508 = vmatprep.subr.mxu0 %v469
        %509 = vmatpush1.msra.mxu0 %v468
        %510 = vmatprep.subr.mxu0 %v473
        %511 = vmatpush1.msra.mxu0 %v472
        %512 = vmatprep.subr.mxu0 %v477
        %513 = vmatpush1.msra.mxu0 %v476
        %514 = vmatprep.subr.mxu0 %v481
        %515 = vmatpush1.msra.mxu0 %v480
        %516 = vmatprep.subr.mxu0 0.0
        %517 = vmatpush1.msra.mxu0 0.0
        %518 = vmatprep.subr.mxu0 0.0
        %519 = vmatpush1.msra.mxu0 0.0
        %520 = vmatprep.subr.mxu0 0.0
        %521 = vmatpush1.msra.mxu0 0.0
        %522 = vmatprep.subr.mxu0 0.0
        %523 = vmatpush1.msra.mxu0 0.0
        %524 = vmatprep.subr.mxu0 0.0
        %525 = vmatpush1.msra.mxu0 0.0
        %526 = vmatprep.subr.mxu0 0.0
        %527 = vmatpush1.msra.mxu0 0.0
        %528 = vmatprep.subr.mxu0 0.0
        %529 = vmatpush1.msra.mxu0 0.0
        %530 = vmatprep.subr.mxu0 0.0
        %531 = vmatpush1.msra.mxu0 0.0
        %532 = vmatprep.subr.mxu0 0.0
        %533 = vmatpush1.msra.mxu0 0.0
        %534 = vmatprep.subr.mxu0 0.0
        %535 = vmatpush1.msra.mxu0 0.0
        %536 = vmatprep.subr.mxu0 0.0
        %537 = vmatpush1.msra.mxu0 0.0
        %538 = vmatprep.subr.mxu0 0.0
        %539 = vmatpush1.msra.mxu0 0.0
        %540 = vmatprep.subr.mxu0 0.0
        %541 = vmatpush1.msra.mxu0 0.0
        %542 = vmatprep.subr.mxu0 0.0
        %543 = vmatpush1.msra.mxu0 0.0
        %544 = vmatprep.subr.mxu0 0.0
        %545 = vmatpush1.msra.mxu0 0.0
        %546 = vmatprep.subr.mxu0 0.0
        %547 = vmatpush1.msra.mxu0 0.0
        %548 = vmatprep.mubr.f32.mxu0 0.0
        %549 = vmatmul.mubr.f32.gmra.mrb[0].mxu0 %v414
        %v550 = vpop.f32.mrb[0].mxu0
        %v551 = vadd.f32 0.0, %v550
        %v552 = vpop.f32.mrb[0].mxu0
        %v553 = vadd.f32 0.0, %v552
        %554 = vdwg.mxu0
        %555 = vmatprep.subr.mxu0 %v423
        %556 = vmatpush1.msra.mxu0 %v422
        %557 = vmatprep.subr.mxu0 %v427
        %558 = vmatpush1.msra.mxu0 %v426
        %559 = vmatprep.subr.mxu0 %v431
        %560 = vmatpush1.msra.mxu0 %v430
        %561 = vmatprep.subr.mxu0 %v435
        %562 = vmatpush1.msra.mxu0 %v434
        %563 = vmatprep.subr.mxu0 %v439
        %564 = vmatpush1.msra.mxu0 %v438
        %565 = vmatprep.subr.mxu0 %v443
        %566 = vmatpush1.msra.mxu0 %v442
        %567 = vmatprep.subr.mxu0 %v447
        %568 = vmatpush1.msra.mxu0 %v446
        %569 = vmatprep.subr.mxu0 %v451
        %570 = vmatpush1.msra.mxu0 %v450
        %571 = vmatprep.subr.mxu0 %v455
        %572 = vmatpush1.msra.mxu0 %v454
        %573 = vmatprep.subr.mxu0 %v459
        %574 = vmatpush1.msra.mxu0 %v458
        %575 = vmatprep.subr.mxu0 %v463
        %576 = vmatpush1.msra.mxu0 %v462
        %577 = vmatprep.subr.mxu0 %v467
        %578 = vmatpush1.msra.mxu0 %v466
        %579 = vmatprep.subr.mxu0 %v471
        %580 = vmatpush1.msra.mxu0 %v470
        %581 = vmatprep.subr.mxu0 %v475
        %582 = vmatpush1.msra.mxu0 %v474
        %583 = vmatprep.subr.mxu0 %v479
        %584 = vmatpush1.msra.mxu0 %v478
        %585 = vmatprep.subr.mxu0 %v483
        %586 = vmatpush1.msra.mxu0 %v482
        %587 = vmatprep.subr.mxu0 0.0
        %588 = vmatpush1.msra.mxu0 0.0
        %589 = vmatprep.subr.mxu0 0.0
        %590 = vmatpush1.msra.mxu0 0.0
        %591 = vmatprep.subr.mxu0 0.0
        %592 = vmatpush1.msra.mxu0 0.0
        %593 = vmatprep.subr.mxu0 0.0
        %594 = vmatpush1.msra.mxu0 0.0
        %595 = vmatprep.subr.mxu0 0.0
        %596 = vmatpush1.msra.mxu0 0.0
        %597 = vmatprep.subr.mxu0 0.0
        %598 = vmatpush1.msra.mxu0 0.0
        %599 = vmatprep.subr.mxu0 0.0
        %600 = vmatpush1.msra.mxu0 0.0
        %601 = vmatprep.subr.mxu0 0.0
        %602 = vmatpush1.msra.mxu0 0.0
        %603 = vmatprep.subr.mxu0 0.0
        %604 = vmatpush1.msra.mxu0 0.0
        %605 = vmatprep.subr.mxu0 0.0
        %606 = vmatpush1.msra.mxu0 0.0
        %607 = vmatprep.subr.mxu0 0.0
        %608 = vmatpush1.msra.mxu0 0.0
        %609 = vmatprep.subr.mxu0 0.0
        %610 = vmatpush1.msra.mxu0 0.0
        %611 = vmatprep.subr.mxu0 0.0
        %612 = vmatpush1.msra.mxu0 0.0
        %613 = vmatprep.subr.mxu0 0.0
        %614 = vmatpush1.msra.mxu0 0.0
        %615 = vmatprep.subr.mxu0 0.0
        %616 = vmatpush1.msra.mxu0 0.0
        %617 = vmatprep.subr.mxu0 0.0
        %618 = vmatpush1.msra.mxu0 0.0
        %619 = vmatprep.mubr.f32.mxu0 0.0
        %620 = vmatmul.mubr.f32.gmra.mrb[0].mxu0 %v414
        %v621 = vpop.f32.mrb[0].mxu0
        %v622 = vadd.f32 0.0, %v621
        %v623 = vpop.f32.mrb[0].mxu0
        %v624 = vadd.f32 0.0, %v623
        %625 = vdwg.mxu0
        %v626 = vadd.f32 %v416, %v551
        %v627 = vadd.f32 %v417, %v553
        %v628 = vadd.f32 %v418, %v622
        %v629 = vadd.f32 %v419, %v624
        %v630 = vxor.u32 %v626, 2147483648
        %v631 = vmul.f32 %v630, 1.442695
        %v632 = vpow.pop %v631
        %v633 = vadd.f32 %v632, 1.0
        %v634 = vrcp.pop %v633
        %v635 = vmul.f32 1.0, %v634
        %v636 = vxor.u32 %v627, 2147483648
        %v637 = vmul.f32 %v636, 1.442695
        %v638 = vpow.pop %v637
        %v639 = vadd.f32 %v638, 1.0
        %v640 = vrcp.pop %v639
        %v641 = vmul.f32 1.0, %v640
        %v642 = vtanh.pop %v628
        %v643 = vxor.u32 %v629, 2147483648
        %v644 = vmul.f32 %v643, 1.442695
        %v645 = vpow.pop %v644
        %v646 = vadd.f32 %v645, 1.0
        %v647 = vrcp.pop %v646
        %v648 = vmul.f32 1.0, %v647
        %v649 = vmul.f32 %v641, %v415
        %v650 = vmul.f32 %v635, %v642
        %v651 = vadd.f32 %v649, %v650
        %v652 = vtanh.pop %v651
        %v653 = vmul.f32 %v648, %v652
        %654 = vst [vmem:[%s382] sm:$0xff] %v653
        %s655 = scalar_lea.vmem %s346, 8 [#allocation7]
        %v656 = vld [vmem:[%s655] sm:$0xff]
        %658 = vset.pattern.permute.xlu0 0
        %659 = vperm.xlu0 %658, %v656
        %v660 = vpop.permute.xlu0 %659
        %v662 = vmul.f32 %v653, %v660
        %v663 = vmul.f32 %v651, %v660
        %s664 = scalar_lea.vmem %s338, 32 [#allocation4]
        %v665 = vld [vmem:[%s664] sm:$0xff]
        %v666 = vld [vmem:[%s664 + $0x8] sm:$0xff]
        %v667 = vld [vmem:[%s664 + $0x10] sm:$0xff]
        %v668 = vld [vmem:[%s664 + $0x18] sm:$0xff]
        %v669 = vld [vmem:[#allocation8] sm:$0xff]
        %v670 = vld [vmem:[#allocation8 + $0x8] sm:$0xff]
        %v671 = vld [vmem:[#allocation8 + $0x10] sm:$0xff]
        %v672 = vld [vmem:[#allocation8 + $0x18] sm:$0xff]
        %v673 = vld [vmem:[#allocation8 + $0x20] sm:$0xff]
        %v674 = vld [vmem:[#allocation8 + $0x28] sm:$0xff]
        %v675 = vld [vmem:[#allocation8 + $0x30] sm:$0xff]
        %v676 = vld [vmem:[#allocation8 + $0x38] sm:$0xff]
        %v677 = vld [vmem:[#allocation8 + $0x40] sm:$0xff]
        %v678 = vld [vmem:[#allocation8 + $0x48] sm:$0xff]
        %v679 = vld [vmem:[#allocation8 + $0x50] sm:$0xff]
        %v680 = vld [vmem:[#allocation8 + $0x58] sm:$0xff]
        %v681 = vld [vmem:[#allocation8 + $0x60] sm:$0xff]
        %v682 = vld [vmem:[#allocation8 + $0x68] sm:$0xff]
        %v683 = vld [vmem:[#allocation8 + $0x70] sm:$0xff]
        %v684 = vld [vmem:[#allocation8 + $0x78] sm:$0xff]
        %v685 = vld [vmem:[#allocation8 + $0x80] sm:$0xff]
        %v686 = vld [vmem:[#allocation8 + $0x88] sm:$0xff]
        %v687 = vld [vmem:[#allocation8 + $0x90] sm:$0xff]
        %v688 = vld [vmem:[#allocation8 + $0x98] sm:$0xff]
        %v689 = vld [vmem:[#allocation8 + $0xa0] sm:$0xff]
        %v690 = vld [vmem:[#allocation8 + $0xa8] sm:$0xff]
        %v691 = vld [vmem:[#allocation8 + $0xb0] sm:$0xff]
        %v692 = vld [vmem:[#allocation8 + $0xb8] sm:$0xff]
        %v693 = vld [vmem:[#allocation8 + $0xc0] sm:$0xff]
        %v694 = vld [vmem:[#allocation8 + $0xc8] sm:$0xff]
        %v695 = vld [vmem:[#allocation8 + $0xd0] sm:$0xff]
        %v696 = vld [vmem:[#allocation8 + $0xd8] sm:$0xff]
        %v697 = vld [vmem:[#allocation8 + $0xe0] sm:$0xff]
        %v698 = vld [vmem:[#allocation8 + $0xe8] sm:$0xff]
        %v699 = vld [vmem:[#allocation8 + $0xf0] sm:$0xff]
        %v700 = vld [vmem:[#allocation8 + $0xf8] sm:$0xff]
        %v701 = vld [vmem:[#allocation8 + $0x100] sm:$0xff]
        %v702 = vld [vmem:[#allocation8 + $0x108] sm:$0xff]
        %v703 = vld [vmem:[#allocation8 + $0x110] sm:$0xff]
        %v704 = vld [vmem:[#allocation8 + $0x118] sm:$0xff]
        %v705 = vld [vmem:[#allocation8 + $0x120] sm:$0xff]
        %v706 = vld [vmem:[#allocation8 + $0x128] sm:$0xff]
        %v707 = vld [vmem:[#allocation8 + $0x130] sm:$0xff]
        %v708 = vld [vmem:[#allocation8 + $0x138] sm:$0xff]
        %v709 = vld [vmem:[#allocation8 + $0x140] sm:$0xff]
        %v710 = vld [vmem:[#allocation8 + $0x148] sm:$0xff]
        %v711 = vld [vmem:[#allocation8 + $0x150] sm:$0xff]
        %v712 = vld [vmem:[#allocation8 + $0x158] sm:$0xff]
        %v713 = vld [vmem:[#allocation8 + $0x160] sm:$0xff]
        %v714 = vld [vmem:[#allocation8 + $0x168] sm:$0xff]
        %v715 = vld [vmem:[#allocation8 + $0x170] sm:$0xff]
        %v716 = vld [vmem:[#allocation8 + $0x178] sm:$0xff]
        %v717 = vld [vmem:[#allocation8 + $0x180] sm:$0xff]
        %v718 = vld [vmem:[#allocation8 + $0x188] sm:$0xff]
        %v719 = vld [vmem:[#allocation8 + $0x190] sm:$0xff]
        %v720 = vld [vmem:[#allocation8 + $0x198] sm:$0xff]
        %v721 = vld [vmem:[#allocation8 + $0x1a0] sm:$0xff]
        %v722 = vld [vmem:[#allocation8 + $0x1a8] sm:$0xff]
        %v723 = vld [vmem:[#allocation8 + $0x1b0] sm:$0xff]
        %v724 = vld [vmem:[#allocation8 + $0x1b8] sm:$0xff]
        %v725 = vld [vmem:[#allocation8 + $0x1c0] sm:$0xff]
        %v726 = vld [vmem:[#allocation8 + $0x1c8] sm:$0xff]
        %v727 = vld [vmem:[#allocation8 + $0x1d0] sm:$0xff]
        %v728 = vld [vmem:[#allocation8 + $0x1d8] sm:$0xff]
        %v729 = vld [vmem:[#allocation8 + $0x1e0] sm:$0xff]
        %v730 = vld [vmem:[#allocation8 + $0x1e8] sm:$0xff]
        %v731 = vld [vmem:[#allocation8 + $0x1f0] sm:$0xff]
        %v732 = vld [vmem:[#allocation8 + $0x1f8] sm:$0xff]
        %733 = vmatprep.subr.mxu0 %v670
        %734 = vmatpush1.msra.mxu0 %v669
        %735 = vmatprep.subr.mxu0 %v674
        %736 = vmatpush1.msra.mxu0 %v673
        %737 = vmatprep.subr.mxu0 %v678
        %738 = vmatpush1.msra.mxu0 %v677
        %739 = vmatprep.subr.mxu0 %v682
        %740 = vmatpush1.msra.mxu0 %v681
        %741 = vmatprep.subr.mxu0 %v686
        %742 = vmatpush1.msra.mxu0 %v685
        %743 = vmatprep.subr.mxu0 %v690
        %744 = vmatpush1.msra.mxu0 %v689
        %745 = vmatprep.subr.mxu0 %v694
        %746 = vmatpush1.msra.mxu0 %v693
        %747 = vmatprep.subr.mxu0 %v698
        %748 = vmatpush1.msra.mxu0 %v697
        %749 = vmatprep.subr.mxu0 %v702
        %750 = vmatpush1.msra.mxu0 %v701
        %751 = vmatprep.subr.mxu0 %v706
        %752 = vmatpush1.msra.mxu0 %v705
        %753 = vmatprep.subr.mxu0 %v710
        %754 = vmatpush1.msra.mxu0 %v709
        %755 = vmatprep.subr.mxu0 %v714
        %756 = vmatpush1.msra.mxu0 %v713
        %757 = vmatprep.subr.mxu0 %v718
        %758 = vmatpush1.msra.mxu0 %v717
        %759 = vmatprep.subr.mxu0 %v722
        %760 = vmatpush1.msra.mxu0 %v721
        %761 = vmatprep.subr.mxu0 %v726
        %762 = vmatpush1.msra.mxu0 %v725
        %763 = vmatprep.subr.mxu0 %v730
        %764 = vmatpush1.msra.mxu0 %v729
        %765 = vmatprep.subr.mxu0 0.0
        %766 = vmatpush1.msra.mxu0 0.0
        %767 = vmatprep.subr.mxu0 0.0
        %768 = vmatpush1.msra.mxu0 0.0
        %769 = vmatprep.subr.mxu0 0.0
        %770 = vmatpush1.msra.mxu0 0.0
        %771 = vmatprep.subr.mxu0 0.0
        %772 = vmatpush1.msra.mxu0 0.0
        %773 = vmatprep.subr.mxu0 0.0
        %774 = vmatpush1.msra.mxu0 0.0
        %775 = vmatprep.subr.mxu0 0.0
        %776 = vmatpush1.msra.mxu0 0.0
        %777 = vmatprep.subr.mxu0 0.0
        %778 = vmatpush1.msra.mxu0 0.0
        %779 = vmatprep.subr.mxu0 0.0
        %780 = vmatpush1.msra.mxu0 0.0
        %781 = vmatprep.subr.mxu0 0.0
        %782 = vmatpush1.msra.mxu0 0.0
        %783 = vmatprep.subr.mxu0 0.0
        %784 = vmatpush1.msra.mxu0 0.0
        %785 = vmatprep.subr.mxu0 0.0
        %786 = vmatpush1.msra.mxu0 0.0
        %787 = vmatprep.subr.mxu0 0.0
        %788 = vmatpush1.msra.mxu0 0.0
        %789 = vmatprep.subr.mxu0 0.0
        %790 = vmatpush1.msra.mxu0 0.0
        %791 = vmatprep.subr.mxu0 0.0
        %792 = vmatpush1.msra.mxu0 0.0
        %793 = vmatprep.subr.mxu0 0.0
        %794 = vmatpush1.msra.mxu0 0.0
        %795 = vmatprep.subr.mxu0 0.0
        %796 = vmatpush1.msra.mxu0 0.0
        %797 = vmatprep.mubr.f32.mxu0 0.0
        %798 = vmatmul.mubr.f32.gmra.mrb[0].mxu0 %v662
        %v799 = vpop.f32.mrb[0].mxu0
        %v800 = vadd.f32 0.0, %v799
        %v801 = vpop.f32.mrb[0].mxu0
        %v802 = vadd.f32 0.0, %v801
        %803 = vdwg.mxu0
        %804 = vmatprep.subr.mxu0 %v672
        %805 = vmatpush1.msra.mxu0 %v671
        %806 = vmatprep.subr.mxu0 %v676
        %807 = vmatpush1.msra.mxu0 %v675
        %808 = vmatprep.subr.mxu0 %v680
        %809 = vmatpush1.msra.mxu0 %v679
        %810 = vmatprep.subr.mxu0 %v684
        %811 = vmatpush1.msra.mxu0 %v683
        %812 = vmatprep.subr.mxu0 %v688
        %813 = vmatpush1.msra.mxu0 %v687
        %814 = vmatprep.subr.mxu0 %v692
        %815 = vmatpush1.msra.mxu0 %v691
        %816 = vmatprep.subr.mxu0 %v696
        %817 = vmatpush1.msra.mxu0 %v695
        %818 = vmatprep.subr.mxu0 %v700
        %819 = vmatpush1.msra.mxu0 %v699
        %820 = vmatprep.subr.mxu0 %v704
        %821 = vmatpush1.msra.mxu0 %v703
        %822 = vmatprep.subr.mxu0 %v708
        %823 = vmatpush1.msra.mxu0 %v707
        %824 = vmatprep.subr.mxu0 %v712
        %825 = vmatpush1.msra.mxu0 %v711
        %826 = vmatprep.subr.mxu0 %v716
        %827 = vmatpush1.msra.mxu0 %v715
        %828 = vmatprep.subr.mxu0 %v720
        %829 = vmatpush1.msra.mxu0 %v719
        %830 = vmatprep.subr.mxu0 %v724
        %831 = vmatpush1.msra.mxu0 %v723
        %832 = vmatprep.subr.mxu0 %v728
        %833 = vmatpush1.msra.mxu0 %v727
        %834 = vmatprep.subr.mxu0 %v732
        %835 = vmatpush1.msra.mxu0 %v731
        %836 = vmatprep.subr.mxu0 0.0
        %837 = vmatpush1.msra.mxu0 0.0
        %838 = vmatprep.subr.mxu0 0.0
        %839 = vmatpush1.msra.mxu0 0.0
        %840 = vmatprep.subr.mxu0 0.0
        %841 = vmatpush1.msra.mxu0 0.0
        %842 = vmatprep.subr.mxu0 0.0
        %843 = vmatpush1.msra.mxu0 0.0
        %844 = vmatprep.subr.mxu0 0.0
        %845 = vmatpush1.msra.mxu0 0.0
        %846 = vmatprep.subr.mxu0 0.0
        %847 = vmatpush1.msra.mxu0 0.0
        %848 = vmatprep.subr.mxu0 0.0
        %849 = vmatpush1.msra.mxu0 0.0
        %850 = vmatprep.subr.mxu0 0.0
        %851 = vmatpush1.msra.mxu0 0.0
        %852 = vmatprep.subr.mxu0 0.0
        %853 = vmatpush1.msra.mxu0 0.0
        %854 = vmatprep.subr.mxu0 0.0
        %855 = vmatpush1.msra.mxu0 0.0
        %856 = vmatprep.subr.mxu0 0.0
        %857 = vmatpush1.msra.mxu0 0.0
        %858 = vmatprep.subr.mxu0 0.0
        %859 = vmatpush1.msra.mxu0 0.0
        %860 = vmatprep.subr.mxu0 0.0
        %861 = vmatpush1.msra.mxu0 0.0
        %862 = vmatprep.subr.mxu0 0.0
        %863 = vmatpush1.msra.mxu0 0.0
        %864 = vmatprep.subr.mxu0 0.0
        %865 = vmatpush1.msra.mxu0 0.0
        %866 = vmatprep.subr.mxu0 0.0
        %867 = vmatpush1.msra.mxu0 0.0
        %868 = vmatprep.mubr.f32.mxu0 0.0
        %869 = vmatmul.mubr.f32.gmra.mrb[0].mxu0 %v662
        %v870 = vpop.f32.mrb[0].mxu0
        %v871 = vadd.f32 0.0, %v870
        %v872 = vpop.f32.mrb[0].mxu0
        %v873 = vadd.f32 0.0, %v872
        %874 = vdwg.mxu0
        %v875 = vadd.f32 %v665, %v800
        %v876 = vadd.f32 %v666, %v802
        %v877 = vadd.f32 %v667, %v871
        %v878 = vadd.f32 %v668, %v873
        %v879 = vxor.u32 %v875, 2147483648
        %v880 = vmul.f32 %v879, 1.442695
        %v881 = vpow.pop %v880
        %v882 = vadd.f32 %v881, 1.0
        %v883 = vrcp.pop %v882
        %v884 = vmul.f32 1.0, %v883
        %v885 = vxor.u32 %v876, 2147483648
        %v886 = vmul.f32 %v885, 1.442695
        %v887 = vpow.pop %v886
        %v888 = vadd.f32 %v887, 1.0
        %v889 = vrcp.pop %v888
        %v890 = vmul.f32 1.0, %v889
        %v891 = vtanh.pop %v877
        %v892 = vxor.u32 %v878, 2147483648
        %v893 = vmul.f32 %v892, 1.442695
        %v894 = vpow.pop %v893
        %v895 = vadd.f32 %v894, 1.0
        %v896 = vrcp.pop %v895
        %v897 = vmul.f32 1.0, %v896
        %v898 = vmul.f32 %v890, %v663
        %v899 = vmul.f32 %v884, %v891
        %v900 = vadd.f32 %v898, %v899
        %v901 = vtanh.pop %v900
        %v902 = vmul.f32 %v897, %v901
        %s903 = scalar_lea.vmem %s382, 8 [#allocation10]
        %904 = vst [vmem:[%s903] sm:$0xff] %v902
        %s905 = scalar_lea.vmem %s346, 16 [#allocation7]
        %v906 = vld [vmem:[%s905] sm:$0xff]
        %908 = vset.pattern.permute.xlu0 0
        %909 = vperm.xlu0 %908, %v906
        %v910 = vpop.permute.xlu0 %909
        %v912 = vmul.f32 %v902, %v910
        %v913 = vmul.f32 %v900, %v910
        %s914 = scalar_lea.vmem %s338, 64 [#allocation4]
        %v915 = vld [vmem:[%s914] sm:$0xff]
        %v916 = vld [vmem:[%s914 + $0x8] sm:$0xff]
        %v917 = vld [vmem:[%s914 + $0x10] sm:$0xff]
        %v918 = vld [vmem:[%s914 + $0x18] sm:$0xff]
        %v919 = vld [vmem:[#allocation8] sm:$0xff]
        %v920 = vld [vmem:[#allocation8 + $0x8] sm:$0xff]
        %v921 = vld [vmem:[#allocation8 + $0x10] sm:$0xff]
        %v922 = vld [vmem:[#allocation8 + $0x18] sm:$0xff]
        %v923 = vld [vmem:[#allocation8 + $0x20] sm:$0xff]
        %v924 = vld [vmem:[#allocation8 + $0x28] sm:$0xff]
        %v925 = vld [vmem:[#allocation8 + $0x30] sm:$0xff]
        %v926 = vld [vmem:[#allocation8 + $0x38] sm:$0xff]
        %v927 = vld [vmem:[#allocation8 + $0x40] sm:$0xff]
        %v928 = vld [vmem:[#allocation8 + $0x48] sm:$0xff]
        %v929 = vld [vmem:[#allocation8 + $0x50] sm:$0xff]
        %v930 = vld [vmem:[#allocation8 + $0x58] sm:$0xff]
        %v931 = vld [vmem:[#allocation8 + $0x60] sm:$0xff]
        %v932 = vld [vmem:[#allocation8 + $0x68] sm:$0xff]
        %v933 = vld [vmem:[#allocation8 + $0x70] sm:$0xff]
        %v934 = vld [vmem:[#allocation8 + $0x78] sm:$0xff]
        %v935 = vld [vmem:[#allocation8 + $0x80] sm:$0xff]
        %v936 = vld [vmem:[#allocation8 + $0x88] sm:$0xff]
        %v937 = vld [vmem:[#allocation8 + $0x90] sm:$0xff]
        %v938 = vld [vmem:[#allocation8 + $0x98] sm:$0xff]
        %v939 = vld [vmem:[#allocation8 + $0xa0] sm:$0xff]
        %v940 = vld [vmem:[#allocation8 + $0xa8] sm:$0xff]
        %v941 = vld [vmem:[#allocation8 + $0xb0] sm:$0xff]
        %v942 = vld [vmem:[#allocation8 + $0xb8] sm:$0xff]
        %v943 = vld [vmem:[#allocation8 + $0xc0] sm:$0xff]
        %v944 = vld [vmem:[#allocation8 + $0xc8] sm:$0xff]
        %v945 = vld [vmem:[#allocation8 + $0xd0] sm:$0xff]
        %v946 = vld [vmem:[#allocation8 + $0xd8] sm:$0xff]
        %v947 = vld [vmem:[#allocation8 + $0xe0] sm:$0xff]
        %v948 = vld [vmem:[#allocation8 + $0xe8] sm:$0xff]
        %v949 = vld [vmem:[#allocation8 + $0xf0] sm:$0xff]
        %v950 = vld [vmem:[#allocation8 + $0xf8] sm:$0xff]
        %v951 = vld [vmem:[#allocation8 + $0x100] sm:$0xff]
        %v952 = vld [vmem:[#allocation8 + $0x108] sm:$0xff]
        %v953 = vld [vmem:[#allocation8 + $0x110] sm:$0xff]
        %v954 = vld [vmem:[#allocation8 + $0x118] sm:$0xff]
        %v955 = vld [vmem:[#allocation8 + $0x120] sm:$0xff]
        %v956 = vld [vmem:[#allocation8 + $0x128] sm:$0xff]
        %v957 = vld [vmem:[#allocation8 + $0x130] sm:$0xff]
        %v958 = vld [vmem:[#allocation8 + $0x138] sm:$0xff]
        %v959 = vld [vmem:[#allocation8 + $0x140] sm:$0xff]
        %v960 = vld [vmem:[#allocation8 + $0x148] sm:$0xff]
        %v961 = vld [vmem:[#allocation8 + $0x150] sm:$0xff]
        %v962 = vld [vmem:[#allocation8 + $0x158] sm:$0xff]
        %v963 = vld [vmem:[#allocation8 + $0x160] sm:$0xff]
        %v964 = vld [vmem:[#allocation8 + $0x168] sm:$0xff]
        %v965 = vld [vmem:[#allocation8 + $0x170] sm:$0xff]
        %v966 = vld [vmem:[#allocation8 + $0x178] sm:$0xff]
        %v967 = vld [vmem:[#allocation8 + $0x180] sm:$0xff]
        %v968 = vld [vmem:[#allocation8 + $0x188] sm:$0xff]
        %v969 = vld [vmem:[#allocation8 + $0x190] sm:$0xff]
        %v970 = vld [vmem:[#allocation8 + $0x198] sm:$0xff]
        %v971 = vld [vmem:[#allocation8 + $0x1a0] sm:$0xff]
        %v972 = vld [vmem:[#allocation8 + $0x1a8] sm:$0xff]
        %v973 = vld [vmem:[#allocation8 + $0x1b0] sm:$0xff]
        %v974 = vld [vmem:[#allocation8 + $0x1b8] sm:$0xff]
        %v975 = vld [vmem:[#allocation8 + $0x1c0] sm:$0xff]
        %v976 = vld [vmem:[#allocation8 + $0x1c8] sm:$0xff]
        %v977 = vld [vmem:[#allocation8 + $0x1d0] sm:$0xff]
        %v978 = vld [vmem:[#allocation8 + $0x1d8] sm:$0xff]
        %v979 = vld [vmem:[#allocation8 + $0x1e0] sm:$0xff]
        %v980 = vld [vmem:[#allocation8 + $0x1e8] sm:$0xff]
        %v981 = vld [vmem:[#allocation8 + $0x1f0] sm:$0xff]
        %v982 = vld [vmem:[#allocation8 + $0x1f8] sm:$0xff]
        %983 = vmatprep.subr.mxu0 %v920
        %984 = vmatpush1.msra.mxu0 %v919
        %985 = vmatprep.subr.mxu0 %v924
        %986 = vmatpush1.msra.mxu0 %v923
        %987 = vmatprep.subr.mxu0 %v928
        %988 = vmatpush1.msra.mxu0 %v927
        %989 = vmatprep.subr.mxu0 %v932
        %990 = vmatpush1.msra.mxu0 %v931
        %991 = vmatprep.subr.mxu0 %v936
        %992 = vmatpush1.msra.mxu0 %v935
        %993 = vmatprep.subr.mxu0 %v940
        %994 = vmatpush1.msra.mxu0 %v939
        %995 = vmatprep.subr.mxu0 %v944
        %996 = vmatpush1.msra.mxu0 %v943
        %997 = vmatprep.subr.mxu0 %v948
        %998 = vmatpush1.msra.mxu0 %v947
        %999 = vmatprep.subr.mxu0 %v952
        %1000 = vmatpush1.msra.mxu0 %v951
        %1001 = vmatprep.subr.mxu0 %v956
        %1002 = vmatpush1.msra.mxu0 %v955
        %1003 = vmatprep.subr.mxu0 %v960
        %1004 = vmatpush1.msra.mxu0 %v959
        %1005 = vmatprep.subr.mxu0 %v964
        %1006 = vmatpush1.msra.mxu0 %v963
        %1007 = vmatprep.subr.mxu0 %v968
        %1008 = vmatpush1.msra.mxu0 %v967
        %1009 = vmatprep.subr.mxu0 %v972
        %1010 = vmatpush1.msra.mxu0 %v971
        %1011 = vmatprep.subr.mxu0 %v976
        %1012 = vmatpush1.msra.mxu0 %v975
        %1013 = vmatprep.subr.mxu0 %v980
        %1014 = vmatpush1.msra.mxu0 %v979
        %1015 = vmatprep.subr.mxu0 0.0
        %1016 = vmatpush1.msra.mxu0 0.0
        %1017 = vmatprep.subr.mxu0 0.0
        %1018 = vmatpush1.msra.mxu0 0.0
        %1019 = vmatprep.subr.mxu0 0.0
        %1020 = vmatpush1.msra.mxu0 0.0
        %1021 = vmatprep.subr.mxu0 0.0
        %1022 = vmatpush1.msra.mxu0 0.0
        %1023 = vmatprep.subr.mxu0 0.0
        %1024 = vmatpush1.msra.mxu0 0.0
        %1025 = vmatprep.subr.mxu0 0.0
        %1026 = vmatpush1.msra.mxu0 0.0
        %1027 = vmatprep.subr.mxu0 0.0
        %1028 = vmatpush1.msra.mxu0 0.0
        %1029 = vmatprep.subr.mxu0 0.0
        %1030 = vmatpush1.msra.mxu0 0.0
        %1031 = vmatprep.subr.mxu0 0.0
        %1032 = vmatpush1.msra.mxu0 0.0
        %1033 = vmatprep.subr.mxu0 0.0
        %1034 = vmatpush1.msra.mxu0 0.0
        %1035 = vmatprep.subr.mxu0 0.0
        %1036 = vmatpush1.msra.mxu0 0.0
        %1037 = vmatprep.subr.mxu0 0.0
        %1038 = vmatpush1.msra.mxu0 0.0
        %1039 = vmatprep.subr.mxu0 0.0
        %1040 = vmatpush1.msra.mxu0 0.0
        %1041 = vmatprep.subr.mxu0 0.0
        %1042 = vmatpush1.msra.mxu0 0.0
        %1043 = vmatprep.subr.mxu0 0.0
        %1044 = vmatpush1.msra.mxu0 0.0
        %1045 = vmatprep.subr.mxu0 0.0
        %1046 = vmatpush1.msra.mxu0 0.0
        %1047 = vmatprep.mubr.f32.mxu0 0.0
        %1048 = vmatmul.mubr.f32.gmra.mrb[0].mxu0 %v912
        %v1049 = vpop.f32.mrb[0].mxu0
        %v1050 = vadd.f32 0.0, %v1049
        %v1051 = vpop.f32.mrb[0].mxu0
        %v1052 = vadd.f32 0.0, %v1051
        %1053 = vdwg.mxu0
        %1054 = vmatprep.subr.mxu0 %v922
        %1055 = vmatpush1.msra.mxu0 %v921
        %1056 = vmatprep.subr.mxu0 %v926
        %1057 = vmatpush1.msra.mxu0 %v925
        %1058 = vmatprep.subr.mxu0 %v930
        %1059 = vmatpush1.msra.mxu0 %v929
        %1060 = vmatprep.subr.mxu0 %v934
        %1061 = vmatpush1.msra.mxu0 %v933
        %1062 = vmatprep.subr.mxu0 %v938
        %1063 = vmatpush1.msra.mxu0 %v937
        %1064 = vmatprep.subr.mxu0 %v942
        %1065 = vmatpush1.msra.mxu0 %v941
        %1066 = vmatprep.subr.mxu0 %v946
        %1067 = vmatpush1.msra.mxu0 %v945
        %1068 = vmatprep.subr.mxu0 %v950
        %1069 = vmatpush1.msra.mxu0 %v949
        %1070 = vmatprep.subr.mxu0 %v954
        %1071 = vmatpush1.msra.mxu0 %v953
        %1072 = vmatprep.subr.mxu0 %v958
        %1073 = vmatpush1.msra.mxu0 %v957
        %1074 = vmatprep.subr.mxu0 %v962
        %1075 = vmatpush1.msra.mxu0 %v961
        %1076 = vmatprep.subr.mxu0 %v966
        %1077 = vmatpush1.msra.mxu0 %v965
        %1078 = vmatprep.subr.mxu0 %v970
        %1079 = vmatpush1.msra.mxu0 %v969
        %1080 = vmatprep.subr.mxu0 %v974
        %1081 = vmatpush1.msra.mxu0 %v973
        %1082 = vmatprep.subr.mxu0 %v978
        %1083 = vmatpush1.msra.mxu0 %v977
        %1084 = vmatprep.subr.mxu0 %v982
        %1085 = vmatpush1.msra.mxu0 %v981
        %1086 = vmatprep.subr.mxu0 0.0
        %1087 = vmatpush1.msra.mxu0 0.0
        %1088 = vmatprep.subr.mxu0 0.0
        %1089 = vmatpush1.msra.mxu0 0.0
        %1090 = vmatprep.subr.mxu0 0.0
        %1091 = vmatpush1.msra.mxu0 0.0
        %1092 = vmatprep.subr.mxu0 0.0
        %1093 = vmatpush1.msra.mxu0 0.0
        %1094 = vmatprep.subr.mxu0 0.0
        %1095 = vmatpush1.msra.mxu0 0.0
        %1096 = vmatprep.subr.mxu0 0.0
        %1097 = vmatpush1.msra.mxu0 0.0
        %1098 = vmatprep.subr.mxu0 0.0
        %1099 = vmatpush1.msra.mxu0 0.0
        %1100 = vmatprep.subr.mxu0 0.0
        %1101 = vmatpush1.msra.mxu0 0.0
        %1102 = vmatprep.subr.mxu0 0.0
        %1103 = vmatpush1.msra.mxu0 0.0
        %1104 = vmatprep.subr.mxu0 0.0
        %1105 = vmatpush1.msra.mxu0 0.0
        %1106 = vmatprep.subr.mxu0 0.0
        %1107 = vmatpush1.msra.mxu0 0.0
        %1108 = vmatprep.subr.mxu0 0.0
        %1109 = vmatpush1.msra.mxu0 0.0
        %1110 = vmatprep.subr.mxu0 0.0
        %1111 = vmatpush1.msra.mxu0 0.0
        %1112 = vmatprep.subr.mxu0 0.0
        %1113 = vmatpush1.msra.mxu0 0.0
        %1114 = vmatprep.subr.mxu0 0.0
        %1115 = vmatpush1.msra.mxu0 0.0
        %1116 = vmatprep.subr.mxu0 0.0
        %1117 = vmatpush1.msra.mxu0 0.0
        %1118 = vmatprep.mubr.f32.mxu0 0.0
        %1119 = vmatmul.mubr.f32.gmra.mrb[0].mxu0 %v912
        %v1120 = vpop.f32.mrb[0].mxu0
        %v1121 = vadd.f32 0.0, %v1120
        %v1122 = vpop.f32.mrb[0].mxu0
        %v1123 = vadd.f32 0.0, %v1122
        %1124 = vdwg.mxu0
        %v1125 = vadd.f32 %v915, %v1050
        %v1126 = vadd.f32 %v916, %v1052
        %v1127 = vadd.f32 %v917, %v1121
        %v1128 = vadd.f32 %v918, %v1123
        %v1129 = vxor.u32 %v1125, 2147483648
        %v1130 = vmul.f32 %v1129, 1.442695
        %v1131 = vpow.pop %v1130
        %v1132 = vadd.f32 %v1131, 1.0
        %v1133 = vrcp.pop %v1132
        %v1134 = vmul.f32 1.0, %v1133
        %v1135 = vxor.u32 %v1126, 2147483648
        %v1136 = vmul.f32 %v1135, 1.442695
        %v1137 = vpow.pop %v1136
        %v1138 = vadd.f32 %v1137, 1.0
        %v1139 = vrcp.pop %v1138
        %v1140 = vmul.f32 1.0, %v1139
        %v1141 = vtanh.pop %v1127
        %v1142 = vxor.u32 %v1128, 2147483648
        %v1143 = vmul.f32 %v1142, 1.442695
        %v1144 = vpow.pop %v1143
        %v1145 = vadd.f32 %v1144, 1.0
        %v1146 = vrcp.pop %v1145
        %v1147 = vmul.f32 1.0, %v1146
        %v1148 = vmul.f32 %v1140, %v913
        %v1149 = vmul.f32 %v1134, %v1141
        %v1150 = vadd.f32 %v1148, %v1149
        %v1151 = vtanh.pop %v1150
        %v1152 = vmul.f32 %v1147, %v1151
        %s1153 = scalar_lea.vmem %s382, 16 [#allocation10]
        %1154 = vst [vmem:[%s1153] sm:$0xff] %v1152
        %s1155 = scalar_lea.vmem %s346, 24 [#allocation7]
        %v1156 = vld [vmem:[%s1155] sm:$0xff]
        %1158 = vset.pattern.permute.xlu0 0
        %1159 = vperm.xlu0 %1158, %v1156
        %v1160 = vpop.permute.xlu0 %1159
        %v1162 = vmul.f32 %v1152, %v1160
        %v1163 = vmul.f32 %v1150, %v1160
        %s1164 = scalar_lea.vmem %s338, 96 [#allocation4]
        %v1165 = vld [vmem:[%s1164] sm:$0xff]
        %v1166 = vld [vmem:[%s1164 + $0x8] sm:$0xff]
        %v1167 = vld [vmem:[%s1164 + $0x10] sm:$0xff]
        %v1168 = vld [vmem:[%s1164 + $0x18] sm:$0xff]
        %v1169 = vld [vmem:[#allocation8] sm:$0xff]
        %v1170 = vld [vmem:[#allocation8 + $0x8] sm:$0xff]
        %v1171 = vld [vmem:[#allocation8 + $0x10] sm:$0xff]
        %v1172 = vld [vmem:[#allocation8 + $0x18] sm:$0xff]
        %v1173 = vld [vmem:[#allocation8 + $0x20] sm:$0xff]
        %v1174 = vld [vmem:[#allocation8 + $0x28] sm:$0xff]
        %v1175 = vld [vmem:[#allocation8 + $0x30] sm:$0xff]
        %v1176 = vld [vmem:[#allocation8 + $0x38] sm:$0xff]
        %v1177 = vld [vmem:[#allocation8 + $0x40] sm:$0xff]
        %v1178 = vld [vmem:[#allocation8 + $0x48] sm:$0xff]
        %v1179 = vld [vmem:[#allocation8 + $0x50] sm:$0xff]
        %v1180 = vld [vmem:[#allocation8 + $0x58] sm:$0xff]
        %v1181 = vld [vmem:[#allocation8 + $0x60] sm:$0xff]
        %v1182 = vld [vmem:[#allocation8 + $0x68] sm:$0xff]
        %v1183 = vld [vmem:[#allocation8 + $0x70] sm:$0xff]
        %v1184 = vld [vmem:[#allocation8 + $0x78] sm:$0xff]
        %v1185 = vld [vmem:[#allocation8 + $0x80] sm:$0xff]
        %v1186 = vld [vmem:[#allocation8 + $0x88] sm:$0xff]
        %v1187 = vld [vmem:[#allocation8 + $0x90] sm:$0xff]
        %v1188 = vld [vmem:[#allocation8 + $0x98] sm:$0xff]
        %v1189 = vld [vmem:[#allocation8 + $0xa0] sm:$0xff]
        %v1190 = vld [vmem:[#allocation8 + $0xa8] sm:$0xff]
        %v1191 = vld [vmem:[#allocation8 + $0xb0] sm:$0xff]
        %v1192 = vld [vmem:[#allocation8 + $0xb8] sm:$0xff]
        %v1193 = vld [vmem:[#allocation8 + $0xc0] sm:$0xff]
        %v1194 = vld [vmem:[#allocation8 + $0xc8] sm:$0xff]
        %v1195 = vld [vmem:[#allocation8 + $0xd0] sm:$0xff]
        %v1196 = vld [vmem:[#allocation8 + $0xd8] sm:$0xff]
        %v1197 = vld [vmem:[#allocation8 + $0xe0] sm:$0xff]
        %v1198 = vld [vmem:[#allocation8 + $0xe8] sm:$0xff]
        %v1199 = vld [vmem:[#allocation8 + $0xf0] sm:$0xff]
        %v1200 = vld [vmem:[#allocation8 + $0xf8] sm:$0xff]
        %v1201 = vld [vmem:[#allocation8 + $0x100] sm:$0xff]
        %v1202 = vld [vmem:[#allocation8 + $0x108] sm:$0xff]
        %v1203 = vld [vmem:[#allocation8 + $0x110] sm:$0xff]
        %v1204 = vld [vmem:[#allocation8 + $0x118] sm:$0xff]
        %v1205 = vld [vmem:[#allocation8 + $0x120] sm:$0xff]
        %v1206 = vld [vmem:[#allocation8 + $0x128] sm:$0xff]
        %v1207 = vld [vmem:[#allocation8 + $0x130] sm:$0xff]
        %v1208 = vld [vmem:[#allocation8 + $0x138] sm:$0xff]
        %v1209 = vld [vmem:[#allocation8 + $0x140] sm:$0xff]
        %v1210 = vld [vmem:[#allocation8 + $0x148] sm:$0xff]
        %v1211 = vld [vmem:[#allocation8 + $0x150] sm:$0xff]
        %v1212 = vld [vmem:[#allocation8 + $0x158] sm:$0xff]
        %v1213 = vld [vmem:[#allocation8 + $0x160] sm:$0xff]
        %v1214 = vld [vmem:[#allocation8 + $0x168] sm:$0xff]
        %v1215 = vld [vmem:[#allocation8 + $0x170] sm:$0xff]
        %v1216 = vld [vmem:[#allocation8 + $0x178] sm:$0xff]
        %v1217 = vld [vmem:[#allocation8 + $0x180] sm:$0xff]
        %v1218 = vld [vmem:[#allocation8 + $0x188] sm:$0xff]
        %v1219 = vld [vmem:[#allocation8 + $0x190] sm:$0xff]
        %v1220 = vld [vmem:[#allocation8 + $0x198] sm:$0xff]
        %v1221 = vld [vmem:[#allocation8 + $0x1a0] sm:$0xff]
        %v1222 = vld [vmem:[#allocation8 + $0x1a8] sm:$0xff]
        %v1223 = vld [vmem:[#allocation8 + $0x1b0] sm:$0xff]
        %v1224 = vld [vmem:[#allocation8 + $0x1b8] sm:$0xff]
        %v1225 = vld [vmem:[#allocation8 + $0x1c0] sm:$0xff]
        %v1226 = vld [vmem:[#allocation8 + $0x1c8] sm:$0xff]
        %v1227 = vld [vmem:[#allocation8 + $0x1d0] sm:$0xff]
        %v1228 = vld [vmem:[#allocation8 + $0x1d8] sm:$0xff]
        %v1229 = vld [vmem:[#allocation8 + $0x1e0] sm:$0xff]
        %v1230 = vld [vmem:[#allocation8 + $0x1e8] sm:$0xff]
        %v1231 = vld [vmem:[#allocation8 + $0x1f0] sm:$0xff]
        %v1232 = vld [vmem:[#allocation8 + $0x1f8] sm:$0xff]
        %1233 = vmatprep.subr.mxu0 %v1170
        %1234 = vmatpush1.msra.mxu0 %v1169
        %1235 = vmatprep.subr.mxu0 %v1174
        %1236 = vmatpush1.msra.mxu0 %v1173
        %1237 = vmatprep.subr.mxu0 %v1178
        %1238 = vmatpush1.msra.mxu0 %v1177
        %1239 = vmatprep.subr.mxu0 %v1182
        %1240 = vmatpush1.msra.mxu0 %v1181
        %1241 = vmatprep.subr.mxu0 %v1186
        %1242 = vmatpush1.msra.mxu0 %v1185
        %1243 = vmatprep.subr.mxu0 %v1190
        %1244 = vmatpush1.msra.mxu0 %v1189
        %1245 = vmatprep.subr.mxu0 %v1194
        %1246 = vmatpush1.msra.mxu0 %v1193
        %1247 = vmatprep.subr.mxu0 %v1198
        %1248 = vmatpush1.msra.mxu0 %v1197
        %1249 = vmatprep.subr.mxu0 %v1202
        %1250 = vmatpush1.msra.mxu0 %v1201
        %1251 = vmatprep.subr.mxu0 %v1206
        %1252 = vmatpush1.msra.mxu0 %v1205
        %1253 = vmatprep.subr.mxu0 %v1210
        %1254 = vmatpush1.msra.mxu0 %v1209
        %1255 = vmatprep.subr.mxu0 %v1214
        %1256 = vmatpush1.msra.mxu0 %v1213
        %1257 = vmatprep.subr.mxu0 %v1218
        %1258 = vmatpush1.msra.mxu0 %v1217
        %1259 = vmatprep.subr.mxu0 %v1222
        %1260 = vmatpush1.msra.mxu0 %v1221
        %1261 = vmatprep.subr.mxu0 %v1226
        %1262 = vmatpush1.msra.mxu0 %v1225
        %1263 = vmatprep.subr.mxu0 %v1230
        %1264 = vmatpush1.msra.mxu0 %v1229
        %1265 = vmatprep.subr.mxu0 0.0
        %1266 = vmatpush1.msra.mxu0 0.0
        %1267 = vmatprep.subr.mxu0 0.0
        %1268 = vmatpush1.msra.mxu0 0.0
        %1269 = vmatprep.subr.mxu0 0.0
        %1270 = vmatpush1.msra.mxu0 0.0
        %1271 = vmatprep.subr.mxu0 0.0
        %1272 = vmatpush1.msra.mxu0 0.0
        %1273 = vmatprep.subr.mxu0 0.0
        %1274 = vmatpush1.msra.mxu0 0.0
        %1275 = vmatprep.subr.mxu0 0.0
        %1276 = vmatpush1.msra.mxu0 0.0
        %1277 = vmatprep.subr.mxu0 0.0
        %1278 = vmatpush1.msra.mxu0 0.0
        %1279 = vmatprep.subr.mxu0 0.0
        %1280 = vmatpush1.msra.mxu0 0.0
        %1281 = vmatprep.subr.mxu0 0.0
        %1282 = vmatpush1.msra.mxu0 0.0
        %1283 = vmatprep.subr.mxu0 0.0
        %1284 = vmatpush1.msra.mxu0 0.0
        %1285 = vmatprep.subr.mxu0 0.0
        %1286 = vmatpush1.msra.mxu0 0.0
        %1287 = vmatprep.subr.mxu0 0.0
        %1288 = vmatpush1.msra.mxu0 0.0
        %1289 = vmatprep.subr.mxu0 0.0
        %1290 = vmatpush1.msra.mxu0 0.0
        %1291 = vmatprep.subr.mxu0 0.0
        %1292 = vmatpush1.msra.mxu0 0.0
        %1293 = vmatprep.subr.mxu0 0.0
        %1294 = vmatpush1.msra.mxu0 0.0
        %1295 = vmatprep.subr.mxu0 0.0
        %1296 = vmatpush1.msra.mxu0 0.0
        %1297 = vmatprep.mubr.f32.mxu0 0.0
        %1298 = vmatmul.mubr.f32.gmra.mrb[0].mxu0 %v1162
        %v1299 = vpop.f32.mrb[0].mxu0
        %v1300 = vadd.f32 0.0, %v1299
        %v1301 = vpop.f32.mrb[0].mxu0
        %v1302 = vadd.f32 0.0, %v1301
        %1303 = vdwg.mxu0
        %1304 = vmatprep.subr.mxu0 %v1172
        %1305 = vmatpush1.msra.mxu0 %v1171
        %1306 = vmatprep.subr.mxu0 %v1176
        %1307 = vmatpush1.msra.mxu0 %v1175
        %1308 = vmatprep.subr.mxu0 %v1180
        %1309 = vmatpush1.msra.mxu0 %v1179
        %1310 = vmatprep.subr.mxu0 %v1184
        %1311 = vmatpush1.msra.mxu0 %v1183
        %1312 = vmatprep.subr.mxu0 %v1188
        %1313 = vmatpush1.msra.mxu0 %v1187
        %1314 = vmatprep.subr.mxu0 %v1192
        %1315 = vmatpush1.msra.mxu0 %v1191
        %1316 = vmatprep.subr.mxu0 %v1196
        %1317 = vmatpush1.msra.mxu0 %v1195
        %1318 = vmatprep.subr.mxu0 %v1200
        %1319 = vmatpush1.msra.mxu0 %v1199
        %1320 = vmatprep.subr.mxu0 %v1204
        %1321 = vmatpush1.msra.mxu0 %v1203
        %1322 = vmatprep.subr.mxu0 %v1208
        %1323 = vmatpush1.msra.mxu0 %v1207
        %1324 = vmatprep.subr.mxu0 %v1212
        %1325 = vmatpush1.msra.mxu0 %v1211
        %1326 = vmatprep.subr.mxu0 %v1216
        %1327 = vmatpush1.msra.mxu0 %v1215
        %1328 = vmatprep.subr.mxu0 %v1220
        %1329 = vmatpush1.msra.mxu0 %v1219
        %1330 = vmatprep.subr.mxu0 %v1224
        %1331 = vmatpush1.msra.mxu0 %v1223
        %1332 = vmatprep.subr.mxu0 %v1228
        %1333 = vmatpush1.msra.mxu0 %v1227
        %1334 = vmatprep.subr.mxu0 %v1232
        %1335 = vmatpush1.msra.mxu0 %v1231
        %1336 = vmatprep.subr.mxu0 0.0
        %1337 = vmatpush1.msra.mxu0 0.0
        %1338 = vmatprep.subr.mxu0 0.0
        %1339 = vmatpush1.msra.mxu0 0.0
        %1340 = vmatprep.subr.mxu0 0.0
        %1341 = vmatpush1.msra.mxu0 0.0
        %1342 = vmatprep.subr.mxu0 0.0
        %1343 = vmatpush1.msra.mxu0 0.0
        %1344 = vmatprep.subr.mxu0 0.0
        %1345 = vmatpush1.msra.mxu0 0.0
        %1346 = vmatprep.subr.mxu0 0.0
        %1347 = vmatpush1.msra.mxu0 0.0
        %1348 = vmatprep.subr.mxu0 0.0
        %1349 = vmatpush1.msra.mxu0 0.0
        %1350 = vmatprep.subr.mxu0 0.0
        %1351 = vmatpush1.msra.mxu0 0.0
        %1352 = vmatprep.subr.mxu0 0.0
        %1353 = vmatpush1.msra.mxu0 0.0
        %1354 = vmatprep.subr.mxu0 0.0
        %1355 = vmatpush1.msra.mxu0 0.0
        %1356 = vmatprep.subr.mxu0 0.0
        %1357 = vmatpush1.msra.mxu0 0.0
        %1358 = vmatprep.subr.mxu0 0.0
        %1359 = vmatpush1.msra.mxu0 0.0
        %1360 = vmatprep.subr.mxu0 0.0
        %1361 = vmatpush1.msra.mxu0 0.0
        %1362 = vmatprep.subr.mxu0 0.0
        %1363 = vmatpush1.msra.mxu0 0.0
        %1364 = vmatprep.subr.mxu0 0.0
        %1365 = vmatpush1.msra.mxu0 0.0
        %1366 = vmatprep.subr.mxu0 0.0
        %1367 = vmatpush1.msra.mxu0 0.0
        %1368 = vmatprep.mubr.f32.mxu0 0.0
        %1369 = vmatmul.mubr.f32.gmra.mrb[0].mxu0 %v1162
        %v1370 = vpop.f32.mrb[0].mxu0
        %v1371 = vadd.f32 0.0, %v1370
        %v1372 = vpop.f32.mrb[0].mxu0
        %v1373 = vadd.f32 0.0, %v1372
        %1374 = vdwg.mxu0
        %v1375 = vadd.f32 %v1165, %v1300
        %v1376 = vadd.f32 %v1166, %v1302
        %v1377 = vadd.f32 %v1167, %v1371
        %v1378 = vadd.f32 %v1168, %v1373
        %v1379 = vxor.u32 %v1375, 2147483648
        %v1380 = vmul.f32 %v1379, 1.442695
        %v1381 = vpow.pop %v1380
        %v1382 = vadd.f32 %v1381, 1.0
        %v1383 = vrcp.pop %v1382
        %v1384 = vmul.f32 1.0, %v1383
        %v1385 = vxor.u32 %v1376, 2147483648
        %v1386 = vmul.f32 %v1385, 1.442695
        %v1387 = vpow.pop %v1386
        %v1388 = vadd.f32 %v1387, 1.0
        %v1389 = vrcp.pop %v1388
        %v1390 = vmul.f32 1.0, %v1389
        %v1391 = vtanh.pop %v1377
        %v1392 = vxor.u32 %v1378, 2147483648
        %v1393 = vmul.f32 %v1392, 1.442695
        %v1394 = vpow.pop %v1393
        %v1395 = vadd.f32 %v1394, 1.0
        %v1396 = vrcp.pop %v1395
        %v1397 = vmul.f32 1.0, %v1396
        %v1398 = vmul.f32 %v1390, %v1163
        %v1399 = vmul.f32 %v1384, %v1391
        %v1400 = vadd.f32 %v1398, %v1399
        %v1401 = vtanh.pop %v1400
        %v1402 = vmul.f32 %v1397, %v1401
        %s1403 = scalar_lea.vmem %s382, 24 [#allocation10]
        %1404 = vst [vmem:[%s1403] sm:$0xff] %v1402
        %s1405 = scalar_lea.vmem %s346, 32 [#allocation7]
        %v1406 = vld [vmem:[%s1405] sm:$0xff]
        %1408 = vset.pattern.permute.xlu0 0
        %1409 = vperm.xlu0 %1408, %v1406
        %v1410 = vpop.permute.xlu0 %1409
        %v1412 = vmul.f32 %v1402, %v1410
        %v1413 = vmul.f32 %v1400, %v1410
        %s1414 = scalar_lea.vmem %s338, 128 [#allocation4]
        %v1415 = vld [vmem:[%s1414] sm:$0xff]
        %v1416 = vld [vmem:[%s1414 + $0x8] sm:$0xff]
        %v1417 = vld [vmem:[%s1414 + $0x10] sm:$0xff]
        %v1418 = vld [vmem:[%s1414 + $0x18] sm:$0xff]
        %v1419 = vld [vmem:[#allocation8] sm:$0xff]
        %v1420 = vld [vmem:[#allocation8 + $0x8] sm:$0xff]
        %v1421 = vld [vmem:[#allocation8 + $0x10] sm:$0xff]
        %v1422 = vld [vmem:[#allocation8 + $0x18] sm:$0xff]
        %v1423 = vld [vmem:[#allocation8 + $0x20] sm:$0xff]
        %v1424 = vld [vmem:[#allocation8 + $0x28] sm:$0xff]
        %v1425 = vld [vmem:[#allocation8 + $0x30] sm:$0xff]
        %v1426 = vld [vmem:[#allocation8 + $0x38] sm:$0xff]
        %v1427 = vld [vmem:[#allocation8 + $0x40] sm:$0xff]
        %v1428 = vld [vmem:[#allocation8 + $0x48] sm:$0xff]
        %v1429 = vld [vmem:[#allocation8 + $0x50] sm:$0xff]
        %v1430 = vld [vmem:[#allocation8 + $0x58] sm:$0xff]
        %v1431 = vld [vmem:[#allocation8 + $0x60] sm:$0xff]
        %v1432 = vld [vmem:[#allocation8 + $0x68] sm:$0xff]
        %v1433 = vld [vmem:[#allocation8 + $0x70] sm:$0xff]
        %v1434 = vld [vmem:[#allocation8 + $0x78] sm:$0xff]
        %v1435 = vld [vmem:[#allocation8 + $0x80] sm:$0xff]
        %v1436 = vld [vmem:[#allocation8 + $0x88] sm:$0xff]
        %v1437 = vld [vmem:[#allocation8 + $0x90] sm:$0xff]
        %v1438 = vld [vmem:[#allocation8 + $0x98] sm:$0xff]
        %v1439 = vld [vmem:[#allocation8 + $0xa0] sm:$0xff]
        %v1440 = vld [vmem:[#allocation8 + $0xa8] sm:$0xff]
        %v1441 = vld [vmem:[#allocation8 + $0xb0] sm:$0xff]
        %v1442 = vld [vmem:[#allocation8 + $0xb8] sm:$0xff]
        %v1443 = vld [vmem:[#allocation8 + $0xc0] sm:$0xff]
        %v1444 = vld [vmem:[#allocation8 + $0xc8] sm:$0xff]
        %v1445 = vld [vmem:[#allocation8 + $0xd0] sm:$0xff]
        %v1446 = vld [vmem:[#allocation8 + $0xd8] sm:$0xff]
        %v1447 = vld [vmem:[#allocation8 + $0xe0] sm:$0xff]
        %v1448 = vld [vmem:[#allocation8 + $0xe8] sm:$0xff]
        %v1449 = vld [vmem:[#allocation8 + $0xf0] sm:$0xff]
        %v1450 = vld [vmem:[#allocation8 + $0xf8] sm:$0xff]
        %v1451 = vld [vmem:[#allocation8 + $0x100] sm:$0xff]
        %v1452 = vld [vmem:[#allocation8 + $0x108] sm:$0xff]
        %v1453 = vld [vmem:[#allocation8 + $0x110] sm:$0xff]
        %v1454 = vld [vmem:[#allocation8 + $0x118] sm:$0xff]
        %v1455 = vld [vmem:[#allocation8 + $0x120] sm:$0xff]
        %v1456 = vld [vmem:[#allocation8 + $0x128] sm:$0xff]
        %v1457 = vld [vmem:[#allocation8 + $0x130] sm:$0xff]
        %v1458 = vld [vmem:[#allocation8 + $0x138] sm:$0xff]
        %v1459 = vld [vmem:[#allocation8 + $0x140] sm:$0xff]
        %v1460 = vld [vmem:[#allocation8 + $0x148] sm:$0xff]
        %v1461 = vld [vmem:[#allocation8 + $0x150] sm:$0xff]
        %v1462 = vld [vmem:[#allocation8 + $0x158] sm:$0xff]
        %v1463 = vld [vmem:[#allocation8 + $0x160] sm:$0xff]
        %v1464 = vld [vmem:[#allocation8 + $0x168] sm:$0xff]
        %v1465 = vld [vmem:[#allocation8 + $0x170] sm:$0xff]
        %v1466 = vld [vmem:[#allocation8 + $0x178] sm:$0xff]
        %v1467 = vld [vmem:[#allocation8 + $0x180] sm:$0xff]
        %v1468 = vld [vmem:[#allocation8 + $0x188] sm:$0xff]
        %v1469 = vld [vmem:[#allocation8 + $0x190] sm:$0xff]
        %v1470 = vld [vmem:[#allocation8 + $0x198] sm:$0xff]
        %v1471 = vld [vmem:[#allocation8 + $0x1a0] sm:$0xff]
        %v1472 = vld [vmem:[#allocation8 + $0x1a8] sm:$0xff]
        %v1473 = vld [vmem:[#allocation8 + $0x1b0] sm:$0xff]
        %v1474 = vld [vmem:[#allocation8 + $0x1b8] sm:$0xff]
        %v1475 = vld [vmem:[#allocation8 + $0x1c0] sm:$0xff]
        %v1476 = vld [vmem:[#allocation8 + $0x1c8] sm:$0xff]
        %v1477 = vld [vmem:[#allocation8 + $0x1d0] sm:$0xff]
        %v1478 = vld [vmem:[#allocation8 + $0x1d8] sm:$0xff]
        %v1479 = vld [vmem:[#allocation8 + $0x1e0] sm:$0xff]
        %v1480 = vld [vmem:[#allocation8 + $0x1e8] sm:$0xff]
        %v1481 = vld [vmem:[#allocation8 + $0x1f0] sm:$0xff]
        %v1482 = vld [vmem:[#allocation8 + $0x1f8] sm:$0xff]
        %1483 = vmatprep.subr.mxu0 %v1420
        %1484 = vmatpush1.msra.mxu0 %v1419
        %1485 = vmatprep.subr.mxu0 %v1424
        %1486 = vmatpush1.msra.mxu0 %v1423
        %1487 = vmatprep.subr.mxu0 %v1428
        %1488 = vmatpush1.msra.mxu0 %v1427
        %1489 = vmatprep.subr.mxu0 %v1432
        %1490 = vmatpush1.msra.mxu0 %v1431
        %1491 = vmatprep.subr.mxu0 %v1436
        %1492 = vmatpush1.msra.mxu0 %v1435
        %1493 = vmatprep.subr.mxu0 %v1440
        %1494 = vmatpush1.msra.mxu0 %v1439
        %1495 = vmatprep.subr.mxu0 %v1444
        %1496 = vmatpush1.msra.mxu0 %v1443
        %1497 = vmatprep.subr.mxu0 %v1448
        %1498 = vmatpush1.msra.mxu0 %v1447
        %1499 = vmatprep.subr.mxu0 %v1452
        %1500 = vmatpush1.msra.mxu0 %v1451
        %1501 = vmatprep.subr.mxu0 %v1456
        %1502 = vmatpush1.msra.mxu0 %v1455
        %1503 = vmatprep.subr.mxu0 %v1460
        %1504 = vmatpush1.msra.mxu0 %v1459
        %1505 = vmatprep.subr.mxu0 %v1464
        %1506 = vmatpush1.msra.mxu0 %v1463
        %1507 = vmatprep.subr.mxu0 %v1468
        %1508 = vmatpush1.msra.mxu0 %v1467
        %1509 = vmatprep.subr.mxu0 %v1472
        %1510 = vmatpush1.msra.mxu0 %v1471
        %1511 = vmatprep.subr.mxu0 %v1476
        %1512 = vmatpush1.msra.mxu0 %v1475
        %1513 = vmatprep.subr.mxu0 %v1480
        %1514 = vmatpush1.msra.mxu0 %v1479
        %1515 = vmatprep.subr.mxu0 0.0
        %1516 = vmatpush1.msra.mxu0 0.0
        %1517 = vmatprep.subr.mxu0 0.0
        %1518 = vmatpush1.msra.mxu0 0.0
        %1519 = vmatprep.subr.mxu0 0.0
        %1520 = vmatpush1.msra.mxu0 0.0
        %1521 = vmatprep.subr.mxu0 0.0
        %1522 = vmatpush1.msra.mxu0 0.0
        %1523 = vmatprep.subr.mxu0 0.0
        %1524 = vmatpush1.msra.mxu0 0.0
        %1525 = vmatprep.subr.mxu0 0.0
        %1526 = vmatpush1.msra.mxu0 0.0
        %1527 = vmatprep.subr.mxu0 0.0
        %1528 = vmatpush1.msra.mxu0 0.0
        %1529 = vmatprep.subr.mxu0 0.0
        %1530 = vmatpush1.msra.mxu0 0.0
        %1531 = vmatprep.subr.mxu0 0.0
        %1532 = vmatpush1.msra.mxu0 0.0
        %1533 = vmatprep.subr.mxu0 0.0
        %1534 = vmatpush1.msra.mxu0 0.0
        %1535 = vmatprep.subr.mxu0 0.0
        %1536 = vmatpush1.msra.mxu0 0.0
        %1537 = vmatprep.subr.mxu0 0.0
        %1538 = vmatpush1.msra.mxu0 0.0
        %1539 = vmatprep.subr.mxu0 0.0
        %1540 = vmatpush1.msra.mxu0 0.0
        %1541 = vmatprep.subr.mxu0 0.0
        %1542 = vmatpush1.msra.mxu0 0.0
        %1543 = vmatprep.subr.mxu0 0.0
        %1544 = vmatpush1.msra.mxu0 0.0
        %1545 = vmatprep.subr.mxu0 0.0
        %1546 = vmatpush1.msra.mxu0 0.0
        %1547 = vmatprep.mubr.f32.mxu0 0.0
        %1548 = vmatmul.mubr.f32.gmra.mrb[0].mxu0 %v1412
        %v1549 = vpop.f32.mrb[0].mxu0
        %v1550 = vadd.f32 0.0, %v1549
        %v1551 = vpop.f32.mrb[0].mxu0
        %v1552 = vadd.f32 0.0, %v1551
        %1553 = vdwg.mxu0
        %1554 = vmatprep.subr.mxu0 %v1422
        %1555 = vmatpush1.msra.mxu0 %v1421
        %1556 = vmatprep.subr.mxu0 %v1426
        %1557 = vmatpush1.msra.mxu0 %v1425
        %1558 = vmatprep.subr.mxu0 %v1430
        %1559 = vmatpush1.msra.mxu0 %v1429
        %1560 = vmatprep.subr.mxu0 %v1434
        %1561 = vmatpush1.msra.mxu0 %v1433
        %1562 = vmatprep.subr.mxu0 %v1438
        %1563 = vmatpush1.msra.mxu0 %v1437
        %1564 = vmatprep.subr.mxu0 %v1442
        %1565 = vmatpush1.msra.mxu0 %v1441
        %1566 = vmatprep.subr.mxu0 %v1446
        %1567 = vmatpush1.msra.mxu0 %v1445
        %1568 = vmatprep.subr.mxu0 %v1450
        %1569 = vmatpush1.msra.mxu0 %v1449
        %1570 = vmatprep.subr.mxu0 %v1454
        %1571 = vmatpush1.msra.mxu0 %v1453
        %1572 = vmatprep.subr.mxu0 %v1458
        %1573 = vmatpush1.msra.mxu0 %v1457
        %1574 = vmatprep.subr.mxu0 %v1462
        %1575 = vmatpush1.msra.mxu0 %v1461
        %1576 = vmatprep.subr.mxu0 %v1466
        %1577 = vmatpush1.msra.mxu0 %v1465
        %1578 = vmatprep.subr.mxu0 %v1470
        %1579 = vmatpush1.msra.mxu0 %v1469
        %1580 = vmatprep.subr.mxu0 %v1474
        %1581 = vmatpush1.msra.mxu0 %v1473
        %1582 = vmatprep.subr.mxu0 %v1478
        %1583 = vmatpush1.msra.mxu0 %v1477
        %1584 = vmatprep.subr.mxu0 %v1482
        %1585 = vmatpush1.msra.mxu0 %v1481
        %1586 = vmatprep.subr.mxu0 0.0
        %1587 = vmatpush1.msra.mxu0 0.0
        %1588 = vmatprep.subr.mxu0 0.0
        %1589 = vmatpush1.msra.mxu0 0.0
        %1590 = vmatprep.subr.mxu0 0.0
        %1591 = vmatpush1.msra.mxu0 0.0
        %1592 = vmatprep.subr.mxu0 0.0
        %1593 = vmatpush1.msra.mxu0 0.0
        %1594 = vmatprep.subr.mxu0 0.0
        %1595 = vmatpush1.msra.mxu0 0.0
        %1596 = vmatprep.subr.mxu0 0.0
        %1597 = vmatpush1.msra.mxu0 0.0
        %1598 = vmatprep.subr.mxu0 0.0
        %1599 = vmatpush1.msra.mxu0 0.0
        %1600 = vmatprep.subr.mxu0 0.0
        %1601 = vmatpush1.msra.mxu0 0.0
        %1602 = vmatprep.subr.mxu0 0.0
        %1603 = vmatpush1.msra.mxu0 0.0
        %1604 = vmatprep.subr.mxu0 0.0
        %1605 = vmatpush1.msra.mxu0 0.0
        %1606 = vmatprep.subr.mxu0 0.0
        %1607 = vmatpush1.msra.mxu0 0.0
        %1608 = vmatprep.subr.mxu0 0.0
        %1609 = vmatpush1.msra.mxu0 0.0
        %1610 = vmatprep.subr.mxu0 0.0
        %1611 = vmatpush1.msra.mxu0 0.0
        %1612 = vmatprep.subr.mxu0 0.0
        %1613 = vmatpush1.msra.mxu0 0.0
        %1614 = vmatprep.subr.mxu0 0.0
        %1615 = vmatpush1.msra.mxu0 0.0
        %1616 = vmatprep.subr.mxu0 0.0
        %1617 = vmatpush1.msra.mxu0 0.0
        %1618 = vmatprep.mubr.f32.mxu0 0.0
        %1619 = vmatmul.mubr.f32.gmra.mrb[0].mxu0 %v1412
        %v1620 = vpop.f32.mrb[0].mxu0
        %v1621 = vadd.f32 0.0, %v1620
        %v1622 = vpop.f32.mrb[0].mxu0
        %v1623 = vadd.f32 0.0, %v1622
        %1624 = vdwg.mxu0
        %v1625 = vadd.f32 %v1415, %v1550
        %v1626 = vadd.f32 %v1416, %v1552
        %v1627 = vadd.f32 %v1417, %v1621
        %v1628 = vadd.f32 %v1418, %v1623
        %v1629 = vxor.u32 %v1625, 2147483648
        %v1630 = vmul.f32 %v1629, 1.442695
        %v1631 = vpow.pop %v1630
        %v1632 = vadd.f32 %v1631, 1.0
        %v1633 = vrcp.pop %v1632
        %v1634 = vmul.f32 1.0, %v1633
        %v1635 = vxor.u32 %v1626, 2147483648
        %v1636 = vmul.f32 %v1635, 1.442695
        %v1637 = vpow.pop %v1636
        %v1638 = vadd.f32 %v1637, 1.0
        %v1639 = vrcp.pop %v1638
        %v1640 = vmul.f32 1.0, %v1639
        %v1641 = vtanh.pop %v1627
        %v1642 = vxor.u32 %v1628, 2147483648
        %v1643 = vmul.f32 %v1642, 1.442695
        %v1644 = vpow.pop %v1643
        %v1645 = vadd.f32 %v1644, 1.0
        %v1646 = vrcp.pop %v1645
        %v1647 = vmul.f32 1.0, %v1646
        %v1648 = vmul.f32 %v1640, %v1413
        %v1649 = vmul.f32 %v1634, %v1641
        %v1650 = vadd.f32 %v1648, %v1649
        %v1651 = vtanh.pop %v1650
        %v1652 = vmul.f32 %v1647, %v1651
        %s1653 = scalar_lea.vmem %s382, 32 [#allocation10]
        %1654 = vst [vmem:[%s1653] sm:$0xff] %v1652
        %s1655 = scalar_lea.vmem %s346, 40 [#allocation7]
        %v1656 = vld [vmem:[%s1655] sm:$0xff]
        %1658 = vset.pattern.permute.xlu0 0
        %1659 = vperm.xlu0 %1658, %v1656
        %v1660 = vpop.permute.xlu0 %1659
        %v1662 = vmul.f32 %v1652, %v1660
        %v1663 = vmul.f32 %v1650, %v1660
        %s1664 = scalar_lea.vmem %s338, 160 [#allocation4]
        %v1665 = vld [vmem:[%s1664] sm:$0xff]
        %v1666 = vld [vmem:[%s1664 + $0x8] sm:$0xff]
        %v1667 = vld [vmem:[%s1664 + $0x10] sm:$0xff]
        %v1668 = vld [vmem:[%s1664 + $0x18] sm:$0xff]
        %v1669 = vld [vmem:[#allocation8] sm:$0xff]
        %v1670 = vld [vmem:[#allocation8 + $0x8] sm:$0xff]
        %v1671 = vld [vmem:[#allocation8 + $0x10] sm:$0xff]
        %v1672 = vld [vmem:[#allocation8 + $0x18] sm:$0xff]
        %v1673 = vld [vmem:[#allocation8 + $0x20] sm:$0xff]
        %v1674 = vld [vmem:[#allocation8 + $0x28] sm:$0xff]
        %v1675 = vld [vmem:[#allocation8 + $0x30] sm:$0xff]
        %v1676 = vld [vmem:[#allocation8 + $0x38] sm:$0xff]
        %v1677 = vld [vmem:[#allocation8 + $0x40] sm:$0xff]
        %v1678 = vld [vmem:[#allocation8 + $0x48] sm:$0xff]
        %v1679 = vld [vmem:[#allocation8 + $0x50] sm:$0xff]
        %v1680 = vld [vmem:[#allocation8 + $0x58] sm:$0xff]
        %v1681 = vld [vmem:[#allocation8 + $0x60] sm:$0xff]
        %v1682 = vld [vmem:[#allocation8 + $0x68] sm:$0xff]
        %v1683 = vld [vmem:[#allocation8 + $0x70] sm:$0xff]
        %v1684 = vld [vmem:[#allocation8 + $0x78] sm:$0xff]
        %v1685 = vld [vmem:[#allocation8 + $0x80] sm:$0xff]
        %v1686 = vld [vmem:[#allocation8 + $0x88] sm:$0xff]
        %v1687 = vld [vmem:[#allocation8 + $0x90] sm:$0xff]
        %v1688 = vld [vmem:[#allocation8 + $0x98] sm:$0xff]
        %v1689 = vld [vmem:[#allocation8 + $0xa0] sm:$0xff]
        %v1690 = vld [vmem:[#allocation8 + $0xa8] sm:$0xff]
        %v1691 = vld [vmem:[#allocation8 + $0xb0] sm:$0xff]
        %v1692 = vld [vmem:[#allocation8 + $0xb8] sm:$0xff]
        %v1693 = vld [vmem:[#allocation8 + $0xc0] sm:$0xff]
        %v1694 = vld [vmem:[#allocation8 + $0xc8] sm:$0xff]
        %v1695 = vld [vmem:[#allocation8 + $0xd0] sm:$0xff]
        %v1696 = vld [vmem:[#allocation8 + $0xd8] sm:$0xff]
        %v1697 = vld [vmem:[#allocation8 + $0xe0] sm:$0xff]
        %v1698 = vld [vmem:[#allocation8 + $0xe8] sm:$0xff]
        %v1699 = vld [vmem:[#allocation8 + $0xf0] sm:$0xff]
        %v1700 = vld [vmem:[#allocation8 + $0xf8] sm:$0xff]
        %v1701 = vld [vmem:[#allocation8 + $0x100] sm:$0xff]
        %v1702 = vld [vmem:[#allocation8 + $0x108] sm:$0xff]
        %v1703 = vld [vmem:[#allocation8 + $0x110] sm:$0xff]
        %v1704 = vld [vmem:[#allocation8 + $0x118] sm:$0xff]
        %v1705 = vld [vmem:[#allocation8 + $0x120] sm:$0xff]
        %v1706 = vld [vmem:[#allocation8 + $0x128] sm:$0xff]
        %v1707 = vld [vmem:[#allocation8 + $0x130] sm:$0xff]
        %v1708 = vld [vmem:[#allocation8 + $0x138] sm:$0xff]
        %v1709 = vld [vmem:[#allocation8 + $0x140] sm:$0xff]
        %v1710 = vld [vmem:[#allocation8 + $0x148] sm:$0xff]
        %v1711 = vld [vmem:[#allocation8 + $0x150] sm:$0xff]
        %v1712 = vld [vmem:[#allocation8 + $0x158] sm:$0xff]
        %v1713 = vld [vmem:[#allocation8 + $0x160] sm:$0xff]
        %v1714 = vld [vmem:[#allocation8 + $0x168] sm:$0xff]
        %v1715 = vld [vmem:[#allocation8 + $0x170] sm:$0xff]
        %v1716 = vld [vmem:[#allocation8 + $0x178] sm:$0xff]
        %v1717 = vld [vmem:[#allocation8 + $0x180] sm:$0xff]
        %v1718 = vld [vmem:[#allocation8 + $0x188] sm:$0xff]
        %v1719 = vld [vmem:[#allocation8 + $0x190] sm:$0xff]
        %v1720 = vld [vmem:[#allocation8 + $0x198] sm:$0xff]
        %v1721 = vld [vmem:[#allocation8 + $0x1a0] sm:$0xff]
        %v1722 = vld [vmem:[#allocation8 + $0x1a8] sm:$0xff]
        %v1723 = vld [vmem:[#allocation8 + $0x1b0] sm:$0xff]
        %v1724 = vld [vmem:[#allocation8 + $0x1b8] sm:$0xff]
        %v1725 = vld [vmem:[#allocation8 + $0x1c0] sm:$0xff]
        %v1726 = vld [vmem:[#allocation8 + $0x1c8] sm:$0xff]
        %v1727 = vld [vmem:[#allocation8 + $0x1d0] sm:$0xff]
        %v1728 = vld [vmem:[#allocation8 + $0x1d8] sm:$0xff]
        %v1729 = vld [vmem:[#allocation8 + $0x1e0] sm:$0xff]
        %v1730 = vld [vmem:[#allocation8 + $0x1e8] sm:$0xff]
        %v1731 = vld [vmem:[#allocation8 + $0x1f0] sm:$0xff]
        %v1732 = vld [vmem:[#allocation8 + $0x1f8] sm:$0xff]
        %1733 = vmatprep.subr.mxu0 %v1670
        %1734 = vmatpush1.msra.mxu0 %v1669
        %1735 = vmatprep.subr.mxu0 %v1674
        %1736 = vmatpush1.msra.mxu0 %v1673
        %1737 = vmatprep.subr.mxu0 %v1678
        %1738 = vmatpush1.msra.mxu0 %v1677
        %1739 = vmatprep.subr.mxu0 %v1682
        %1740 = vmatpush1.msra.mxu0 %v1681
        %1741 = vmatprep.subr.mxu0 %v1686
        %1742 = vmatpush1.msra.mxu0 %v1685
        %1743 = vmatprep.subr.mxu0 %v1690
        %1744 = vmatpush1.msra.mxu0 %v1689
        %1745 = vmatprep.subr.mxu0 %v1694
        %1746 = vmatpush1.msra.mxu0 %v1693
        %1747 = vmatprep.subr.mxu0 %v1698
        %1748 = vmatpush1.msra.mxu0 %v1697
        %1749 = vmatprep.subr.mxu0 %v1702
        %1750 = vmatpush1.msra.mxu0 %v1701
        %1751 = vmatprep.subr.mxu0 %v1706
        %1752 = vmatpush1.msra.mxu0 %v1705
        %1753 = vmatprep.subr.mxu0 %v1710
        %1754 = vmatpush1.msra.mxu0 %v1709
        %1755 = vmatprep.subr.mxu0 %v1714
        %1756 = vmatpush1.msra.mxu0 %v1713
        %1757 = vmatprep.subr.mxu0 %v1718
        %1758 = vmatpush1.msra.mxu0 %v1717
        %1759 = vmatprep.subr.mxu0 %v1722
        %1760 = vmatpush1.msra.mxu0 %v1721
        %1761 = vmatprep.subr.mxu0 %v1726
        %1762 = vmatpush1.msra.mxu0 %v1725
        %1763 = vmatprep.subr.mxu0 %v1730
        %1764 = vmatpush1.msra.mxu0 %v1729
        %1765 = vmatprep.subr.mxu0 0.0
        %1766 = vmatpush1.msra.mxu0 0.0
        %1767 = vmatprep.subr.mxu0 0.0
        %1768 = vmatpush1.msra.mxu0 0.0
        %1769 = vmatprep.subr.mxu0 0.0
        %1770 = vmatpush1.msra.mxu0 0.0
        %1771 = vmatprep.subr.mxu0 0.0
        %1772 = vmatpush1.msra.mxu0 0.0
        %1773 = vmatprep.subr.mxu0 0.0
        %1774 = vmatpush1.msra.mxu0 0.0
        %1775 = vmatprep.subr.mxu0 0.0
        %1776 = vmatpush1.msra.mxu0 0.0
        %1777 = vmatprep.subr.mxu0 0.0
        %1778 = vmatpush1.msra.mxu0 0.0
        %1779 = vmatprep.subr.mxu0 0.0
        %1780 = vmatpush1.msra.mxu0 0.0
        %1781 = vmatprep.subr.mxu0 0.0
        %1782 = vmatpush1.msra.mxu0 0.0
        %1783 = vmatprep.subr.mxu0 0.0
        %1784 = vmatpush1.msra.mxu0 0.0
        %1785 = vmatprep.subr.mxu0 0.0
        %1786 = vmatpush1.msra.mxu0 0.0
        %1787 = vmatprep.subr.mxu0 0.0
        %1788 = vmatpush1.msra.mxu0 0.0
        %1789 = vmatprep.subr.mxu0 0.0
        %1790 = vmatpush1.msra.mxu0 0.0
        %1791 = vmatprep.subr.mxu0 0.0
        %1792 = vmatpush1.msra.mxu0 0.0
        %1793 = vmatprep.subr.mxu0 0.0
        %1794 = vmatpush1.msra.mxu0 0.0
        %1795 = vmatprep.subr.mxu0 0.0
        %1796 = vmatpush1.msra.mxu0 0.0
        %1797 = vmatprep.mubr.f32.mxu0 0.0
        %1798 = vmatmul.mubr.f32.gmra.mrb[0].mxu0 %v1662
        %v1799 = vpop.f32.mrb[0].mxu0
        %v1800 = vadd.f32 0.0, %v1799
        %v1801 = vpop.f32.mrb[0].mxu0
        %v1802 = vadd.f32 0.0, %v1801
        %1803 = vdwg.mxu0
        %1804 = vmatprep.subr.mxu0 %v1672
        %1805 = vmatpush1.msra.mxu0 %v1671
        %1806 = vmatprep.subr.mxu0 %v1676
        %1807 = vmatpush1.msra.mxu0 %v1675
        %1808 = vmatprep.subr.mxu0 %v1680
        %1809 = vmatpush1.msra.mxu0 %v1679
        %1810 = vmatprep.subr.mxu0 %v1684
        %1811 = vmatpush1.msra.mxu0 %v1683
        %1812 = vmatprep.subr.mxu0 %v1688
        %1813 = vmatpush1.msra.mxu0 %v1687
        %1814 = vmatprep.subr.mxu0 %v1692
        %1815 = vmatpush1.msra.mxu0 %v1691
        %1816 = vmatprep.subr.mxu0 %v1696
        %1817 = vmatpush1.msra.mxu0 %v1695
        %1818 = vmatprep.subr.mxu0 %v1700
        %1819 = vmatpush1.msra.mxu0 %v1699
        %1820 = vmatprep.subr.mxu0 %v1704
        %1821 = vmatpush1.msra.mxu0 %v1703
        %1822 = vmatprep.subr.mxu0 %v1708
        %1823 = vmatpush1.msra.mxu0 %v1707
        %1824 = vmatprep.subr.mxu0 %v1712
        %1825 = vmatpush1.msra.mxu0 %v1711
        %1826 = vmatprep.subr.mxu0 %v1716
        %1827 = vmatpush1.msra.mxu0 %v1715
        %1828 = vmatprep.subr.mxu0 %v1720
        %1829 = vmatpush1.msra.mxu0 %v1719
        %1830 = vmatprep.subr.mxu0 %v1724
        %1831 = vmatpush1.msra.mxu0 %v1723
        %1832 = vmatprep.subr.mxu0 %v1728
        %1833 = vmatpush1.msra.mxu0 %v1727
        %1834 = vmatprep.subr.mxu0 %v1732
        %1835 = vmatpush1.msra.mxu0 %v1731
        %1836 = vmatprep.subr.mxu0 0.0
        %1837 = vmatpush1.msra.mxu0 0.0
        %1838 = vmatprep.subr.mxu0 0.0
        %1839 = vmatpush1.msra.mxu0 0.0
        %1840 = vmatprep.subr.mxu0 0.0
        %1841 = vmatpush1.msra.mxu0 0.0
        %1842 = vmatprep.subr.mxu0 0.0
        %1843 = vmatpush1.msra.mxu0 0.0
        %1844 = vmatprep.subr.mxu0 0.0
        %1845 = vmatpush1.msra.mxu0 0.0
        %1846 = vmatprep.subr.mxu0 0.0
        %1847 = vmatpush1.msra.mxu0 0.0
        %1848 = vmatprep.subr.mxu0 0.0
        %1849 = vmatpush1.msra.mxu0 0.0
        %1850 = vmatprep.subr.mxu0 0.0
        %1851 = vmatpush1.msra.mxu0 0.0
        %1852 = vmatprep.subr.mxu0 0.0
        %1853 = vmatpush1.msra.mxu0 0.0
        %1854 = vmatprep.subr.mxu0 0.0
        %1855 = vmatpush1.msra.mxu0 0.0
        %1856 = vmatprep.subr.mxu0 0.0
        %1857 = vmatpush1.msra.mxu0 0.0
        %1858 = vmatprep.subr.mxu0 0.0
        %1859 = vmatpush1.msra.mxu0 0.0
        %1860 = vmatprep.subr.mxu0 0.0
        %1861 = vmatpush1.msra.mxu0 0.0
        %1862 = vmatprep.subr.mxu0 0.0
        %1863 = vmatpush1.msra.mxu0 0.0
        %1864 = vmatprep.subr.mxu0 0.0
        %1865 = vmatpush1.msra.mxu0 0.0
        %1866 = vmatprep.subr.mxu0 0.0
        %1867 = vmatpush1.msra.mxu0 0.0
        %1868 = vmatprep.mubr.f32.mxu0 0.0
        %1869 = vmatmul.mubr.f32.gmra.mrb[0].mxu0 %v1662
        %v1870 = vpop.f32.mrb[0].mxu0
        %v1871 = vadd.f32 0.0, %v1870
        %v1872 = vpop.f32.mrb[0].mxu0
        %v1873 = vadd.f32 0.0, %v1872
        %1874 = vdwg.mxu0
        %v1875 = vadd.f32 %v1665, %v1800
        %v1876 = vadd.f32 %v1666, %v1802
        %v1877 = vadd.f32 %v1667, %v1871
        %v1878 = vadd.f32 %v1668, %v1873
        %v1879 = vxor.u32 %v1875, 2147483648
        %v1880 = vmul.f32 %v1879, 1.442695
        %v1881 = vpow.pop %v1880
        %v1882 = vadd.f32 %v1881, 1.0
        %v1883 = vrcp.pop %v1882
        %v1884 = vmul.f32 1.0, %v1883
        %v1885 = vxor.u32 %v1876, 2147483648
        %v1886 = vmul.f32 %v1885, 1.442695
        %v1887 = vpow.pop %v1886
        %v1888 = vadd.f32 %v1887, 1.0
        %v1889 = vrcp.pop %v1888
        %v1890 = vmul.f32 1.0, %v1889
        %v1891 = vtanh.pop %v1877
        %v1892 = vxor.u32 %v1878, 2147483648
        %v1893 = vmul.f32 %v1892, 1.442695
        %v1894 = vpow.pop %v1893
        %v1895 = vadd.f32 %v1894, 1.0
        %v1896 = vrcp.pop %v1895
        %v1897 = vmul.f32 1.0, %v1896
        %v1898 = vmul.f32 %v1890, %v1663
        %v1899 = vmul.f32 %v1884, %v1891
        %v1900 = vadd.f32 %v1898, %v1899
        %v1901 = vtanh.pop %v1900
        %v1902 = vmul.f32 %v1897, %v1901
        %s1903 = scalar_lea.vmem %s382, 40 [#allocation10]
        %1904 = vst [vmem:[%s1903] sm:$0xff] %v1902
        %s1905 = scalar_lea.vmem %s346, 48 [#allocation7]
        %v1906 = vld [vmem:[%s1905] sm:$0xff]
        %1908 = vset.pattern.permute.xlu0 0
        %1909 = vperm.xlu0 %1908, %v1906
        %v1910 = vpop.permute.xlu0 %1909
        %v1912 = vmul.f32 %v1902, %v1910
        %v1913 = vmul.f32 %v1900, %v1910
        %s1914 = scalar_lea.vmem %s338, 192 [#allocation4]
        %v1915 = vld [vmem:[%s1914] sm:$0xff]
        %v1916 = vld [vmem:[%s1914 + $0x8] sm:$0xff]
        %v1917 = vld [vmem:[%s1914 + $0x10] sm:$0xff]
        %v1918 = vld [vmem:[%s1914 + $0x18] sm:$0xff]
        %v1919 = vld [vmem:[#allocation8] sm:$0xff]
        %v1920 = vld [vmem:[#allocation8 + $0x8] sm:$0xff]
        %v1921 = vld [vmem:[#allocation8 + $0x10] sm:$0xff]
        %v1922 = vld [vmem:[#allocation8 + $0x18] sm:$0xff]
        %v1923 = vld [vmem:[#allocation8 + $0x20] sm:$0xff]
        %v1924 = vld [vmem:[#allocation8 + $0x28] sm:$0xff]
        %v1925 = vld [vmem:[#allocation8 + $0x30] sm:$0xff]
        %v1926 = vld [vmem:[#allocation8 + $0x38] sm:$0xff]
        %v1927 = vld [vmem:[#allocation8 + $0x40] sm:$0xff]
        %v1928 = vld [vmem:[#allocation8 + $0x48] sm:$0xff]
        %v1929 = vld [vmem:[#allocation8 + $0x50] sm:$0xff]
        %v1930 = vld [vmem:[#allocation8 + $0x58] sm:$0xff]
        %v1931 = vld [vmem:[#allocation8 + $0x60] sm:$0xff]
        %v1932 = vld [vmem:[#allocation8 + $0x68] sm:$0xff]
        %v1933 = vld [vmem:[#allocation8 + $0x70] sm:$0xff]
        %v1934 = vld [vmem:[#allocation8 + $0x78] sm:$0xff]
        %v1935 = vld [vmem:[#allocation8 + $0x80] sm:$0xff]
        %v1936 = vld [vmem:[#allocation8 + $0x88] sm:$0xff]
        %v1937 = vld [vmem:[#allocation8 + $0x90] sm:$0xff]
        %v1938 = vld [vmem:[#allocation8 + $0x98] sm:$0xff]
        %v1939 = vld [vmem:[#allocation8 + $0xa0] sm:$0xff]
        %v1940 = vld [vmem:[#allocation8 + $0xa8] sm:$0xff]
        %v1941 = vld [vmem:[#allocation8 + $0xb0] sm:$0xff]
        %v1942 = vld [vmem:[#allocation8 + $0xb8] sm:$0xff]
        %v1943 = vld [vmem:[#allocation8 + $0xc0] sm:$0xff]
        %v1944 = vld [vmem:[#allocation8 + $0xc8] sm:$0xff]
        %v1945 = vld [vmem:[#allocation8 + $0xd0] sm:$0xff]
        %v1946 = vld [vmem:[#allocation8 + $0xd8] sm:$0xff]
        %v1947 = vld [vmem:[#allocation8 + $0xe0] sm:$0xff]
        %v1948 = vld [vmem:[#allocation8 + $0xe8] sm:$0xff]
        %v1949 = vld [vmem:[#allocation8 + $0xf0] sm:$0xff]
        %v1950 = vld [vmem:[#allocation8 + $0xf8] sm:$0xff]
        %v1951 = vld [vmem:[#allocation8 + $0x100] sm:$0xff]
        %v1952 = vld [vmem:[#allocation8 + $0x108] sm:$0xff]
        %v1953 = vld [vmem:[#allocation8 + $0x110] sm:$0xff]
        %v1954 = vld [vmem:[#allocation8 + $0x118] sm:$0xff]
        %v1955 = vld [vmem:[#allocation8 + $0x120] sm:$0xff]
        %v1956 = vld [vmem:[#allocation8 + $0x128] sm:$0xff]
        %v1957 = vld [vmem:[#allocation8 + $0x130] sm:$0xff]
        %v1958 = vld [vmem:[#allocation8 + $0x138] sm:$0xff]
        %v1959 = vld [vmem:[#allocation8 + $0x140] sm:$0xff]
        %v1960 = vld [vmem:[#allocation8 + $0x148] sm:$0xff]
        %v1961 = vld [vmem:[#allocation8 + $0x150] sm:$0xff]
        %v1962 = vld [vmem:[#allocation8 + $0x158] sm:$0xff]
        %v1963 = vld [vmem:[#allocation8 + $0x160] sm:$0xff]
        %v1964 = vld [vmem:[#allocation8 + $0x168] sm:$0xff]
        %v1965 = vld [vmem:[#allocation8 + $0x170] sm:$0xff]
        %v1966 = vld [vmem:[#allocation8 + $0x178] sm:$0xff]
        %v1967 = vld [vmem:[#allocation8 + $0x180] sm:$0xff]
        %v1968 = vld [vmem:[#allocation8 + $0x188] sm:$0xff]
        %v1969 = vld [vmem:[#allocation8 + $0x190] sm:$0xff]
        %v1970 = vld [vmem:[#allocation8 + $0x198] sm:$0xff]
        %v1971 = vld [vmem:[#allocation8 + $0x1a0] sm:$0xff]
        %v1972 = vld [vmem:[#allocation8 + $0x1a8] sm:$0xff]
        %v1973 = vld [vmem:[#allocation8 + $0x1b0] sm:$0xff]
        %v1974 = vld [vmem:[#allocation8 + $0x1b8] sm:$0xff]
        %v1975 = vld [vmem:[#allocation8 + $0x1c0] sm:$0xff]
        %v1976 = vld [vmem:[#allocation8 + $0x1c8] sm:$0xff]
        %v1977 = vld [vmem:[#allocation8 + $0x1d0] sm:$0xff]
        %v1978 = vld [vmem:[#allocation8 + $0x1d8] sm:$0xff]
        %v1979 = vld [vmem:[#allocation8 + $0x1e0] sm:$0xff]
        %v1980 = vld [vmem:[#allocation8 + $0x1e8] sm:$0xff]
        %v1981 = vld [vmem:[#allocation8 + $0x1f0] sm:$0xff]
        %v1982 = vld [vmem:[#allocation8 + $0x1f8] sm:$0xff]
        %1983 = vmatprep.subr.mxu0 %v1920
        %1984 = vmatpush1.msra.mxu0 %v1919
        %1985 = vmatprep.subr.mxu0 %v1924
        %1986 = vmatpush1.msra.mxu0 %v1923
        %1987 = vmatprep.subr.mxu0 %v1928
        %1988 = vmatpush1.msra.mxu0 %v1927
        %1989 = vmatprep.subr.mxu0 %v1932
        %1990 = vmatpush1.msra.mxu0 %v1931
        %1991 = vmatprep.subr.mxu0 %v1936
        %1992 = vmatpush1.msra.mxu0 %v1935
        %1993 = vmatprep.subr.mxu0 %v1940
        %1994 = vmatpush1.msra.mxu0 %v1939
        %1995 = vmatprep.subr.mxu0 %v1944
        %1996 = vmatpush1.msra.mxu0 %v1943
        %1997 = vmatprep.subr.mxu0 %v1948
        %1998 = vmatpush1.msra.mxu0 %v1947
        %1999 = vmatprep.subr.mxu0 %v1952
        %2000 = vmatpush1.msra.mxu0 %v1951
        %2001 = vmatprep.subr.mxu0 %v1956
        %2002 = vmatpush1.msra.mxu0 %v1955
        %2003 = vmatprep.subr.mxu0 %v1960
        %2004 = vmatpush1.msra.mxu0 %v1959
        %2005 = vmatprep.subr.mxu0 %v1964
        %2006 = vmatpush1.msra.mxu0 %v1963
        %2007 = vmatprep.subr.mxu0 %v1968
        %2008 = vmatpush1.msra.mxu0 %v1967
        %2009 = vmatprep.subr.mxu0 %v1972
        %2010 = vmatpush1.msra.mxu0 %v1971
        %2011 = vmatprep.subr.mxu0 %v1976
        %2012 = vmatpush1.msra.mxu0 %v1975
        %2013 = vmatprep.subr.mxu0 %v1980
        %2014 = vmatpush1.msra.mxu0 %v1979
        %2015 = vmatprep.subr.mxu0 0.0
        %2016 = vmatpush1.msra.mxu0 0.0
        %2017 = vmatprep.subr.mxu0 0.0
        %2018 = vmatpush1.msra.mxu0 0.0
        %2019 = vmatprep.subr.mxu0 0.0
        %2020 = vmatpush1.msra.mxu0 0.0
        %2021 = vmatprep.subr.mxu0 0.0
        %2022 = vmatpush1.msra.mxu0 0.0
        %2023 = vmatprep.subr.mxu0 0.0
        %2024 = vmatpush1.msra.mxu0 0.0
        %2025 = vmatprep.subr.mxu0 0.0
        %2026 = vmatpush1.msra.mxu0 0.0
        %2027 = vmatprep.subr.mxu0 0.0
        %2028 = vmatpush1.msra.mxu0 0.0
        %2029 = vmatprep.subr.mxu0 0.0
        %2030 = vmatpush1.msra.mxu0 0.0
        %2031 = vmatprep.subr.mxu0 0.0
        %2032 = vmatpush1.msra.mxu0 0.0
        %2033 = vmatprep.subr.mxu0 0.0
        %2034 = vmatpush1.msra.mxu0 0.0
        %2035 = vmatprep.subr.mxu0 0.0
        %2036 = vmatpush1.msra.mxu0 0.0
        %2037 = vmatprep.subr.mxu0 0.0
        %2038 = vmatpush1.msra.mxu0 0.0
        %2039 = vmatprep.subr.mxu0 0.0
        %2040 = vmatpush1.msra.mxu0 0.0
        %2041 = vmatprep.subr.mxu0 0.0
        %2042 = vmatpush1.msra.mxu0 0.0
        %2043 = vmatprep.subr.mxu0 0.0
        %2044 = vmatpush1.msra.mxu0 0.0
        %2045 = vmatprep.subr.mxu0 0.0
        %2046 = vmatpush1.msra.mxu0 0.0
        %2047 = vmatprep.mubr.f32.mxu0 0.0
        %2048 = vmatmul.mubr.f32.gmra.mrb[0].mxu0 %v1912
        %v2049 = vpop.f32.mrb[0].mxu0
        %v2050 = vadd.f32 0.0, %v2049
        %v2051 = vpop.f32.mrb[0].mxu0
        %v2052 = vadd.f32 0.0, %v2051
        %2053 = vdwg.mxu0
        %2054 = vmatprep.subr.mxu0 %v1922
        %2055 = vmatpush1.msra.mxu0 %v1921
        %2056 = vmatprep.subr.mxu0 %v1926
        %2057 = vmatpush1.msra.mxu0 %v1925
        %2058 = vmatprep.subr.mxu0 %v1930
        %2059 = vmatpush1.msra.mxu0 %v1929
        %2060 = vmatprep.subr.mxu0 %v1934
        %2061 = vmatpush1.msra.mxu0 %v1933
        %2062 = vmatprep.subr.mxu0 %v1938
        %2063 = vmatpush1.msra.mxu0 %v1937
        %2064 = vmatprep.subr.mxu0 %v1942
        %2065 = vmatpush1.msra.mxu0 %v1941
        %2066 = vmatprep.subr.mxu0 %v1946
        %2067 = vmatpush1.msra.mxu0 %v1945
        %2068 = vmatprep.subr.mxu0 %v1950
        %2069 = vmatpush1.msra.mxu0 %v1949
        %2070 = vmatprep.subr.mxu0 %v1954
        %2071 = vmatpush1.msra.mxu0 %v1953
        %2072 = vmatprep.subr.mxu0 %v1958
        %2073 = vmatpush1.msra.mxu0 %v1957
        %2074 = vmatprep.subr.mxu0 %v1962
        %2075 = vmatpush1.msra.mxu0 %v1961
        %2076 = vmatprep.subr.mxu0 %v1966
        %2077 = vmatpush1.msra.mxu0 %v1965
        %2078 = vmatprep.subr.mxu0 %v1970
        %2079 = vmatpush1.msra.mxu0 %v1969
        %2080 = vmatprep.subr.mxu0 %v1974
        %2081 = vmatpush1.msra.mxu0 %v1973
        %2082 = vmatprep.subr.mxu0 %v1978
        %2083 = vmatpush1.msra.mxu0 %v1977
        %2084 = vmatprep.subr.mxu0 %v1982
        %2085 = vmatpush1.msra.mxu0 %v1981
        %2086 = vmatprep.subr.mxu0 0.0
        %2087 = vmatpush1.msra.mxu0 0.0
        %2088 = vmatprep.subr.mxu0 0.0
        %2089 = vmatpush1.msra.mxu0 0.0
        %2090 = vmatprep.subr.mxu0 0.0
        %2091 = vmatpush1.msra.mxu0 0.0
        %2092 = vmatprep.subr.mxu0 0.0
        %2093 = vmatpush1.msra.mxu0 0.0
        %2094 = vmatprep.subr.mxu0 0.0
        %2095 = vmatpush1.msra.mxu0 0.0
        %2096 = vmatprep.subr.mxu0 0.0
        %2097 = vmatpush1.msra.mxu0 0.0
        %2098 = vmatprep.subr.mxu0 0.0
        %2099 = vmatpush1.msra.mxu0 0.0
        %2100 = vmatprep.subr.mxu0 0.0
        %2101 = vmatpush1.msra.mxu0 0.0
        %2102 = vmatprep.subr.mxu0 0.0
        %2103 = vmatpush1.msra.mxu0 0.0
        %2104 = vmatprep.subr.mxu0 0.0
        %2105 = vmatpush1.msra.mxu0 0.0
        %2106 = vmatprep.subr.mxu0 0.0
        %2107 = vmatpush1.msra.mxu0 0.0
        %2108 = vmatprep.subr.mxu0 0.0
        %2109 = vmatpush1.msra.mxu0 0.0
        %2110 = vmatprep.subr.mxu0 0.0
        %2111 = vmatpush1.msra.mxu0 0.0
        %2112 = vmatprep.subr.mxu0 0.0
        %2113 = vmatpush1.msra.mxu0 0.0
        %2114 = vmatprep.subr.mxu0 0.0
        %2115 = vmatpush1.msra.mxu0 0.0
        %2116 = vmatprep.subr.mxu0 0.0
        %2117 = vmatpush1.msra.mxu0 0.0
        %2118 = vmatprep.mubr.f32.mxu0 0.0
        %2119 = vmatmul.mubr.f32.gmra.mrb[0].mxu0 %v1912
        %v2120 = vpop.f32.mrb[0].mxu0
        %v2121 = vadd.f32 0.0, %v2120
        %v2122 = vpop.f32.mrb[0].mxu0
        %v2123 = vadd.f32 0.0, %v2122
        %2124 = vdwg.mxu0
        %v2125 = vadd.f32 %v1915, %v2050
        %v2126 = vadd.f32 %v1916, %v2052
        %v2127 = vadd.f32 %v1917, %v2121
        %v2128 = vadd.f32 %v1918, %v2123
        %v2129 = vxor.u32 %v2125, 2147483648
        %v2130 = vmul.f32 %v2129, 1.442695
        %v2131 = vpow.pop %v2130
        %v2132 = vadd.f32 %v2131, 1.0
        %v2133 = vrcp.pop %v2132
        %v2134 = vmul.f32 1.0, %v2133
        %v2135 = vxor.u32 %v2126, 2147483648
        %v2136 = vmul.f32 %v2135, 1.442695
        %v2137 = vpow.pop %v2136
        %v2138 = vadd.f32 %v2137, 1.0
        %v2139 = vrcp.pop %v2138
        %v2140 = vmul.f32 1.0, %v2139
        %v2141 = vtanh.pop %v2127
        %v2142 = vxor.u32 %v2128, 2147483648
        %v2143 = vmul.f32 %v2142, 1.442695
        %v2144 = vpow.pop %v2143
        %v2145 = vadd.f32 %v2144, 1.0
        %v2146 = vrcp.pop %v2145
        %v2147 = vmul.f32 1.0, %v2146
        %v2148 = vmul.f32 %v2140, %v1913
        %v2149 = vmul.f32 %v2134, %v2141
        %v2150 = vadd.f32 %v2148, %v2149
        %v2151 = vtanh.pop %v2150
        %v2152 = vmul.f32 %v2147, %v2151
        %s2153 = scalar_lea.vmem %s382, 48 [#allocation10]
        %2154 = vst [vmem:[%s2153] sm:$0xff] %v2152
        %s2155 = scalar_lea.vmem %s346, 56 [#allocation7]
        %v2156 = vld [vmem:[%s2155] sm:$0xff]
        %2158 = vset.pattern.permute.xlu0 0
        %2159 = vperm.xlu0 %2158, %v2156
        %v2160 = vpop.permute.xlu0 %2159
        %v2162 = vmul.f32 %v2152, %v2160
        %v2163 = vmul.f32 %v2150, %v2160
        %s2164 = scalar_lea.vmem %s338, 224 [#allocation4]
        %v2165 = vld [vmem:[%s2164] sm:$0xff]
        %v2166 = vld [vmem:[%s2164 + $0x8] sm:$0xff]
        %v2167 = vld [vmem:[%s2164 + $0x10] sm:$0xff]
        %v2168 = vld [vmem:[%s2164 + $0x18] sm:$0xff]
        %v2169 = vld [vmem:[#allocation8] sm:$0xff]
        %v2170 = vld [vmem:[#allocation8 + $0x8] sm:$0xff]
        %v2171 = vld [vmem:[#allocation8 + $0x10] sm:$0xff]
        %v2172 = vld [vmem:[#allocation8 + $0x18] sm:$0xff]
        %v2173 = vld [vmem:[#allocation8 + $0x20] sm:$0xff]
        %v2174 = vld [vmem:[#allocation8 + $0x28] sm:$0xff]
        %v2175 = vld [vmem:[#allocation8 + $0x30] sm:$0xff]
        %v2176 = vld [vmem:[#allocation8 + $0x38] sm:$0xff]
        %v2177 = vld [vmem:[#allocation8 + $0x40] sm:$0xff]
        %v2178 = vld [vmem:[#allocation8 + $0x48] sm:$0xff]
        %v2179 = vld [vmem:[#allocation8 + $0x50] sm:$0xff]
        %v2180 = vld [vmem:[#allocation8 + $0x58] sm:$0xff]
        %v2181 = vld [vmem:[#allocation8 + $0x60] sm:$0xff]
        %v2182 = vld [vmem:[#allocation8 + $0x68] sm:$0xff]
        %v2183 = vld [vmem:[#allocation8 + $0x70] sm:$0xff]
        %v2184 = vld [vmem:[#allocation8 + $0x78] sm:$0xff]
        %v2185 = vld [vmem:[#allocation8 + $0x80] sm:$0xff]
        %v2186 = vld [vmem:[#allocation8 + $0x88] sm:$0xff]
        %v2187 = vld [vmem:[#allocation8 + $0x90] sm:$0xff]
        %v2188 = vld [vmem:[#allocation8 + $0x98] sm:$0xff]
        %v2189 = vld [vmem:[#allocation8 + $0xa0] sm:$0xff]
        %v2190 = vld [vmem:[#allocation8 + $0xa8] sm:$0xff]
        %v2191 = vld [vmem:[#allocation8 + $0xb0] sm:$0xff]
        %v2192 = vld [vmem:[#allocation8 + $0xb8] sm:$0xff]
        %v2193 = vld [vmem:[#allocation8 + $0xc0] sm:$0xff]
        %v2194 = vld [vmem:[#allocation8 + $0xc8] sm:$0xff]
        %v2195 = vld [vmem:[#allocation8 + $0xd0] sm:$0xff]
        %v2196 = vld [vmem:[#allocation8 + $0xd8] sm:$0xff]
        %v2197 = vld [vmem:[#allocation8 + $0xe0] sm:$0xff]
        %v2198 = vld [vmem:[#allocation8 + $0xe8] sm:$0xff]
        %v2199 = vld [vmem:[#allocation8 + $0xf0] sm:$0xff]
        %v2200 = vld [vmem:[#allocation8 + $0xf8] sm:$0xff]
        %v2201 = vld [vmem:[#allocation8 + $0x100] sm:$0xff]
        %v2202 = vld [vmem:[#allocation8 + $0x108] sm:$0xff]
        %v2203 = vld [vmem:[#allocation8 + $0x110] sm:$0xff]
        %v2204 = vld [vmem:[#allocation8 + $0x118] sm:$0xff]
        %v2205 = vld [vmem:[#allocation8 + $0x120] sm:$0xff]
        %v2206 = vld [vmem:[#allocation8 + $0x128] sm:$0xff]
        %v2207 = vld [vmem:[#allocation8 + $0x130] sm:$0xff]
        %v2208 = vld [vmem:[#allocation8 + $0x138] sm:$0xff]
        %v2209 = vld [vmem:[#allocation8 + $0x140] sm:$0xff]
        %v2210 = vld [vmem:[#allocation8 + $0x148] sm:$0xff]
        %v2211 = vld [vmem:[#allocation8 + $0x150] sm:$0xff]
        %v2212 = vld [vmem:[#allocation8 + $0x158] sm:$0xff]
        %v2213 = vld [vmem:[#allocation8 + $0x160] sm:$0xff]
        %v2214 = vld [vmem:[#allocation8 + $0x168] sm:$0xff]
        %v2215 = vld [vmem:[#allocation8 + $0x170] sm:$0xff]
        %v2216 = vld [vmem:[#allocation8 + $0x178] sm:$0xff]
        %v2217 = vld [vmem:[#allocation8 + $0x180] sm:$0xff]
        %v2218 = vld [vmem:[#allocation8 + $0x188] sm:$0xff]
        %v2219 = vld [vmem:[#allocation8 + $0x190] sm:$0xff]
        %v2220 = vld [vmem:[#allocation8 + $0x198] sm:$0xff]
        %v2221 = vld [vmem:[#allocation8 + $0x1a0] sm:$0xff]
        %v2222 = vld [vmem:[#allocation8 + $0x1a8] sm:$0xff]
        %v2223 = vld [vmem:[#allocation8 + $0x1b0] sm:$0xff]
        %v2224 = vld [vmem:[#allocation8 + $0x1b8] sm:$0xff]
        %v2225 = vld [vmem:[#allocation8 + $0x1c0] sm:$0xff]
        %v2226 = vld [vmem:[#allocation8 + $0x1c8] sm:$0xff]
        %v2227 = vld [vmem:[#allocation8 + $0x1d0] sm:$0xff]
        %v2228 = vld [vmem:[#allocation8 + $0x1d8] sm:$0xff]
        %v2229 = vld [vmem:[#allocation8 + $0x1e0] sm:$0xff]
        %v2230 = vld [vmem:[#allocation8 + $0x1e8] sm:$0xff]
        %v2231 = vld [vmem:[#allocation8 + $0x1f0] sm:$0xff]
        %v2232 = vld [vmem:[#allocation8 + $0x1f8] sm:$0xff]
        %2233 = vmatprep.subr.mxu0 %v2170
        %2234 = vmatpush1.msra.mxu0 %v2169
        %2235 = vmatprep.subr.mxu0 %v2174
        %2236 = vmatpush1.msra.mxu0 %v2173
        %2237 = vmatprep.subr.mxu0 %v2178
        %2238 = vmatpush1.msra.mxu0 %v2177
        %2239 = vmatprep.subr.mxu0 %v2182
        %2240 = vmatpush1.msra.mxu0 %v2181
        %2241 = vmatprep.subr.mxu0 %v2186
        %2242 = vmatpush1.msra.mxu0 %v2185
        %2243 = vmatprep.subr.mxu0 %v2190
        %2244 = vmatpush1.msra.mxu0 %v2189
        %2245 = vmatprep.subr.mxu0 %v2194
        %2246 = vmatpush1.msra.mxu0 %v2193
        %2247 = vmatprep.subr.mxu0 %v2198
        %2248 = vmatpush1.msra.mxu0 %v2197
        %2249 = vmatprep.subr.mxu0 %v2202
        %2250 = vmatpush1.msra.mxu0 %v2201
        %2251 = vmatprep.subr.mxu0 %v2206
        %2252 = vmatpush1.msra.mxu0 %v2205
        %2253 = vmatprep.subr.mxu0 %v2210
        %2254 = vmatpush1.msra.mxu0 %v2209
        %2255 = vmatprep.subr.mxu0 %v2214
        %2256 = vmatpush1.msra.mxu0 %v2213
        %2257 = vmatprep.subr.mxu0 %v2218
        %2258 = vmatpush1.msra.mxu0 %v2217
        %2259 = vmatprep.subr.mxu0 %v2222
        %2260 = vmatpush1.msra.mxu0 %v2221
        %2261 = vmatprep.subr.mxu0 %v2226
        %2262 = vmatpush1.msra.mxu0 %v2225
        %2263 = vmatprep.subr.mxu0 %v2230
        %2264 = vmatpush1.msra.mxu0 %v2229
        %2265 = vmatprep.subr.mxu0 0.0
        %2266 = vmatpush1.msra.mxu0 0.0
        %2267 = vmatprep.subr.mxu0 0.0
        %2268 = vmatpush1.msra.mxu0 0.0
        %2269 = vmatprep.subr.mxu0 0.0
        %2270 = vmatpush1.msra.mxu0 0.0
        %2271 = vmatprep.subr.mxu0 0.0
        %2272 = vmatpush1.msra.mxu0 0.0
        %2273 = vmatprep.subr.mxu0 0.0
        %2274 = vmatpush1.msra.mxu0 0.0
        %2275 = vmatprep.subr.mxu0 0.0
        %2276 = vmatpush1.msra.mxu0 0.0
        %2277 = vmatprep.subr.mxu0 0.0
        %2278 = vmatpush1.msra.mxu0 0.0
        %2279 = vmatprep.subr.mxu0 0.0
        %2280 = vmatpush1.msra.mxu0 0.0
        %2281 = vmatprep.subr.mxu0 0.0
        %2282 = vmatpush1.msra.mxu0 0.0
        %2283 = vmatprep.subr.mxu0 0.0
        %2284 = vmatpush1.msra.mxu0 0.0
        %2285 = vmatprep.subr.mxu0 0.0
        %2286 = vmatpush1.msra.mxu0 0.0
        %2287 = vmatprep.subr.mxu0 0.0
        %2288 = vmatpush1.msra.mxu0 0.0
        %2289 = vmatprep.subr.mxu0 0.0
        %2290 = vmatpush1.msra.mxu0 0.0
        %2291 = vmatprep.subr.mxu0 0.0
        %2292 = vmatpush1.msra.mxu0 0.0
        %2293 = vmatprep.subr.mxu0 0.0
        %2294 = vmatpush1.msra.mxu0 0.0
        %2295 = vmatprep.subr.mxu0 0.0
        %2296 = vmatpush1.msra.mxu0 0.0
        %2297 = vmatprep.mubr.f32.mxu0 0.0
        %2298 = vmatmul.mubr.f32.gmra.mrb[0].mxu0 %v2162
        %v2299 = vpop.f32.mrb[0].mxu0
        %v2300 = vadd.f32 0.0, %v2299
        %v2301 = vpop.f32.mrb[0].mxu0
        %v2302 = vadd.f32 0.0, %v2301
        %2303 = vdwg.mxu0
        %2304 = vmatprep.subr.mxu0 %v2172
        %2305 = vmatpush1.msra.mxu0 %v2171
        %2306 = vmatprep.subr.mxu0 %v2176
        %2307 = vmatpush1.msra.mxu0 %v2175
        %2308 = vmatprep.subr.mxu0 %v2180
        %2309 = vmatpush1.msra.mxu0 %v2179
        %2310 = vmatprep.subr.mxu0 %v2184
        %2311 = vmatpush1.msra.mxu0 %v2183
        %2312 = vmatprep.subr.mxu0 %v2188
        %2313 = vmatpush1.msra.mxu0 %v2187
        %2314 = vmatprep.subr.mxu0 %v2192
        %2315 = vmatpush1.msra.mxu0 %v2191
        %2316 = vmatprep.subr.mxu0 %v2196
        %2317 = vmatpush1.msra.mxu0 %v2195
        %2318 = vmatprep.subr.mxu0 %v2200
        %2319 = vmatpush1.msra.mxu0 %v2199
        %2320 = vmatprep.subr.mxu0 %v2204
        %2321 = vmatpush1.msra.mxu0 %v2203
        %2322 = vmatprep.subr.mxu0 %v2208
        %2323 = vmatpush1.msra.mxu0 %v2207
        %2324 = vmatprep.subr.mxu0 %v2212
        %2325 = vmatpush1.msra.mxu0 %v2211
        %2326 = vmatprep.subr.mxu0 %v2216
        %2327 = vmatpush1.msra.mxu0 %v2215
        %2328 = vmatprep.subr.mxu0 %v2220
        %2329 = vmatpush1.msra.mxu0 %v2219
        %2330 = vmatprep.subr.mxu0 %v2224
        %2331 = vmatpush1.msra.mxu0 %v2223
        %2332 = vmatprep.subr.mxu0 %v2228
        %2333 = vmatpush1.msra.mxu0 %v2227
        %2334 = vmatprep.subr.mxu0 %v2232
        %2335 = vmatpush1.msra.mxu0 %v2231
        %2336 = vmatprep.subr.mxu0 0.0
        %2337 = vmatpush1.msra.mxu0 0.0
        %2338 = vmatprep.subr.mxu0 0.0
        %2339 = vmatpush1.msra.mxu0 0.0
        %2340 = vmatprep.subr.mxu0 0.0
        %2341 = vmatpush1.msra.mxu0 0.0
        %2342 = vmatprep.subr.mxu0 0.0
        %2343 = vmatpush1.msra.mxu0 0.0
        %2344 = vmatprep.subr.mxu0 0.0
        %2345 = vmatpush1.msra.mxu0 0.0
        %2346 = vmatprep.subr.mxu0 0.0
        %2347 = vmatpush1.msra.mxu0 0.0
        %2348 = vmatprep.subr.mxu0 0.0
        %2349 = vmatpush1.msra.mxu0 0.0
        %2350 = vmatprep.subr.mxu0 0.0
        %2351 = vmatpush1.msra.mxu0 0.0
        %2352 = vmatprep.subr.mxu0 0.0
        %2353 = vmatpush1.msra.mxu0 0.0
        %2354 = vmatprep.subr.mxu0 0.0
        %2355 = vmatpush1.msra.mxu0 0.0
        %2356 = vmatprep.subr.mxu0 0.0
        %2357 = vmatpush1.msra.mxu0 0.0
        %2358 = vmatprep.subr.mxu0 0.0
        %2359 = vmatpush1.msra.mxu0 0.0
        %2360 = vmatprep.subr.mxu0 0.0
        %2361 = vmatpush1.msra.mxu0 0.0
        %2362 = vmatprep.subr.mxu0 0.0
        %2363 = vmatpush1.msra.mxu0 0.0
        %2364 = vmatprep.subr.mxu0 0.0
        %2365 = vmatpush1.msra.mxu0 0.0
        %2366 = vmatprep.subr.mxu0 0.0
        %2367 = vmatpush1.msra.mxu0 0.0
        %2368 = vmatprep.mubr.f32.mxu0 0.0
        %2369 = vmatmul.mubr.f32.gmra.mrb[0].mxu0 %v2162
        %v2370 = vpop.f32.mrb[0].mxu0
        %v2371 = vadd.f32 0.0, %v2370
        %v2372 = vpop.f32.mrb[0].mxu0
        %v2373 = vadd.f32 0.0, %v2372
        %2374 = vdwg.mxu0
        %v2375 = vadd.f32 %v2165, %v2300
        %v2376 = vadd.f32 %v2166, %v2302
        %v2377 = vadd.f32 %v2167, %v2371
        %v2378 = vadd.f32 %v2168, %v2373
        %v2379 = vxor.u32 %v2375, 2147483648
        %v2380 = vmul.f32 %v2379, 1.442695
        %v2381 = vpow.pop %v2380
        %v2382 = vadd.f32 %v2381, 1.0
        %v2383 = vrcp.pop %v2382
        %v2384 = vmul.f32 1.0, %v2383
        %v2385 = vxor.u32 %v2376, 2147483648
        %v2386 = vmul.f32 %v2385, 1.442695
        %v2387 = vpow.pop %v2386
        %v2388 = vadd.f32 %v2387, 1.0
        %v2389 = vrcp.pop %v2388
        %v2390 = vmul.f32 1.0, %v2389
        %v2391 = vtanh.pop %v2377
        %v2392 = vxor.u32 %v2378, 2147483648
        %v2393 = vmul.f32 %v2392, 1.442695
        %v2394 = vpow.pop %v2393
        %v2395 = vadd.f32 %v2394, 1.0
        %v2396 = vrcp.pop %v2395
        %v2397 = vmul.f32 1.0, %v2396
        %v2398 = vmul.f32 %v2390, %v2163
        %v2399 = vmul.f32 %v2384, %v2391
        %v2400 = vadd.f32 %v2398, %v2399
        %v2401 = vtanh.pop %v2400
        %v2402 = vmul.f32 %v2397, %v2401
        %s2403 = scalar_lea.vmem %s382, 56 [#allocation10]
        %2404 = vst [vmem:[%s2403] sm:$0xff] %v2402
        %2405 = vst [vmem:[#allocation2] sm:$0xff] %v2402
        %2406 = vst [vmem:[#allocation3] sm:$0xff] %v2400
        %2407 = vst [vmem:[%s389] sm:$0xff] %v2402
        %2408 = vst [vmem:[%s389 + $0x8] sm:$0xff] %v2400
        %s2409 = sand.u32 %s152, 1
        %s2410 = scalar_lea.sflag [#allocation6], %s2409
        %s2411 = sand.u32 %s152, 1
        %s2412 = smul.addr %s2411, 64
        %s2413 = scalar_lea.vmem [#allocation10], %s2412
        %s2414 = sand.u32 %s178, 1
        %s2415 = scalar_lea.sflag [#allocation12], %s2414
        %s2416 = sand.u32 %s178, 1
        %s2417 = smul.addr %s2416, 16
        %s2418 = scalar_lea.vmem [#allocation11], %s2417
        // Predicated region
        $region87: #{tpu_custom_call.1} parent=69 // pred_check
          %p2419 = pneg %p162
        $region88: #{tpu_custom_call.1} parent=69 // pred_check_branch
          %2421 = sbr.rel (%p2419) target = $region90
        $region89: #{tpu_custom_call.1} parent=69 // pred_region
          %s2422 = smul.u32 8, %s32
          %s2424 = ssub.s32 1024, 1024
          %2425 = vsyncadd %s2410, %s2424
          %s2426 = smul.addr %s2422, 2
          %s2427 = sadd.s32 %s31, %s2426
          %s2428 = smul.addr %s2427, 128
          %s2429 = scalar_lea.hbm %s4, %s2428
          %s2430 = sshll.u32 %s2413, 4
          %s2431 = int_to_ptr.vmem [resolvable:$true] %s2430
          %2436 = dma.vmem_to_hbm [thread:$0]  %s2431, 1024, %s2429, %s2410, 128, 256, 8
        $region90: #{tpu_custom_call.1} parent=69 // pred_fallthru
          _
        // Predicated region
        $region91: #{tpu_custom_call.1} parent=69 // pred_check
          %p2437 = pneg %p188
        $region92: #{tpu_custom_call.1} parent=69 // pred_check_branch
          %2439 = sbr.rel (%p2437) target = $region94
        $region93: #{tpu_custom_call.1} parent=69 // pred_region
          %s2441 = ssub.s32 256, 256
          %2442 = vsyncadd %s2415, %s2441
          %s2443 = smul.addr %s31, 2
          %s2444 = smul.addr %s2443, 128
          %s2445 = scalar_lea.hbm %s5, %s2444
          %s2447 = sshll.u32 %s2418, 4
          %s2448 = int_to_ptr.vmem [resolvable:$true] %s2447
          %2450 = dma.vmem_to_hbm [thread:$0]  %s2448, 256, %s2445, %s2415
        $region94: #{tpu_custom_call.1} parent=69 // pred_fallthru
          _
      $region70: #{tpu_custom_call.1} parent=5 // pred_fallthru
        _
      %p2451 = scmp.le.s32.totalorder 2, %s22
      // Predicated region
      $region95: #{tpu_custom_call.1} parent=5 // pred_check
        %p2452 = pneg %p2451
      $region96: #{tpu_custom_call.1} parent=5 // pred_check_branch
        %2454 = sbr.rel (%p2452) target = $region98
      $region97: #{tpu_custom_call.1} parent=5 // pred_region
        %s2455 = ssub.s32 %s22, 2
        // Predicated region
        $region99: #{tpu_custom_call.1} parent=97 // pred_check
          %p2456 = pneg %p168
        $region100: #{tpu_custom_call.1} parent=97 // pred_check_branch
          %2458 = sbr.rel (%p2456) target = $region102
        $region101: #{tpu_custom_call.1} parent=97 // pred_region
          %s2459 = sand.u32 %s153, 1
          %s2460 = scalar_lea.sflag [#allocation6], %s2459
          %s2461 = sand.u32 %s153, 1
          %s2462 = smul.addr %s2461, 64
          %s2463 = scalar_lea.vmem [#allocation10], %s2462
          %2464 = dma.done %s2460, 1024
        $region102: #{tpu_custom_call.1} parent=97 // pred_fallthru
          _
        // Predicated region
        $region103: #{tpu_custom_call.1} parent=97 // pred_check
          %p2465 = pneg %p194
        $region104: #{tpu_custom_call.1} parent=97 // pred_check_branch
          %2467 = sbr.rel (%p2465) target = $region106
        $region105: #{tpu_custom_call.1} parent=97 // pred_region
          %s2468 = sand.u32 %s179, 1
          %s2469 = scalar_lea.sflag [#allocation12], %s2468
          %s2470 = sand.u32 %s179, 1
          %s2471 = smul.addr %s2470, 16
          %s2472 = scalar_lea.vmem [#allocation11], %s2471
          %2473 = dma.done %s2469, 256
        $region106: #{tpu_custom_call.1} parent=97 // pred_fallthru
          _
      $region98: #{tpu_custom_call.1} parent=5 // pred_fallthru
        _
    $region6: #{tpu_custom_call.1} parent=1 // loop_footer
      %s26 = sadd.s32 1, %s22
    $region7: #{tpu_custom_call.1} parent=1 // loop_footer_branch
      %21 = sbr.rel target = $region3
    $region8: #{tpu_custom_call.1} parent=1 // loop_exit
      _
    %2474 = vsyncpa [#allocation5], 1
    %s2475 = scalar_lea.sflag [#allocation5], 1
    %2476 = vsyncpa %s2475, 1
    %2477 = vsyncpa [#allocation9], 1
    %2478 = vsyncpa [#allocation6], 1
    %s2479 = scalar_lea.sflag [#allocation6], 1
    %2480 = vsyncpa %s2479, 1
    %2481 = vsyncpa [#allocation12], 1
    %s2482 = scalar_lea.sflag [#allocation12], 1
    %2483 = vsyncpa %s2482, 1

</llo_original>
